<compile_context>
chip_gen: v7x
topology: tpu7x:2x2x1
jax: 0.10.0
libtpu: 0.0.40
codegen_flags: <defaults>
</compile_context>

<pallas_src>
import jax
import jax.numpy as jnp
from jax import lax
from jax.experimental import pallas as pl
from jax.experimental.pallas import tpu as pltpu

K = 9        # Conv1d kernel size
PAD = 4      # Conv1d padding
EPS = 1e-5   # BatchNorm1d eps (PyTorch default)
LANE = 128   # TPU lane width
ROW_ALIGN = 16                       # bf16 sublane packing granularity
VMEM_LIMIT_BYTES = 32 * 1024 * 1024  # explicit scoped-VMEM limit (safe on v5e/v6e/v7x)
VMEM_FILL_FRACTION = 0.7             # headroom for compiler scratch / estimate slack

# The tile/halo arithmetic below assumes a stride-1 "same" conv.
assert K == 2 * PAD + 1


def _round_up(n, m):
    return (n + m - 1) // m * m


def _vmem_estimate(tl, cin_p, cout_p, equal_in_out):
    """Rough per-step VMEM bytes, incl. compiler-managed f32/bf16 temporaries."""
    nx, n1 = tl + 4 * PAD, tl + 2 * PAD
    io = 2 * nx * cin_p * 4 + 2 * tl * cout_p * 4              # x / y (double-buffered)
    wts = K * cin_p * cout_p * 2 + K * cout_p * cout_p * 2     # single-buffered bf16
    if not equal_in_out:
        wts += cin_p * cout_p * 2
    scratch = n1 * K * cin_p * 2 + tl * K * cout_p * 2         # im2col slabs
    # h (f32) + h_bf, acc + h2 + h2_bf, acc2 + shortcut + output cast
    tmps = nx * cin_p * 6 + n1 * cout_p * 10 + tl * cout_p * 12
    return io + wts + scratch + tmps


def _pick_tile(L, cin_p, cout_p, equal_in_out, tile_l):
    """Largest 16-row-aligned L tile that fits the VMEM budget."""
    if tile_l is not None:
        return max(ROW_ALIGN, _round_up(tile_l, ROW_ALIGN))
    budget = int(VMEM_LIMIT_BYTES * VMEM_FILL_FRACTION)
    l_ceil = _round_up(L, ROW_ALIGN)
    best = ROW_ALIGN
    tl = ROW_ALIGN
    while tl <= min(1024, l_ceil):
        if _vmem_estimate(tl, cin_p, cout_p, equal_in_out) <= budget:
            best = tl
        tl += ROW_ALIGN
    return best


def _bn_fold(gamma, beta, mean, var, cpad):
    s = gamma / jnp.sqrt(var + EPS)
    b = beta - mean * s
    s = jnp.pad(s, (0, cpad - s.shape[0])).reshape(1, cpad).astype(jnp.float32)
    b = jnp.pad(b, (0, cpad - b.shape[0])).reshape(1, cpad).astype(jnp.float32)
    return s, b


def _make_block_kernel(equal_in_out, *, L, tl, cin_p, cout_p):
    """Whole BasicBlock forward for one (batch, L-tile) grid point."""
    nx = tl + 4 * PAD   # x / h rows staged per tile (2*PAD recompute halo/side)
    n1 = tl + 2 * PAD   # conv1 output rows needed (conv2 input window)

    def kernel(x_ref, bn1s_ref, bn1b_ref, w1_ref, bn2s_ref, bn2b_ref,
               w2_ref, *rest):
        if equal_in_out:
            (y_ref, im1_ref, im2_ref), ws_ref = rest, None
        else:
            ws_ref, y_ref, im1_ref, im2_ref = rest

        t = pl.program_id(1)
        base = t * tl - 2 * PAD            # global sequence row of x_ref row 0

        x = x_ref[0, 0]                    # (nx, cin_p) f32

        # ---- bn1 + relu (folded scale/bias), masked to the real sequence ----
        # The row mask realises Conv1d's zero padding of h (halo rows outside
        # [0, L) must be exact zeros) -- replaces the old zero-halo stores.
        rows_x = base + lax.broadcasted_iota(jnp.int32, (nx, 1), 0)
        in_seq_x = jnp.logical_and(rows_x >= 0, rows_x < L)
        h = jnp.where(in_seq_x,
                      jnp.maximum(x * bn1s_ref[...] + bn1b_ref[...], 0.0), 0.0)
        h_bf = h.astype(jnp.bfloat16)

        # ---- conv1: im2col slab (lane-aligned column blocks) + ONE matmul ----
        for k in range(K):
            im1_ref[:, k * cin_p:(k + 1) * cin_p] = h_bf[k:k + n1, :]
        acc = jnp.dot(im1_ref[...], w1_ref[...],
                      preferred_element_type=jnp.float32)        # (n1, cout_p)

        # ---- bn2 + relu, masked.  droprate == 0.0 -> dropout is identity ----
        rows_1 = (base + PAD) + lax.broadcasted_iota(jnp.int32, (n1, 1), 0)
        in_seq_1 = jnp.logical_and(rows_1 >= 0, rows_1 < L)
        h2 = jnp.where(in_seq_1,
                       jnp.maximum(acc * bn2s_ref[...] + bn2b_ref[...], 0.0), 0.0)
        h2_bf = h2.astype(jnp.bfloat16)

        # ---- conv2: second im2col slab + one matmul ----
        for k in range(K):
            im2_ref[:, k * cout_p:(k + 1) * cout_p] = h2_bf[k:k + tl, :]
        acc2 = jnp.dot(im2_ref[...], w2_ref[...],
                       preferred_element_type=jnp.float32)       # (tl, cout_p)

        # ---- residual add ----
        if equal_in_out:
            shortcut = x[2 * PAD:2 * PAD + tl, :]                # identity (f32)
        else:
            shortcut = jnp.dot(h_bf[2 * PAD:2 * PAD + tl, :], ws_ref[...],
                               preferred_element_type=jnp.float32)
        y_ref[0] = (shortcut + acc2).astype(y_ref.dtype)

    return kernel


def basic_block_forward(x_ncl, params, *, stride=1, tile_l=None,
                        out_dtype=jnp.float32):
    """x_ncl: (N, Cin, L) float32 (PyTorch NCL layout). Returns (N, Cout, L)."""
    # TODO(synk): stride > 1 (strided conv1 / strided 1x1 shortcut) not implemented.
    assert stride == 1
    N, Cin, L = x_ncl.shape
    Cout = params["w1"].shape[0]
    equal_in_out = (Cin == Cout)

    cin_p = _round_up(Cin, LANE)
    cout_p = _round_up(Cout, LANE)
    # TODO(synk): for very narrow layers (Cin << 128) pack K*Cin real channels
    # densely into the 128-lane contraction instead of lane-padding Cin alone.

    tl = _pick_tile(L, cin_p, cout_p, equal_in_out, tile_l)
    num_t = -(-L // tl)
    l_pad = num_t * tl
    nx = tl + 4 * PAD
    n1 = tl + 2 * PAD

    # NCL -> NLC, lane-pad channels, add the 2*PAD recompute halo + tile
    # padding along L, and materialize the per-tile (overlapping) windows so
    # the kernel-side x BlockSpec stays plain non-overlapping Blocked indexing.
    # TODO(synk): replace this wrapper-side halo materialization (one extra HBM
    # copy of x) with an overlapping pl.Element-offset BlockSpec or manual DMA.
    x_nlc = jnp.transpose(x_ncl, (0, 2, 1)).astype(jnp.float32)
    x_nlc = jnp.pad(x_nlc, ((0, 0), (0, 0), (0, cin_p - Cin)))
    x_ext = jnp.pad(x_nlc, ((0, 0), (2 * PAD, 2 * PAD + l_pad - L), (0, 0)))
    win_rows = (jnp.arange(num_t) * tl)[:, None] + jnp.arange(nx)[None, :]
    x_win = x_ext[:, win_rows, :]                         # (N, num_t, nx, cin_p)

    # BN (eval mode) folded to per-channel scale/bias; padded channels get
    # scale=0 / bias=0 so they stay exactly zero through the whole block.
    bn1s, bn1b = _bn_fold(*params["bn1"], cin_p)
    bn2s, bn2b = _bn_fold(*params["bn2"], cout_p)

    # Conv weights: (Cout, Cin, K) -> flattened (K*Cin_p, Cout_p) bf16 so each
    # conv is a single MXU matmul with a K*C-deep contraction (accumulation
    # inside the MXU, full-depth pushes on v6e/v7x, MRB accumulation on v7x).
    def _flat_weight(w, ci, ci_p):
        w = jnp.transpose(w, (2, 1, 0))                   # (K, Cin, Cout)
        w = jnp.pad(w, ((0, 0), (0, ci_p - ci), (0, cout_p - Cout)))
        return w.reshape(K * ci_p, cout_p).astype(jnp.bfloat16)

    w1 = _flat_weight(params["w1"], Cin, cin_p)
    w2 = _flat_weight(params["w2"], Cout, cout_p)

    operands = [x_win, bn1s, bn1b, w1, bn2s, bn2b, w2]
    if not equal_in_out:
        ws = jnp.transpose(params["ws"][:, :, 0], (1, 0))  # (Cin, Cout)
        ws = jnp.pad(ws, ((0, cin_p - Cin), (0, cout_p - Cout)))
        operands.append(ws.astype(jnp.bfloat16))

    def _build_in_specs(single_buffer):
        def const_spec(shape):
            idx = lambda b, t, _n=len(shape): (0,) * _n
            if single_buffer:
                try:
                    # Invariant blocks: no double buffering needed.
                    return pl.BlockSpec(shape, idx, pipeline_mode=pl.Buffered(1))
                except Exception:
                    return pl.BlockSpec(shape, idx)
            return pl.BlockSpec(shape, idx)

        specs = [
            pl.BlockSpec((1, 1, nx, cin_p), lambda b, t: (b, t, 0, 0)),  # x window
            const_spec((1, cin_p)),                    # bn1 scale
            const_spec((1, cin_p)),                    # bn1 bias
            const_spec((K * cin_p, cout_p)),           # w1 (flattened)
            const_spec((1, cout_p)),                   # bn2 scale
            const_spec((1, cout_p)),                   # bn2 bias
            const_spec((K * cout_p, cout_p)),          # w2 (flattened)
        ]
        if not equal_in_out:
            specs.append(const_spec((cin_p, cout_p)))  # 1x1 shortcut weight
        return specs

    flops = 2 * N * num_t * (n1 * K * cin_p * cout_p + tl * K * cout_p * cout_p)
    if not equal_in_out:
        flops += 2 * N * num_t * tl * cin_p * cout_p
    bytes_accessed = (
        N * num_t * nx * cin_p * 4 + N * l_pad * cout_p * 4
        + K * cin_p * cout_p * 2 + K * cout_p * cout_p * 2
        + (0 if equal_in_out else cin_p * cout_p * 2)
        + 2 * (cin_p + cout_p) * 4)
    cost = pl.CostEstimate(flops=int(flops), transcendentals=0,
                           bytes_accessed=int(bytes_accessed))

    kernel = _make_block_kernel(equal_in_out, L=L, tl=tl,
                                cin_p=cin_p, cout_p=cout_p)

    def _call(single_buffer):
        return pl.pallas_call(
            kernel,
            out_shape=jax.ShapeDtypeStruct((N, l_pad, cout_p), out_dtype),
            grid_spec=pltpu.PrefetchScalarGridSpec(
                num_scalar_prefetch=0,
                grid=(N, num_t),
                in_specs=_build_in_specs(single_buffer),
                out_specs=pl.BlockSpec((1, tl, cout_p), lambda b, t: (b, t, 0)),
                scratch_shapes=[
                    pltpu.VMEM((n1, K * cin_p), jnp.bfloat16),   # conv1 im2col
                    pltpu.VMEM((tl, K * cout_p), jnp.bfloat16),  # conv2 im2col
                ],
            ),
            compiler_params=pltpu.CompilerParams(
                dimension_semantics=("parallel", "parallel"),
                vmem_limit_bytes=VMEM_LIMIT_BYTES),
            cost_estimate=cost,
        )(*operands)

    try:
        out_nlc = _call(True)
    except Exception:
        # Fallback for JAX versions that reject single-buffered pipeline_mode.
        out_nlc = _call(False)

    # Drop lane / L padding, back to PyTorch NCL layout.
    return jnp.transpose(out_nlc[:, :L, :Cout], (0, 2, 1))


# ---------------- pure-JAX reference (independent of the kernel) ------------
def ref_forward(x_ncl, params, *, stride=1):
    Cin = x_ncl.shape[1]
    Cout = params["w1"].shape[0]
    equal_in_out = (Cin == Cout)

    def bn(x, g, b, m, v):
        s = g / jnp.sqrt(v + EPS)
        return (x - m[None, :, None]) * s[None, :, None] + b[None, :, None]

    dn = ("NCH", "OIH", "NCH")
    h = jax.nn.relu(bn(x_ncl, *params["bn1"]))
    out = lax.conv_general_dilated(h, params["w1"], (stride,), [(PAD, PAD)],
                                   dimension_numbers=dn)
    out = jax.nn.relu(bn(out, *params["bn2"]))
    out = lax.conv_general_dilated(out, params["w2"], (1,), [(PAD, PAD)],
                                   dimension_numbers=dn)
    if equal_in_out:
        sc = x_ncl
    else:
        sc = lax.conv_general_dilated(h, params["ws"], (stride,), [(0, 0)],
                                      dimension_numbers=dn)
    return sc + out


def _make_params(key, Cin, Cout):
    keys = jax.random.split(key, 8)

    def kaiming(k, shape, fan_in):
        return jax.random.normal(k, shape, jnp.float32) * jnp.sqrt(2.0 / fan_in)

    params = {
        # BatchNorm1d params: (gamma, beta, running_mean, running_var)
        "bn1": (jnp.full((Cin,), 1.1, jnp.float32),
                jnp.full((Cin,), 0.05, jnp.float32),
                jax.random.normal(keys[0], (Cin,), jnp.float32) * 0.1,
                jnp.abs(jax.random.normal(keys[1], (Cin,), jnp.float32)) * 0.2 + 0.8),
        "w1": kaiming(keys[2], (Cout, Cin, K), Cin * K),          # Conv1d (OIK)
        "bn2": (jnp.full((Cout,), 0.9, jnp.float32),
                jnp.full((Cout,), -0.02, jnp.float32),
                jax.random.normal(keys[3], (Cout,), jnp.float32) * 0.1,
                jnp.abs(jax.random.normal(keys[4], (Cout,), jnp.float32)) * 0.2 + 0.8),
        "w2": kaiming(keys[5], (Cout, Cout, K), Cout * K),
    }
    if Cin != Cout:
        params["ws"] = kaiming(keys[6], (Cout, Cin, 1), Cin)      # 1x1 shortcut
    return params, keys[7]


if __name__ == "__main__":
    key = jax.random.PRNGKey(0)
    N, L = 2, 16
    key_a, key_b, key_c = jax.random.split(key, 3)

    # Case 1: in_planes != out_planes -> 1x1-conv shortcut path.
    params_a, kx_a = _make_params(key_a, 4, 8)
    x_a = jax.random.normal(kx_a, (N, 4, L), jnp.float32)         # PyTorch NCL
    y_a = jax.block_until_ready(basic_block_forward(x_a, params_a, stride=1))
    ref_a = ref_forward(x_a, params_a, stride=1)
    assert y_a.shape == ref_a.shape == (N, 8, L)
    err_a = float(jnp.max(jnp.abs(y_a - ref_a)))
    assert jnp.allclose(y_a, ref_a, atol=5e-2, rtol=5e-2), f"max abs err {err_a}"

    # Case 2: in_planes == out_planes -> identity shortcut (no ws operand).
    params_b, kx_b = _make_params(key_b, 8, 8)
    x_b = jax.random.normal(kx_b, (N, 8, L), jnp.float32)
    y_b = jax.block_until_ready(basic_block_forward(x_b, params_b, stride=1))
    ref_b = ref_forward(x_b, params_b, stride=1)
    assert y_b.shape == ref_b.shape == (N, 8, L)
    err_b = float(jnp.max(jnp.abs(y_b - ref_b)))
    assert jnp.allclose(y_b, ref_b, atol=5e-2, rtol=5e-2), f"max abs err {err_b}"

    # Case 3: multiple L tiles with a partial last tile (forced tile_l=16).
    params_c, kx_c = _make_params(key_c, 8, 16)
    x_c = jax.random.normal(kx_c, (N, 8, 40), jnp.float32)
    y_c = jax.block_until_ready(basic_block_forward(x_c, params_c, stride=1,
                                                    tile_l=16))
    ref_c = ref_forward(x_c, params_c, stride=1)
    assert y_c.shape == ref_c.shape == (N, 16, 40)
    err_c = float(jnp.max(jnp.abs(y_c - ref_c)))
    assert jnp.allclose(y_c, ref_c, atol=5e-2, rtol=5e-2), f"max abs err {err_c}"

    print("KERNEL_OK")
</pallas_src>

<mosaic_0001>
module attributes {stable_mosaic.version = 11 : i64} {
  func.func @kernel(%arg0: i32, %arg1: i32, %arg2: memref<1x1x32x128xf32, #tpu.memory_space<vmem>>, %arg3: memref<1x128xf32, #tpu.memory_space<vmem>>, %arg4: memref<1x128xf32, #tpu.memory_space<vmem>>, %arg5: memref<1152x128xbf16, #tpu.memory_space<vmem>>, %arg6: memref<1x128xf32, #tpu.memory_space<vmem>>, %arg7: memref<1x128xf32, #tpu.memory_space<vmem>>, %arg8: memref<1152x128xbf16, #tpu.memory_space<vmem>>, %arg9: memref<128x128xbf16, #tpu.memory_space<vmem>>, %arg10: memref<1x16x128xf32, #tpu.memory_space<vmem>>, %arg11: memref<24x1152xbf16, #tpu.memory_space<vmem>>, %arg12: memref<16x1152xbf16, #tpu.memory_space<vmem>>) attributes {dimension_semantics = [#tpu.dimension_semantics<parallel>, #tpu.dimension_semantics<parallel>], iteration_bounds = array<i64: 2, 1>, scalar_prefetch = 0 : i64, scratch_operands = 2 : i64, tpu.core_type = #tpu.core_type<tc>, window_params = [{transform_indices = @transform_0, window_bounds = array<i64: 1, 1, 32, 128>}, {pipeline_mode = #tpu.pipeline_mode<synchronous>, transform_indices = @transform_1, window_bounds = array<i64: 1, 128>}, {pipeline_mode = #tpu.pipeline_mode<synchronous>, transform_indices = @transform_2, window_bounds = array<i64: 1, 128>}, {pipeline_mode = #tpu.pipeline_mode<synchronous>, transform_indices = @transform_3, window_bounds = array<i64: 1152, 128>}, {pipeline_mode = #tpu.pipeline_mode<synchronous>, transform_indices = @transform_4, window_bounds = array<i64: 1, 128>}, {pipeline_mode = #tpu.pipeline_mode<synchronous>, transform_indices = @transform_5, window_bounds = array<i64: 1, 128>}, {pipeline_mode = #tpu.pipeline_mode<synchronous>, transform_indices = @transform_6, window_bounds = array<i64: 1152, 128>}, {pipeline_mode = #tpu.pipeline_mode<synchronous>, transform_indices = @transform_7, window_bounds = array<i64: 128, 128>}, {transform_indices = @transform_8, window_bounds = array<i64: 1, 16, 128>}]} {
    %c16_i32 = arith.constant 16 : i32
    %0 = arith.muli %arg1, %c16_i32 : i32
    %c8_i32 = arith.constant 8 : i32
    %1 = arith.subi %0, %c8_i32 : i32
    %c0 = arith.constant 0 : index
    %c0_0 = arith.constant 0 : index
    %c0_1 = arith.constant 0 : index
    %c0_2 = arith.constant 0 : index
    %2 = vector.load %arg2[%c0, %c0_0, %c0_1, %c0_2] : memref<1x1x32x128xf32, #tpu.memory_space<vmem>>, vector<1x1x32x128xf32>
    %3 = vector.shape_cast %2 : vector<1x1x32x128xf32> to vector<32x128xf32>
    %4 = tpu.iota {dimensions = array<i32: 0>} : vector<32x1xi32>
    %5 = vector.broadcast %1 : i32 to vector<32x1xi32>
    %6 = arith.addi %5, %4 : vector<32x1xi32>
    %c0_i32 = arith.constant 0 : i32
    %7 = vector.broadcast %c0_i32 : i32 to vector<32x1xi32>
    %8 = arith.cmpi sge, %6, %7 : vector<32x1xi32>
    %c16_i32_3 = arith.constant 16 : i32
    %9 = vector.broadcast %c16_i32_3 : i32 to vector<32x1xi32>
    %10 = arith.cmpi slt, %6, %9 : vector<32x1xi32>
    %11 = arith.andi %8, %10 : vector<32x1xi1>
    %c0_4 = arith.constant 0 : index
    %c0_5 = arith.constant 0 : index
    %12 = vector.load %arg3[%c0_4, %c0_5] : memref<1x128xf32, #tpu.memory_space<vmem>>, vector<1x128xf32>
    %13 = vector.broadcast %12 : vector<1x128xf32> to vector<32x128xf32>
    %14 = arith.mulf %3, %13 : vector<32x128xf32>
    %c0_6 = arith.constant 0 : index
    %c0_7 = arith.constant 0 : index
    %15 = vector.load %arg4[%c0_6, %c0_7] : memref<1x128xf32, #tpu.memory_space<vmem>>, vector<1x128xf32>
    %16 = vector.broadcast %15 : vector<1x128xf32> to vector<32x128xf32>
    %17 = arith.addf %14, %16 : vector<32x128xf32>
    %cst = arith.constant 0.000000e+00 : f32
    %18 = vector.broadcast %cst : f32 to vector<32x128xf32>
    %19 = arith.maximumf %17, %18 : vector<32x128xf32>
    %cst_8 = arith.constant 0.000000e+00 : f32
    %20 = vector.shape_cast %11 : vector<32x1xi1> to vector<32x1xi1>
    %21 = vector.broadcast %20 : vector<32x1xi1> to vector<32x128xi1>
    %22 = vector.broadcast %cst_8 : f32 to vector<32x128xf32>
    %23 = arith.select %21, %19, %22 : vector<32x128xi1>, vector<32x128xf32>
    %24 = arith.truncf %23 : vector<32x128xf32> to vector<32x128xbf16>
    %25 = vector.extract_strided_slice %24 {offsets = [0, 0], sizes = [24, 128], strides = [1, 1]} : vector<32x128xbf16> to vector<24x128xbf16>
    %c0_9 = arith.constant 0 : index
    %c0_10 = arith.constant 0 : index
    %26 = vector.load %arg11[%c0_9, %c0_10] : memref<24x1152xbf16, #tpu.memory_space<vmem>>, vector<24x128xbf16>
    tpu.vector_store %arg11[%c0_9, %c0_10], %25 {strides = array<i32>} : memref<24x1152xbf16, #tpu.memory_space<vmem>>, vector<24x128xbf16>,
    %27 = vector.extract_strided_slice %24 {offsets = [1, 0], sizes = [24, 128], strides = [1, 1]} : vector<32x128xbf16> to vector<24x128xbf16>
    %c0_11 = arith.constant 0 : index
    %c128 = arith.constant 128 : index
    %28 = vector.load %arg11[%c0_11, %c128] : memref<24x1152xbf16, #tpu.memory_space<vmem>>, vector<24x128xbf16>
    tpu.vector_store %arg11[%c0_11, %c128], %27 {strides = array<i32>} : memref<24x1152xbf16, #tpu.memory_space<vmem>>, vector<24x128xbf16>,
    %29 = vector.extract_strided_slice %24 {offsets = [2, 0], sizes = [24, 128], strides = [1, 1]} : vector<32x128xbf16> to vector<24x128xbf16>
    %c0_12 = arith.constant 0 : index
    %c256 = arith.constant 256 : index
    %30 = vector.load %arg11[%c0_12, %c256] : memref<24x1152xbf16, #tpu.memory_space<vmem>>, vector<24x128xbf16>
    tpu.vector_store %arg11[%c0_12, %c256], %29 {strides = array<i32>} : memref<24x1152xbf16, #tpu.memory_space<vmem>>, vector<24x128xbf16>,
    %31 = vector.extract_strided_slice %24 {offsets = [3, 0], sizes = [24, 128], strides = [1, 1]} : vector<32x128xbf16> to vector<24x128xbf16>
    %c0_13 = arith.constant 0 : index
    %c384 = arith.constant 384 : index
    %32 = vector.load %arg11[%c0_13, %c384] : memref<24x1152xbf16, #tpu.memory_space<vmem>>, vector<24x128xbf16>
    tpu.vector_store %arg11[%c0_13, %c384], %31 {strides = array<i32>} : memref<24x1152xbf16, #tpu.memory_space<vmem>>, vector<24x128xbf16>,
    %33 = vector.extract_strided_slice %24 {offsets = [4, 0], sizes = [24, 128], strides = [1, 1]} : vector<32x128xbf16> to vector<24x128xbf16>
    %c0_14 = arith.constant 0 : index
    %c512 = arith.constant 512 : index
    %34 = vector.load %arg11[%c0_14, %c512] : memref<24x1152xbf16, #tpu.memory_space<vmem>>, vector<24x128xbf16>
    tpu.vector_store %arg11[%c0_14, %c512], %33 {strides = array<i32>} : memref<24x1152xbf16, #tpu.memory_space<vmem>>, vector<24x128xbf16>,
    %35 = vector.extract_strided_slice %24 {offsets = [5, 0], sizes = [24, 128], strides = [1, 1]} : vector<32x128xbf16> to vector<24x128xbf16>
    %c0_15 = arith.constant 0 : index
    %c640 = arith.constant 640 : index
    %36 = vector.load %arg11[%c0_15, %c640] : memref<24x1152xbf16, #tpu.memory_space<vmem>>, vector<24x128xbf16>
    tpu.vector_store %arg11[%c0_15, %c640], %35 {strides = array<i32>} : memref<24x1152xbf16, #tpu.memory_space<vmem>>, vector<24x128xbf16>,
    %37 = vector.extract_strided_slice %24 {offsets = [6, 0], sizes = [24, 128], strides = [1, 1]} : vector<32x128xbf16> to vector<24x128xbf16>
    %c0_16 = arith.constant 0 : index
    %c768 = arith.constant 768 : index
    %38 = vector.load %arg11[%c0_16, %c768] : memref<24x1152xbf16, #tpu.memory_space<vmem>>, vector<24x128xbf16>
    tpu.vector_store %arg11[%c0_16, %c768], %37 {strides = array<i32>} : memref<24x1152xbf16, #tpu.memory_space<vmem>>, vector<24x128xbf16>,
    %39 = vector.extract_strided_slice %24 {offsets = [7, 0], sizes = [24, 128], strides = [1, 1]} : vector<32x128xbf16> to vector<24x128xbf16>
    %c0_17 = arith.constant 0 : index
    %c896 = arith.constant 896 : index
    %40 = vector.load %arg11[%c0_17, %c896] : memref<24x1152xbf16, #tpu.memory_space<vmem>>, vector<24x128xbf16>
    tpu.vector_store %arg11[%c0_17, %c896], %39 {strides = array<i32>} : memref<24x1152xbf16, #tpu.memory_space<vmem>>, vector<24x128xbf16>,
    %41 = vector.extract_strided_slice %24 {offsets = [8, 0], sizes = [24, 128], strides = [1, 1]} : vector<32x128xbf16> to vector<24x128xbf16>
    %c0_18 = arith.constant 0 : index
    %c1024 = arith.constant 1024 : index
    %42 = vector.load %arg11[%c0_18, %c1024] : memref<24x1152xbf16, #tpu.memory_space<vmem>>, vector<24x128xbf16>
    tpu.vector_store %arg11[%c0_18, %c1024], %41 {strides = array<i32>} : memref<24x1152xbf16, #tpu.memory_space<vmem>>, vector<24x128xbf16>,
    %c0_19 = arith.constant 0 : index
    %c0_20 = arith.constant 0 : index
    %43 = vector.load %arg11[%c0_19, %c0_20] : memref<24x1152xbf16, #tpu.memory_space<vmem>>, vector<24x1152xbf16>
    %c0_21 = arith.constant 0 : index
    %c0_22 = arith.constant 0 : index
    %44 = vector.load %arg5[%c0_21, %c0_22] : memref<1152x128xbf16, #tpu.memory_space<vmem>>, vector<1152x128xbf16>
    %cst_23 = arith.constant dense<0.000000e+00> : vector<24x128xf32>
    %45 = tpu.matmul %43, %44, %cst_23 {dimension_numbers = #tpu.dot_dimension_numbers<[1], [0], [0], [1], [0, 0, 1, 1], [], []>} : vector<24x1152xbf16>, vector<1152x128xbf16>, vector<24x128xf32> -> vector<24x128xf32>
    %c4_i32 = arith.constant 4 : i32
    %46 = arith.addi %1, %c4_i32 : i32
    %47 = tpu.iota {dimensions = array<i32: 0>} : vector<24x1xi32>
    %48 = vector.broadcast %46 : i32 to vector<24x1xi32>
    %49 = arith.addi %48, %47 : vector<24x1xi32>
    %c0_i32_24 = arith.constant 0 : i32
    %50 = vector.broadcast %c0_i32_24 : i32 to vector<24x1xi32>
    %51 = arith.cmpi sge, %49, %50 : vector<24x1xi32>
    %c16_i32_25 = arith.constant 16 : i32
    %52 = vector.broadcast %c16_i32_25 : i32 to vector<24x1xi32>
    %53 = arith.cmpi slt, %49, %52 : vector<24x1xi32>
    %54 = arith.andi %51, %53 : vector<24x1xi1>
    %c0_26 = arith.constant 0 : index
    %c0_27 = arith.constant 0 : index
    %55 = vector.load %arg6[%c0_26, %c0_27] : memref<1x128xf32, #tpu.memory_space<vmem>>, vector<1x128xf32>
    %56 = vector.broadcast %55 : vector<1x128xf32> to vector<24x128xf32>
    %57 = arith.mulf %45, %56 : vector<24x128xf32>
    %c0_28 = arith.constant 0 : index
    %c0_29 = arith.constant 0 : index
    %58 = vector.load %arg7[%c0_28, %c0_29] : memref<1x128xf32, #tpu.memory_space<vmem>>, vector<1x128xf32>
    %59 = vector.broadcast %58 : vector<1x128xf32> to vector<24x128xf32>
    %60 = arith.addf %57, %59 : vector<24x128xf32>
    %cst_30 = arith.constant 0.000000e+00 : f32
    %61 = vector.broadcast %cst_30 : f32 to vector<24x128xf32>
    %62 = arith.maximumf %60, %61 : vector<24x128xf32>
    %cst_31 = arith.constant 0.000000e+00 : f32
    %63 = vector.shape_cast %54 : vector<24x1xi1> to vector<24x1xi1>
    %64 = vector.broadcast %63 : vector<24x1xi1> to vector<24x128xi1>
    %65 = vector.broadcast %cst_31 : f32 to vector<24x128xf32>
    %66 = arith.select %64, %62, %65 : vector<24x128xi1>, vector<24x128xf32>
    %67 = arith.truncf %66 : vector<24x128xf32> to vector<24x128xbf16>
    %68 = vector.extract_strided_slice %67 {offsets = [0, 0], sizes = [16, 128], strides = [1, 1]} : vector<24x128xbf16> to vector<16x128xbf16>
    %c0_32 = arith.constant 0 : index
    %c0_33 = arith.constant 0 : index
    %69 = vector.load %arg12[%c0_32, %c0_33] : memref<16x1152xbf16, #tpu.memory_space<vmem>>, vector<16x128xbf16>
    tpu.vector_store %arg12[%c0_32, %c0_33], %68 {strides = array<i32>} : memref<16x1152xbf16, #tpu.memory_space<vmem>>, vector<16x128xbf16>,
    %70 = vector.extract_strided_slice %67 {offsets = [1, 0], sizes = [16, 128], strides = [1, 1]} : vector<24x128xbf16> to vector<16x128xbf16>
    %c0_34 = arith.constant 0 : index
    %c128_35 = arith.constant 128 : index
    %71 = vector.load %arg12[%c0_34, %c128_35] : memref<16x1152xbf16, #tpu.memory_space<vmem>>, vector<16x128xbf16>
    tpu.vector_store %arg12[%c0_34, %c128_35], %70 {strides = array<i32>} : memref<16x1152xbf16, #tpu.memory_space<vmem>>, vector<16x128xbf16>,
    %72 = vector.extract_strided_slice %67 {offsets = [2, 0], sizes = [16, 128], strides = [1, 1]} : vector<24x128xbf16> to vector<16x128xbf16>
    %c0_36 = arith.constant 0 : index
    %c256_37 = arith.constant 256 : index
    %73 = vector.load %arg12[%c0_36, %c256_37] : memref<16x1152xbf16, #tpu.memory_space<vmem>>, vector<16x128xbf16>
    tpu.vector_store %arg12[%c0_36, %c256_37], %72 {strides = array<i32>} : memref<16x1152xbf16, #tpu.memory_space<vmem>>, vector<16x128xbf16>,
    %74 = vector.extract_strided_slice %67 {offsets = [3, 0], sizes = [16, 128], strides = [1, 1]} : vector<24x128xbf16> to vector<16x128xbf16>
    %c0_38 = arith.constant 0 : index
    %c384_39 = arith.constant 384 : index
    %75 = vector.load %arg12[%c0_38, %c384_39] : memref<16x1152xbf16, #tpu.memory_space<vmem>>, vector<16x128xbf16>
    tpu.vector_store %arg12[%c0_38, %c384_39], %74 {strides = array<i32>} : memref<16x1152xbf16, #tpu.memory_space<vmem>>, vector<16x128xbf16>,
    %76 = vector.extract_strided_slice %67 {offsets = [4, 0], sizes = [16, 128], strides = [1, 1]} : vector<24x128xbf16> to vector<16x128xbf16>
    %c0_40 = arith.constant 0 : index
    %c512_41 = arith.constant 512 : index
    %77 = vector.load %arg12[%c0_40, %c512_41] : memref<16x1152xbf16, #tpu.memory_space<vmem>>, vector<16x128xbf16>
    tpu.vector_store %arg12[%c0_40, %c512_41], %76 {strides = array<i32>} : memref<16x1152xbf16, #tpu.memory_space<vmem>>, vector<16x128xbf16>,
    %78 = vector.extract_strided_slice %67 {offsets = [5, 0], sizes = [16, 128], strides = [1, 1]} : vector<24x128xbf16> to vector<16x128xbf16>
    %c0_42 = arith.constant 0 : index
    %c640_43 = arith.constant 640 : index
    %79 = vector.load %arg12[%c0_42, %c640_43] : memref<16x1152xbf16, #tpu.memory_space<vmem>>, vector<16x128xbf16>
    tpu.vector_store %arg12[%c0_42, %c640_43], %78 {strides = array<i32>} : memref<16x1152xbf16, #tpu.memory_space<vmem>>, vector<16x128xbf16>,
    %80 = vector.extract_strided_slice %67 {offsets = [6, 0], sizes = [16, 128], strides = [1, 1]} : vector<24x128xbf16> to vector<16x128xbf16>
    %c0_44 = arith.constant 0 : index
    %c768_45 = arith.constant 768 : index
    %81 = vector.load %arg12[%c0_44, %c768_45] : memref<16x1152xbf16, #tpu.memory_space<vmem>>, vector<16x128xbf16>
    tpu.vector_store %arg12[%c0_44, %c768_45], %80 {strides = array<i32>} : memref<16x1152xbf16, #tpu.memory_space<vmem>>, vector<16x128xbf16>,
    %82 = vector.extract_strided_slice %67 {offsets = [7, 0], sizes = [16, 128], strides = [1, 1]} : vector<24x128xbf16> to vector<16x128xbf16>
    %c0_46 = arith.constant 0 : index
    %c896_47 = arith.constant 896 : index
    %83 = vector.load %arg12[%c0_46, %c896_47] : memref<16x1152xbf16, #tpu.memory_space<vmem>>, vector<16x128xbf16>
    tpu.vector_store %arg12[%c0_46, %c896_47], %82 {strides = array<i32>} : memref<16x1152xbf16, #tpu.memory_space<vmem>>, vector<16x128xbf16>,
    %84 = vector.extract_strided_slice %67 {offsets = [8, 0], sizes = [16, 128], strides = [1, 1]} : vector<24x128xbf16> to vector<16x128xbf16>
    %c0_48 = arith.constant 0 : index
    %c1024_49 = arith.constant 1024 : index
    %85 = vector.load %arg12[%c0_48, %c1024_49] : memref<16x1152xbf16, #tpu.memory_space<vmem>>, vector<16x128xbf16>
    tpu.vector_store %arg12[%c0_48, %c1024_49], %84 {strides = array<i32>} : memref<16x1152xbf16, #tpu.memory_space<vmem>>, vector<16x128xbf16>,
    %c0_50 = arith.constant 0 : index
    %c0_51 = arith.constant 0 : index
    %86 = vector.load %arg12[%c0_50, %c0_51] : memref<16x1152xbf16, #tpu.memory_space<vmem>>, vector<16x1152xbf16>
    %c0_52 = arith.constant 0 : index
    %c0_53 = arith.constant 0 : index
    %87 = vector.load %arg8[%c0_52, %c0_53] : memref<1152x128xbf16, #tpu.memory_space<vmem>>, vector<1152x128xbf16>
    %cst_54 = arith.constant dense<0.000000e+00> : vector<16x128xf32>
    %88 = tpu.matmul %86, %87, %cst_54 {dimension_numbers = #tpu.dot_dimension_numbers<[1], [0], [0], [1], [0, 0, 1, 1], [], []>} : vector<16x1152xbf16>, vector<1152x128xbf16>, vector<16x128xf32> -> vector<16x128xf32>
    %89 = vector.extract_strided_slice %24 {offsets = [8, 0], sizes = [16, 128], strides = [1, 1]} : vector<32x128xbf16> to vector<16x128xbf16>
    %c0_55 = arith.constant 0 : index
    %c0_56 = arith.constant 0 : index
    %90 = vector.load %arg9[%c0_55, %c0_56] : memref<128x128xbf16, #tpu.memory_space<vmem>>, vector<128x128xbf16>
    %cst_57 = arith.constant dense<0.000000e+00> : vector<16x128xf32>
    %91 = tpu.matmul %89, %90, %cst_57 {dimension_numbers = #tpu.dot_dimension_numbers<[1], [0], [0], [1], [0, 0, 1, 1], [], []>} : vector<16x128xbf16>, vector<128x128xbf16>, vector<16x128xf32> -> vector<16x128xf32>
    %92 = arith.addf %91, %88 : vector<16x128xf32>
    %c0_58 = arith.constant 0 : index
    %c0_59 = arith.constant 0 : index
    %c0_60 = arith.constant 0 : index
    %93 = vector.load %arg10[%c0_58, %c0_59, %c0_60] : memref<1x16x128xf32, #tpu.memory_space<vmem>>, vector<1x16x128xf32>
    %94 = vector.shape_cast %93 : vector<1x16x128xf32> to vector<16x128xf32>
    %95 = vector.shape_cast %92 : vector<16x128xf32> to vector<1x16x128xf32>
    tpu.vector_store %arg10[%c0_58, %c0_59, %c0_60], %95 {strides = array<i32>} : memref<1x16x128xf32, #tpu.memory_space<vmem>>, vector<1x16x128xf32>,
    return
  }
  func.func @transform_0(%arg0: i32, %arg1: i32) -> (i32, i32, i32, i32) {
    %c0_i32 = arith.constant 0 : i32
    %c0_i32_0 = arith.constant 0 : i32
    %c0_i32_1 = arith.constant 0 : i32
    return %arg0, %arg1, %c0_i32, %c0_i32_0 : i32, i32, i32, i32
  }
  func.func @transform_1(%arg0: i32, %arg1: i32) -> (i32, i32) {
    %c0_i32 = arith.constant 0 : i32
    %c0_i32_0 = arith.constant 0 : i32
    %c0_i32_1 = arith.constant 0 : i32
    return %c0_i32, %c0_i32_0 : i32, i32
  }
  func.func @transform_2(%arg0: i32, %arg1: i32) -> (i32, i32) {
    %c0_i32 = arith.constant 0 : i32
    %c0_i32_0 = arith.constant 0 : i32
    %c0_i32_1 = arith.constant 0 : i32
    return %c0_i32, %c0_i32_0 : i32, i32
  }
  func.func @transform_3(%arg0: i32, %arg1: i32) -> (i32, i32) {
    %c0_i32 = arith.constant 0 : i32
    %c0_i32_0 = arith.constant 0 : i32
    %c0_i32_1 = arith.constant 0 : i32
    return %c0_i32, %c0_i32_0 : i32, i32
  }
  func.func @transform_4(%arg0: i32, %arg1: i32) -> (i32, i32) {
    %c0_i32 = arith.constant 0 : i32
    %c0_i32_0 = arith.constant 0 : i32
    %c0_i32_1 = arith.constant 0 : i32
    return %c0_i32, %c0_i32_0 : i32, i32
  }
  func.func @transform_5(%arg0: i32, %arg1: i32) -> (i32, i32) {
    %c0_i32 = arith.constant 0 : i32
    %c0_i32_0 = arith.constant 0 : i32
    %c0_i32_1 = arith.constant 0 : i32
    return %c0_i32, %c0_i32_0 : i32, i32
  }
  func.func @transform_6(%arg0: i32, %arg1: i32) -> (i32, i32) {
    %c0_i32 = arith.constant 0 : i32
    %c0_i32_0 = arith.constant 0 : i32
    %c0_i32_1 = arith.constant 0 : i32
    return %c0_i32, %c0_i32_0 : i32, i32
  }
  func.func @transform_7(%arg0: i32, %arg1: i32) -> (i32, i32) {
    %c0_i32 = arith.constant 0 : i32
    %c0_i32_0 = arith.constant 0 : i32
    %c0_i32_1 = arith.constant 0 : i32
    return %c0_i32, %c0_i32_0 : i32, i32
  }
  func.func @transform_8(%arg0: i32, %arg1: i32) -> (i32, i32, i32) {
    %c0_i32 = arith.constant 0 : i32
    %c0_i32_0 = arith.constant 0 : i32
    return %arg0, %arg1, %c0_i32 : i32, i32, i32
  }
}

module attributes {stable_mosaic.version = 11 : i64} {
  func.func @kernel(%arg0: i32, %arg1: i32, %arg2: memref<1x1x32x128xf32, #tpu.memory_space<vmem>>, %arg3: memref<1x128xf32, #tpu.memory_space<vmem>>, %arg4: memref<1x128xf32, #tpu.memory_space<vmem>>, %arg5: memref<1152x128xbf16, #tpu.memory_space<vmem>>, %arg6: memref<1x128xf32, #tpu.memory_space<vmem>>, %arg7: memref<1x128xf32, #tpu.memory_space<vmem>>, %arg8: memref<1152x128xbf16, #tpu.memory_space<vmem>>, %arg9: memref<128x128xbf16, #tpu.memory_space<vmem>>, %arg10: memref<1x16x128xf32, #tpu.memory_space<vmem>>, %arg11: memref<24x1152xbf16, #tpu.memory_space<vmem>>, %arg12: memref<16x1152xbf16, #tpu.memory_space<vmem>>) attributes {dimension_semantics = [#tpu.dimension_semantics<parallel>, #tpu.dimension_semantics<parallel>], iteration_bounds = array<i64: 2, 1>, scalar_prefetch = 0 : i64, scratch_operands = 2 : i64, tpu.core_type = #tpu.core_type<tc>, window_params = [{transform_indices = @transform_0, window_bounds = array<i64: 1, 1, 32, 128>}, {pipeline_mode = #tpu.pipeline_mode<synchronous>, transform_indices = @transform_1, window_bounds = array<i64: 1, 128>}, {pipeline_mode = #tpu.pipeline_mode<synchronous>, transform_indices = @transform_2, window_bounds = array<i64: 1, 128>}, {pipeline_mode = #tpu.pipeline_mode<synchronous>, transform_indices = @transform_3, window_bounds = array<i64: 1152, 128>}, {pipeline_mode = #tpu.pipeline_mode<synchronous>, transform_indices = @transform_4, window_bounds = array<i64: 1, 128>}, {pipeline_mode = #tpu.pipeline_mode<synchronous>, transform_indices = @transform_5, window_bounds = array<i64: 1, 128>}, {pipeline_mode = #tpu.pipeline_mode<synchronous>, transform_indices = @transform_6, window_bounds = array<i64: 1152, 128>}, {pipeline_mode = #tpu.pipeline_mode<synchronous>, transform_indices = @transform_7, window_bounds = array<i64: 128, 128>}, {transform_indices = @transform_8, window_bounds = array<i64: 1, 16, 128>}]} {
    %c16_i32 = arith.constant 16 : i32
    %0 = arith.muli %arg1, %c16_i32 : i32
    %c8_i32 = arith.constant 8 : i32
    %1 = arith.subi %0, %c8_i32 : i32
    %c0 = arith.constant 0 : index
    %c0_0 = arith.constant 0 : index
    %c0_1 = arith.constant 0 : index
    %c0_2 = arith.constant 0 : index
    %2 = vector.load %arg2[%c0, %c0_0, %c0_1, %c0_2] : memref<1x1x32x128xf32, #tpu.memory_space<vmem>>, vector<1x1x32x128xf32>
    %3 = vector.shape_cast %2 : vector<1x1x32x128xf32> to vector<32x128xf32>
    %4 = tpu.iota {dimensions = array<i32: 0>} : vector<32x1xi32>
    %5 = vector.broadcast %1 : i32 to vector<32x1xi32>
    %6 = arith.addi %5, %4 : vector<32x1xi32>
    %c0_i32 = arith.constant 0 : i32
    %7 = vector.broadcast %c0_i32 : i32 to vector<32x1xi32>
    %8 = arith.cmpi sge, %6, %7 : vector<32x1xi32>
    %c16_i32_3 = arith.constant 16 : i32
    %9 = vector.broadcast %c16_i32_3 : i32 to vector<32x1xi32>
    %10 = arith.cmpi slt, %6, %9 : vector<32x1xi32>
    %11 = arith.andi %8, %10 : vector<32x1xi1>
    %c0_4 = arith.constant 0 : index
    %c0_5 = arith.constant 0 : index
    %12 = vector.load %arg3[%c0_4, %c0_5] : memref<1x128xf32, #tpu.memory_space<vmem>>, vector<1x128xf32>
    %13 = vector.broadcast %12 : vector<1x128xf32> to vector<32x128xf32>
    %14 = arith.mulf %3, %13 : vector<32x128xf32>
    %c0_6 = arith.constant 0 : index
    %c0_7 = arith.constant 0 : index
    %15 = vector.load %arg4[%c0_6, %c0_7] : memref<1x128xf32, #tpu.memory_space<vmem>>, vector<1x128xf32>
    %16 = vector.broadcast %15 : vector<1x128xf32> to vector<32x128xf32>
    %17 = arith.addf %14, %16 : vector<32x128xf32>
    %cst = arith.constant 0.000000e+00 : f32
    %18 = vector.broadcast %cst : f32 to vector<32x128xf32>
    %19 = arith.maximumf %17, %18 : vector<32x128xf32>
    %cst_8 = arith.constant 0.000000e+00 : f32
    %20 = vector.shape_cast %11 : vector<32x1xi1> to vector<32x1xi1>
    %21 = vector.broadcast %20 : vector<32x1xi1> to vector<32x128xi1>
    %22 = vector.broadcast %cst_8 : f32 to vector<32x128xf32>
    %23 = arith.select %21, %19, %22 : vector<32x128xi1>, vector<32x128xf32>
    %24 = arith.truncf %23 : vector<32x128xf32> to vector<32x128xbf16>
    %25 = vector.extract_strided_slice %24 {offsets = [0, 0], sizes = [24, 128], strides = [1, 1]} : vector<32x128xbf16> to vector<24x128xbf16>
    %c0_9 = arith.constant 0 : index
    %c0_10 = arith.constant 0 : index
    %26 = vector.load %arg11[%c0_9, %c0_10] : memref<24x1152xbf16, #tpu.memory_space<vmem>>, vector<24x128xbf16>
    tpu.vector_store %arg11[%c0_9, %c0_10], %25 {strides = array<i32>} : memref<24x1152xbf16, #tpu.memory_space<vmem>>, vector<24x128xbf16>,
    %27 = vector.extract_strided_slice %24 {offsets = [1, 0], sizes = [24, 128], strides = [1, 1]} : vector<32x128xbf16> to vector<24x128xbf16>
    %c0_11 = arith.constant 0 : index
    %c128 = arith.constant 128 : index
    %28 = vector.load %arg11[%c0_11, %c128] : memref<24x1152xbf16, #tpu.memory_space<vmem>>, vector<24x128xbf16>
    tpu.vector_store %arg11[%c0_11, %c128], %27 {strides = array<i32>} : memref<24x1152xbf16, #tpu.memory_space<vmem>>, vector<24x128xbf16>,
    %29 = vector.extract_strided_slice %24 {offsets = [2, 0], sizes = [24, 128], strides = [1, 1]} : vector<32x128xbf16> to vector<24x128xbf16>
    %c0_12 = arith.constant 0 : index
    %c256 = arith.constant 256 : index
    %30 = vector.load %arg11[%c0_12, %c256] : memref<24x1152xbf16, #tpu.memory_space<vmem>>, vector<24x128xbf16>
    tpu.vector_store %arg11[%c0_12, %c256], %29 {strides = array<i32>} : memref<24x1152xbf16, #tpu.memory_space<vmem>>, vector<24x128xbf16>,
    %31 = vector.extract_strided_slice %24 {offsets = [3, 0], sizes = [24, 128], strides = [1, 1]} : vector<32x128xbf16> to vector<24x128xbf16>
    %c0_13 = arith.constant 0 : index
    %c384 = arith.constant 384 : index
    %32 = vector.load %arg11[%c0_13, %c384] : memref<24x1152xbf16, #tpu.memory_space<vmem>>, vector<24x128xbf16>
    tpu.vector_store %arg11[%c0_13, %c384], %31 {strides = array<i32>} : memref<24x1152xbf16, #tpu.memory_space<vmem>>, vector<24x128xbf16>,
    %33 = vector.extract_strided_slice %24 {offsets = [4, 0], sizes = [24, 128], strides = [1, 1]} : vector<32x128xbf16> to vector<24x128xbf16>
    %c0_14 = arith.constant 0 : index
    %c512 = arith.constant 512 : index
    %34 = vector.load %arg11[%c0_14, %c512] : memref<24x1152xbf16, #tpu.memory_space<vmem>>, vector<24x128xbf16>
    tpu.vector_store %arg11[%c0_14, %c512], %33 {strides = array<i32>} : memref<24x1152xbf16, #tpu.memory_space<vmem>>, vector<24x128xbf16>,
    %35 = vector.extract_strided_slice %24 {offsets = [5, 0], sizes = [24, 128], strides = [1, 1]} : vector<32x128xbf16> to vector<24x128xbf16>
    %c0_15 = arith.constant 0 : index
    %c640 = arith.constant 640 : index
    %36 = vector.load %arg11[%c0_15, %c640] : memref<24x1152xbf16, #tpu.memory_space<vmem>>, vector<24x128xbf16>
    tpu.vector_store %arg11[%c0_15, %c640], %35 {strides = array<i32>} : memref<24x1152xbf16, #tpu.memory_space<vmem>>, vector<24x128xbf16>,
    %37 = vector.extract_strided_slice %24 {offsets = [6, 0], sizes = [24, 128], strides = [1, 1]} : vector<32x128xbf16> to vector<24x128xbf16>
    %c0_16 = arith.constant 0 : index
    %c768 = arith.constant 768 : index
    %38 = vector.load %arg11[%c0_16, %c768] : memref<24x1152xbf16, #tpu.memory_space<vmem>>, vector<24x128xbf16>
    tpu.vector_store %arg11[%c0_16, %c768], %37 {strides = array<i32>} : memref<24x1152xbf16, #tpu.memory_space<vmem>>, vector<24x128xbf16>,
    %39 = vector.extract_strided_slice %24 {offsets = [7, 0], sizes = [24, 128], strides = [1, 1]} : vector<32x128xbf16> to vector<24x128xbf16>
    %c0_17 = arith.constant 0 : index
    %c896 = arith.constant 896 : index
    %40 = vector.load %arg11[%c0_17, %c896] : memref<24x1152xbf16, #tpu.memory_space<vmem>>, vector<24x128xbf16>
    tpu.vector_store %arg11[%c0_17, %c896], %39 {strides = array<i32>} : memref<24x1152xbf16, #tpu.memory_space<vmem>>, vector<24x128xbf16>,
    %41 = vector.extract_strided_slice %24 {offsets = [8, 0], sizes = [24, 128], strides = [1, 1]} : vector<32x128xbf16> to vector<24x128xbf16>
    %c0_18 = arith.constant 0 : index
    %c1024 = arith.constant 1024 : index
    %42 = vector.load %arg11[%c0_18, %c1024] : memref<24x1152xbf16, #tpu.memory_space<vmem>>, vector<24x128xbf16>
    tpu.vector_store %arg11[%c0_18, %c1024], %41 {strides = array<i32>} : memref<24x1152xbf16, #tpu.memory_space<vmem>>, vector<24x128xbf16>,
    %c0_19 = arith.constant 0 : index
    %c0_20 = arith.constant 0 : index
    %43 = vector.load %arg11[%c0_19, %c0_20] : memref<24x1152xbf16, #tpu.memory_space<vmem>>, vector<24x1152xbf16>
    %c0_21 = arith.constant 0 : index
    %c0_22 = arith.constant 0 : index
    %44 = vector.load %arg5[%c0_21, %c0_22] : memref<1152x128xbf16, #tpu.memory_space<vmem>>, vector<1152x128xbf16>
    %cst_23 = arith.constant dense<0.000000e+00> : vector<24x128xf32>
    %45 = tpu.matmul %43, %44, %cst_23 {dimension_numbers = #tpu.dot_dimension_numbers<[1], [0], [0], [1], [0, 0, 1, 1], [], []>} : vector<24x1152xbf16>, vector<1152x128xbf16>, vector<24x128xf32> -> vector<24x128xf32>
    %c4_i32 = arith.constant 4 : i32
    %46 = arith.addi %1, %c4_i32 : i32
    %47 = tpu.iota {dimensions = array<i32: 0>} : vector<24x1xi32>
    %48 = vector.broadcast %46 : i32 to vector<24x1xi32>
    %49 = arith.addi %48, %47 : vector<24x1xi32>
    %c0_i32_24 = arith.constant 0 : i32
    %50 = vector.broadcast %c0_i32_24 : i32 to vector<24x1xi32>
    %51 = arith.cmpi sge, %49, %50 : vector<24x1xi32>
    %c16_i32_25 = arith.constant 16 : i32
    %52 = vector.broadcast %c16_i32_25 : i32 to vector<24x1xi32>
    %53 = arith.cmpi slt, %49, %52 : vector<24x1xi32>
    %54 = arith.andi %51, %53 : vector<24x1xi1>
    %c0_26 = arith.constant 0 : index
    %c0_27 = arith.constant 0 : index
    %55 = vector.load %arg6[%c0_26, %c0_27] : memref<1x128xf32, #tpu.memory_space<vmem>>, vector<1x128xf32>
    %56 = vector.broadcast %55 : vector<1x128xf32> to vector<24x128xf32>
    %57 = arith.mulf %45, %56 : vector<24x128xf32>
    %c0_28 = arith.constant 0 : index
    %c0_29 = arith.constant 0 : index
    %58 = vector.load %arg7[%c0_28, %c0_29] : memref<1x128xf32, #tpu.memory_space<vmem>>, vector<1x128xf32>
    %59 = vector.broadcast %58 : vector<1x128xf32> to vector<24x128xf32>
    %60 = arith.addf %57, %59 : vector<24x128xf32>
    %cst_30 = arith.constant 0.000000e+00 : f32
    %61 = vector.broadcast %cst_30 : f32 to vector<24x128xf32>
    %62 = arith.maximumf %60, %61 : vector<24x128xf32>
    %cst_31 = arith.constant 0.000000e+00 : f32
    %63 = vector.shape_cast %54 : vector<24x1xi1> to vector<24x1xi1>
    %64 = vector.broadcast %63 : vector<24x1xi1> to vector<24x128xi1>
    %65 = vector.broadcast %cst_31 : f32 to vector<24x128xf32>
    %66 = arith.select %64, %62, %65 : vector<24x128xi1>, vector<24x128xf32>
    %67 = arith.truncf %66 : vector<24x128xf32> to vector<24x128xbf16>
    %68 = vector.extract_strided_slice %67 {offsets = [0, 0], sizes = [16, 128], strides = [1, 1]} : vector<24x128xbf16> to vector<16x128xbf16>
    %c0_32 = arith.constant 0 : index
    %c0_33 = arith.constant 0 : index
    %69 = vector.load %arg12[%c0_32, %c0_33] : memref<16x1152xbf16, #tpu.memory_space<vmem>>, vector<16x128xbf16>
    tpu.vector_store %arg12[%c0_32, %c0_33], %68 {strides = array<i32>} : memref<16x1152xbf16, #tpu.memory_space<vmem>>, vector<16x128xbf16>,
    %70 = vector.extract_strided_slice %67 {offsets = [1, 0], sizes = [16, 128], strides = [1, 1]} : vector<24x128xbf16> to vector<16x128xbf16>
    %c0_34 = arith.constant 0 : index
    %c128_35 = arith.constant 128 : index
    %71 = vector.load %arg12[%c0_34, %c128_35] : memref<16x1152xbf16, #tpu.memory_space<vmem>>, vector<16x128xbf16>
    tpu.vector_store %arg12[%c0_34, %c128_35], %70 {strides = array<i32>} : memref<16x1152xbf16, #tpu.memory_space<vmem>>, vector<16x128xbf16>,
    %72 = vector.extract_strided_slice %67 {offsets = [2, 0], sizes = [16, 128], strides = [1, 1]} : vector<24x128xbf16> to vector<16x128xbf16>
    %c0_36 = arith.constant 0 : index
    %c256_37 = arith.constant 256 : index
    %73 = vector.load %arg12[%c0_36, %c256_37] : memref<16x1152xbf16, #tpu.memory_space<vmem>>, vector<16x128xbf16>
    tpu.vector_store %arg12[%c0_36, %c256_37], %72 {strides = array<i32>} : memref<16x1152xbf16, #tpu.memory_space<vmem>>, vector<16x128xbf16>,
    %74 = vector.extract_strided_slice %67 {offsets = [3, 0], sizes = [16, 128], strides = [1, 1]} : vector<24x128xbf16> to vector<16x128xbf16>
    %c0_38 = arith.constant 0 : index
    %c384_39 = arith.constant 384 : index
    %75 = vector.load %arg12[%c0_38, %c384_39] : memref<16x1152xbf16, #tpu.memory_space<vmem>>, vector<16x128xbf16>
    tpu.vector_store %arg12[%c0_38, %c384_39], %74 {strides = array<i32>} : memref<16x1152xbf16, #tpu.memory_space<vmem>>, vector<16x128xbf16>,
    %76 = vector.extract_strided_slice %67 {offsets = [4, 0], sizes = [16, 128], strides = [1, 1]} : vector<24x128xbf16> to vector<16x128xbf16>
    %c0_40 = arith.constant 0 : index
    %c512_41 = arith.constant 512 : index
    %77 = vector.load %arg12[%c0_40, %c512_41] : memref<16x1152xbf16, #tpu.memory_space<vmem>>, vector<16x128xbf16>
    tpu.vector_store %arg12[%c0_40, %c512_41], %76 {strides = array<i32>} : memref<16x1152xbf16, #tpu.memory_space<vmem>>, vector<16x128xbf16>,
    %78 = vector.extract_strided_slice %67 {offsets = [5, 0], sizes = [16, 128], strides = [1, 1]} : vector<24x128xbf16> to vector<16x128xbf16>
    %c0_42 = arith.constant 0 : index
    %c640_43 = arith.constant 640 : index
    %79 = vector.load %arg12[%c0_42, %c640_43] : memref<16x1152xbf16, #tpu.memory_space<vmem>>, vector<16x128xbf16>
    tpu.vector_store %arg12[%c0_42, %c640_43], %78 {strides = array<i32>} : memref<16x1152xbf16, #tpu.memory_space<vmem>>, vector<16x128xbf16>,
    %80 = vector.extract_strided_slice %67 {offsets = [6, 0], sizes = [16, 128], strides = [1, 1]} : vector<24x128xbf16> to vector<16x128xbf16>
    %c0_44 = arith.constant 0 : index
    %c768_45 = arith.constant 768 : index
    %81 = vector.load %arg12[%c0_44, %c768_45] : memref<16x1152xbf16, #tpu.memory_space<vmem>>, vector<16x128xbf16>
    tpu.vector_store %arg12[%c0_44, %c768_45], %80 {strides = array<i32>} : memref<16x1152xbf16, #tpu.memory_space<vmem>>, vector<16x128xbf16>,
    %82 = vector.extract_strided_slice %67 {offsets = [7, 0], sizes = [16, 128], strides = [1, 1]} : vector<24x128xbf16> to vector<16x128xbf16>
    %c0_46 = arith.constant 0 : index
    %c896_47 = arith.constant 896 : index
    %83 = vector.load %arg12[%c0_46, %c896_47] : memref<16x1152xbf16, #tpu.memory_space<vmem>>, vector<16x128xbf16>
    tpu.vector_store %arg12[%c0_46, %c896_47], %82 {strides = array<i32>} : memref<16x1152xbf16, #tpu.memory_space<vmem>>, vector<16x128xbf16>,
    %84 = vector.extract_strided_slice %67 {offsets = [8, 0], sizes = [16, 128], strides = [1, 1]} : vector<24x128xbf16> to vector<16x128xbf16>
    %c0_48 = arith.constant 0 : index
    %c1024_49 = arith.constant 1024 : index
    %85 = vector.load %arg12[%c0_48, %c1024_49] : memref<16x1152xbf16, #tpu.memory_space<vmem>>, vector<16x128xbf16>
    tpu.vector_store %arg12[%c0_48, %c1024_49], %84 {strides = array<i32>} : memref<16x1152xbf16, #tpu.memory_space<vmem>>, vector<16x128xbf16>,
    %c0_50 = arith.constant 0 : index
    %c0_51 = arith.constant 0 : index
    %86 = vector.load %arg12[%c0_50, %c0_51] : memref<16x1152xbf16, #tpu.memory_space<vmem>>, vector<16x1152xbf16>
    %c0_52 = arith.constant 0 : index
    %c0_53 = arith.constant 0 : index
    %87 = vector.load %arg8[%c0_52, %c0_53] : memref<1152x128xbf16, #tpu.memory_space<vmem>>, vector<1152x128xbf16>
    %cst_54 = arith.constant dense<0.000000e+00> : vector<16x128xf32>
    %88 = tpu.matmul %86, %87, %cst_54 {dimension_numbers = #tpu.dot_dimension_numbers<[1], [0], [0], [1], [0, 0, 1, 1], [], []>} : vector<16x1152xbf16>, vector<1152x128xbf16>, vector<16x128xf32> -> vector<16x128xf32>
    %89 = vector.extract_strided_slice %24 {offsets = [8, 0], sizes = [16, 128], strides = [1, 1]} : vector<32x128xbf16> to vector<16x128xbf16>
    %c0_55 = arith.constant 0 : index
    %c0_56 = arith.constant 0 : index
    %90 = vector.load %arg9[%c0_55, %c0_56] : memref<128x128xbf16, #tpu.memory_space<vmem>>, vector<128x128xbf16>
    %cst_57 = arith.constant dense<0.000000e+00> : vector<16x128xf32>
    %91 = tpu.matmul %89, %90, %cst_57 {dimension_numbers = #tpu.dot_dimension_numbers<[1], [0], [0], [1], [0, 0, 1, 1], [], []>} : vector<16x128xbf16>, vector<128x128xbf16>, vector<16x128xf32> -> vector<16x128xf32>
    %92 = arith.addf %91, %88 : vector<16x128xf32>
    %c0_58 = arith.constant 0 : index
    %c0_59 = arith.constant 0 : index
    %c0_60 = arith.constant 0 : index
    %93 = vector.load %arg10[%c0_58, %c0_59, %c0_60] : memref<1x16x128xf32, #tpu.memory_space<vmem>>, vector<1x16x128xf32>
    %94 = vector.shape_cast %93 : vector<1x16x128xf32> to vector<16x128xf32>
    %95 = vector.shape_cast %92 : vector<16x128xf32> to vector<1x16x128xf32>
    tpu.vector_store %arg10[%c0_58, %c0_59, %c0_60], %95 {strides = array<i32>} : memref<1x16x128xf32, #tpu.memory_space<vmem>>, vector<1x16x128xf32>,
    return
  }
  func.func @transform_0(%arg0: i32, %arg1: i32) -> (i32, i32, i32, i32) {
    %c0_i32 = arith.constant 0 : i32
    %c0_i32_0 = arith.constant 0 : i32
    %c0_i32_1 = arith.constant 0 : i32
    return %arg0, %arg1, %c0_i32, %c0_i32_0 : i32, i32, i32, i32
  }
  func.func @transform_1(%arg0: i32, %arg1: i32) -> (i32, i32) {
    %c0_i32 = arith.constant 0 : i32
    %c0_i32_0 = arith.constant 0 : i32
    %c0_i32_1 = arith.constant 0 : i32
    return %c0_i32, %c0_i32_0 : i32, i32
  }
  func.func @transform_2(%arg0: i32, %arg1: i32) -> (i32, i32) {
    %c0_i32 = arith.constant 0 : i32
    %c0_i32_0 = arith.constant 0 : i32
    %c0_i32_1 = arith.constant 0 : i32
    return %c0_i32, %c0_i32_0 : i32, i32
  }
  func.func @transform_3(%arg0: i32, %arg1: i32) -> (i32, i32) {
    %c0_i32 = arith.constant 0 : i32
    %c0_i32_0 = arith.constant 0 : i32
    %c0_i32_1 = arith.constant 0 : i32
    return %c0_i32, %c0_i32_0 : i32, i32
  }
  func.func @transform_4(%arg0: i32, %arg1: i32) -> (i32, i32) {
    %c0_i32 = arith.constant 0 : i32
    %c0_i32_0 = arith.constant 0 : i32
    %c0_i32_1 = arith.constant 0 : i32
    return %c0_i32, %c0_i32_0 : i32, i32
  }
  func.func @transform_5(%arg0: i32, %arg1: i32) -> (i32, i32) {
    %c0_i32 = arith.constant 0 : i32
    %c0_i32_0 = arith.constant 0 : i32
    %c0_i32_1 = arith.constant 0 : i32
    return %c0_i32, %c0_i32_0 : i32, i32
  }
  func.func @transform_6(%arg0: i32, %arg1: i32) -> (i32, i32) {
    %c0_i32 = arith.constant 0 : i32
    %c0_i32_0 = arith.constant 0 : i32
    %c0_i32_1 = arith.constant 0 : i32
    return %c0_i32, %c0_i32_0 : i32, i32
  }
  func.func @transform_7(%arg0: i32, %arg1: i32) -> (i32, i32) {
    %c0_i32 = arith.constant 0 : i32
    %c0_i32_0 = arith.constant 0 : i32
    %c0_i32_1 = arith.constant 0 : i32
    return %c0_i32, %c0_i32_0 : i32, i32
  }
  func.func @transform_8(%arg0: i32, %arg1: i32) -> (i32, i32, i32) {
    %c0_i32 = arith.constant 0 : i32
    %c0_i32_0 = arith.constant 0 : i32
    return %arg0, %arg1, %c0_i32 : i32, i32, i32
  }
}

</mosaic_0001>

<llo_original>
// kernel: tpu_custom_call.1
$region0: #{tpu_custom_call.1}
  #allocation0 [shape = 'u32[]', space=smem, size = 0x4, offset = 0x4, fixed_abs, tag = 'smem constant byte address 0x4 - core index']
  #allocation1 [shape = 'u32[144,128]{1,0:T(1,128)}', space=vmem, size = 0x12000, scoped, tag = 'internal scratch']
  #allocation2 [shape = 'bf16[24,1152]{1,0:T(8,128)(2,1)}', space=vmem, size = 0xd800, scoped, tag = 'scratch operand']
  #allocation3 [shape = 'bf16[16,1152]{1,0:T(16,128)(2,1)}', space=vmem, size = 0x9000, scoped, tag = 'scratch operand']
  %s0 = inlined_call_operand.hbm [shape: f32[2,1,32,128], index: 0, kind: input, shape index: {}]
  %s1 = inlined_call_operand.vmem [shape: f32[1,128], index: 1, kind: input, shape index: {}]
  %s2 = inlined_call_operand.vmem [shape: f32[1,128], index: 2, kind: input, shape index: {}]
  %s3 = inlined_call_operand.hbm [shape: bf16[1152,128], index: 3, kind: input, shape index: {}]
  %s4 = inlined_call_operand.vmem [shape: f32[1,128], index: 4, kind: input, shape index: {}]
  %s5 = inlined_call_operand.vmem [shape: f32[1,128], index: 5, kind: input, shape index: {}]
  %s6 = inlined_call_operand.hbm [shape: bf16[1152,128], index: 6, kind: input, shape index: {}]
  %s7 = inlined_call_operand.hbm [shape: bf16[128,128], index: 7, kind: input, shape index: {}]
  %s8 = inlined_call_operand.hbm [shape: f32[2,16,128], index: 8, kind: output, shape index: {}]
  %s9 = sld [smem:[#allocation0]]
  $region81: #{tpu_custom_call.1} parent=0
    _
  %s11 = ssub.s32 1, %s9
  %s12 = scalar_select 0, %s11, %s9
  $region1: #{tpu_custom_call.1} parent=0
    #allocation4 [shape = 'u8[32768]{0}', space=vmem, size = 0x8000, scoped, tag = 'input window, operand 0']
    #allocation5 [shape = 's32[2]{0}', space=sflag, size = 0x8, scoped, tag = 'scoped memory for tpu_custom_call.1']
    #allocation6 [shape = 's32[2]{0}', space=sflag, size = 0x8, scoped, tag = 'scoped memory for tpu_custom_call.1']
    #allocation7 [shape = 'u8[294912]{0}', space=vmem, size = 0x48000, scoped, tag = 'input window, operand 3, single buffered']
    #allocation8 [shape = 's32[1]{0}', space=sflag, size = 0x4, scoped, tag = 'scoped memory for tpu_custom_call.1']
    #allocation9 [shape = 'u8[294912]{0}', space=vmem, size = 0x48000, scoped, tag = 'input window, operand 6, single buffered']
    #allocation10 [shape = 'u8[32768]{0}', space=vmem, size = 0x8000, scoped, tag = 'input window, operand 7, single buffered']
    #allocation11 [shape = 's32[1]{0}', space=sflag, size = 0x4, scoped, tag = 'scoped memory for tpu_custom_call.1']
    #allocation12 [shape = 'u8[16384]{0}', space=vmem, size = 0x4000, scoped, tag = 'output window, operand 0']
    %13 = vsyncpa [#allocation5], 0
    %s14 = scalar_lea.sflag [#allocation5], 1
    %15 = vsyncpa %s14, 0
    %16 = vsyncpa [#allocation8], 0
    %17 = vsyncpa [#allocation11], 0
    %18 = vsyncpa [#allocation6], 0
    %s19 = scalar_lea.sflag [#allocation6], 1
    %20 = vsyncpa %s19, 0
    loop: start=0, step=1, limit=4
    $region2: #{tpu_custom_call.1} parent=1 // loop_pre_header
      _
    $region3: #{tpu_custom_call.1} parent=1 // loop_header
      %s22 = sphi 0, %s26
      %p23 = scmp.ge.s32.totalorder %s22, 4
      %s29 = sphi 0, %s41
      %s30 = sphi 0, %s37
      %s31 = sphi 0, %s29
      %s32 = sphi 0, %s30
      %s33 = sphi 0, %s31
      %s34 = sphi 0, %s32
      %s46 = sphi 0, %s48
      %s49 = sphi 0, %s46
      %s50 = sphi 0, %s49
      %s66 = sphi 0, %s50
      %s70 = sphi 0, %s70
      %s72 = sphi 0, %s70
      %s73 = sphi 0, %s72
      %s87 = sphi 0, %s73
      %s91 = sphi 0, %s91
      %s93 = sphi 0, %s91
      %s94 = sphi 0, %s93
      %s108 = sphi 0, %s94
      %s112 = sphi 0, %s112
      %s114 = sphi 0, %s112
      %s115 = sphi 0, %s114
      %s129 = sphi 0, %s115
      %s133 = sphi 0, %s133
      %s135 = sphi 0, %s133
      %s136 = sphi 0, %s135
      %s150 = sphi 0, %s136
      %s154 = sphi 0, %s154
      %s156 = sphi 0, %s154
      %s157 = sphi 0, %s156
      %s171 = sphi 0, %s157
      %s175 = sphi 0, %s175
      %s177 = sphi 0, %s175
      %s178 = sphi 0, %s177
      %s192 = sphi 0, %s178
      %s196 = sphi 0, %s196
      %s198 = sphi 0, %s196
      %s199 = sphi 0, %s198
      %s213 = sphi 0, %s199
      %s221 = sphi 0, %s223
      %s224 = sphi 0, %s221
      %s225 = sphi 0, %s224
      %s241 = sphi 0, %s225
    $region4: #{tpu_custom_call.1} parent=1 // loop_header_branch
      %25 = sbr.rel (%p23) target = $region8
    $region5: #{tpu_custom_call.1} parent=1 // loop_body
      %s27 = ssub.s32 %s22, 1
      %s28 = ssub.s32 %s22, 2
      %s35 = sadd.s32 1, %s30
      %p36 = scmp.ge.s32.totalorder %s35, 1
      %s37 = scalar_select %p36, 0, %s35
      %s38 = sadd.s32 1, %s29
      %s39 = scalar_select %p36, %s38, %s29
      %p40 = scmp.ge.s32.totalorder %s39, 2
      %s41 = scalar_select %p40, 0, %s39
      %s42 = ssub.s32 %s29, %s41
      %s43 = ssub.s32 %s30, %s37
      %s44 = sor.u32 %s42, %s43
      %p45 = scmp.eq.s32.totalorder %s44, 0
      %s47 = sadd.s32 %s46, 1
      %s48 = scalar_select %p45, %s46, %s47
      %p51 = pneg %p45
      %p52 = scmp.eq.s32.totalorder %s22, 1
      %p53 = por %p51, %p52
      %p54 = scmp.ne.s32.totalorder %s46, %s49
      %p55 = scmp.eq.s32.totalorder %s22, 0
      %p56 = por %p54, %p55
      %p57 = scmp.ne.s32.totalorder %s46, %s49
      %p58 = scmp.eq.s32.totalorder %s27, 1
      %p59 = por %p57, %p58
      %p60 = scmp.ne.s32.totalorder %s49, %s50
      %p61 = scmp.eq.s32.totalorder %s27, 0
      %p62 = por %p60, %p61
      %p63 = scmp.ne.s32.totalorder %s49, %s50
      %p64 = scmp.eq.s32.totalorder %s28, 1
      %p65 = por %p63, %p64
      %p67 = scmp.ne.s32.totalorder %s50, %s66
      %p68 = scmp.eq.s32.totalorder %s28, 0
      %p69 = por %p67, %p68
      %s71 = sadd.s32 %s70, 1
      %p74 = scmp.eq.s32.totalorder %s22, 1
      %p75 = scmp.ne.s32.totalorder %s70, %s72
      %p76 = scmp.eq.s32.totalorder %s22, 0
      %p77 = por %p75, %p76
      %p78 = scmp.ne.s32.totalorder %s70, %s72
      %p79 = scmp.eq.s32.totalorder %s27, 1
      %p80 = por %p78, %p79
      %p81 = scmp.ne.s32.totalorder %s72, %s73
      %p82 = scmp.eq.s32.totalorder %s27, 0
      %p83 = por %p81, %p82
      %p84 = scmp.ne.s32.totalorder %s72, %s73
      %p85 = scmp.eq.s32.totalorder %s28, 1
      %p86 = por %p84, %p85
      %p88 = scmp.ne.s32.totalorder %s73, %s87
      %p89 = scmp.eq.s32.totalorder %s28, 0
      %p90 = por %p88, %p89
      %s92 = sadd.s32 %s91, 1
      %p95 = scmp.eq.s32.totalorder %s22, 1
      %p96 = scmp.ne.s32.totalorder %s91, %s93
      %p97 = scmp.eq.s32.totalorder %s22, 0
      %p98 = por %p96, %p97
      %p99 = scmp.ne.s32.totalorder %s91, %s93
      %p100 = scmp.eq.s32.totalorder %s27, 1
      %p101 = por %p99, %p100
      %p102 = scmp.ne.s32.totalorder %s93, %s94
      %p103 = scmp.eq.s32.totalorder %s27, 0
      %p104 = por %p102, %p103
      %p105 = scmp.ne.s32.totalorder %s93, %s94
      %p106 = scmp.eq.s32.totalorder %s28, 1
      %p107 = por %p105, %p106
      %p109 = scmp.ne.s32.totalorder %s94, %s108
      %p110 = scmp.eq.s32.totalorder %s28, 0
      %p111 = por %p109, %p110
      %s113 = sadd.s32 %s112, 1
      %p116 = scmp.eq.s32.totalorder %s22, 1
      %p117 = scmp.ne.s32.totalorder %s112, %s114
      %p118 = scmp.eq.s32.totalorder %s22, 0
      %p119 = por %p117, %p118
      %p120 = scmp.ne.s32.totalorder %s112, %s114
      %p121 = scmp.eq.s32.totalorder %s27, 1
      %p122 = por %p120, %p121
      %p123 = scmp.ne.s32.totalorder %s114, %s115
      %p124 = scmp.eq.s32.totalorder %s27, 0
      %p125 = por %p123, %p124
      %p126 = scmp.ne.s32.totalorder %s114, %s115
      %p127 = scmp.eq.s32.totalorder %s28, 1
      %p128 = por %p126, %p127
      %p130 = scmp.ne.s32.totalorder %s115, %s129
      %p131 = scmp.eq.s32.totalorder %s28, 0
      %p132 = por %p130, %p131
      %s134 = sadd.s32 %s133, 1
      %p137 = scmp.eq.s32.totalorder %s22, 1
      %p138 = scmp.ne.s32.totalorder %s133, %s135
      %p139 = scmp.eq.s32.totalorder %s22, 0
      %p140 = por %p138, %p139
      %p141 = scmp.ne.s32.totalorder %s133, %s135
      %p142 = scmp.eq.s32.totalorder %s27, 1
      %p143 = por %p141, %p142
      %p144 = scmp.ne.s32.totalorder %s135, %s136
      %p145 = scmp.eq.s32.totalorder %s27, 0
      %p146 = por %p144, %p145
      %p147 = scmp.ne.s32.totalorder %s135, %s136
      %p148 = scmp.eq.s32.totalorder %s28, 1
      %p149 = por %p147, %p148
      %p151 = scmp.ne.s32.totalorder %s136, %s150
      %p152 = scmp.eq.s32.totalorder %s28, 0
      %p153 = por %p151, %p152
      %s155 = sadd.s32 %s154, 1
      %p158 = scmp.eq.s32.totalorder %s22, 1
      %p159 = scmp.ne.s32.totalorder %s154, %s156
      %p160 = scmp.eq.s32.totalorder %s22, 0
      %p161 = por %p159, %p160
      %p162 = scmp.ne.s32.totalorder %s154, %s156
      %p163 = scmp.eq.s32.totalorder %s27, 1
      %p164 = por %p162, %p163
      %p165 = scmp.ne.s32.totalorder %s156, %s157
      %p166 = scmp.eq.s32.totalorder %s27, 0
      %p167 = por %p165, %p166
      %p168 = scmp.ne.s32.totalorder %s156, %s157
      %p169 = scmp.eq.s32.totalorder %s28, 1
      %p170 = por %p168, %p169
      %p172 = scmp.ne.s32.totalorder %s157, %s171
      %p173 = scmp.eq.s32.totalorder %s28, 0
      %p174 = por %p172, %p173
      %s176 = sadd.s32 %s175, 1
      %p179 = scmp.eq.s32.totalorder %s22, 1
      %p180 = scmp.ne.s32.totalorder %s175, %s177
      %p181 = scmp.eq.s32.totalorder %s22, 0
      %p182 = por %p180, %p181
      %p183 = scmp.ne.s32.totalorder %s175, %s177
      %p184 = scmp.eq.s32.totalorder %s27, 1
      %p185 = por %p183, %p184
      %p186 = scmp.ne.s32.totalorder %s177, %s178
      %p187 = scmp.eq.s32.totalorder %s27, 0
      %p188 = por %p186, %p187
      %p189 = scmp.ne.s32.totalorder %s177, %s178
      %p190 = scmp.eq.s32.totalorder %s28, 1
      %p191 = por %p189, %p190
      %p193 = scmp.ne.s32.totalorder %s178, %s192
      %p194 = scmp.eq.s32.totalorder %s28, 0
      %p195 = por %p193, %p194
      %s197 = sadd.s32 %s196, 1
      %p200 = scmp.eq.s32.totalorder %s22, 1
      %p201 = scmp.ne.s32.totalorder %s196, %s198
      %p202 = scmp.eq.s32.totalorder %s22, 0
      %p203 = por %p201, %p202
      %p204 = scmp.ne.s32.totalorder %s196, %s198
      %p205 = scmp.eq.s32.totalorder %s27, 1
      %p206 = por %p204, %p205
      %p207 = scmp.ne.s32.totalorder %s198, %s199
      %p208 = scmp.eq.s32.totalorder %s27, 0
      %p209 = por %p207, %p208
      %p210 = scmp.ne.s32.totalorder %s198, %s199
      %p211 = scmp.eq.s32.totalorder %s28, 1
      %p212 = por %p210, %p211
      %p214 = scmp.ne.s32.totalorder %s199, %s213
      %p215 = scmp.eq.s32.totalorder %s28, 0
      %p216 = por %p214, %p215
      %s217 = ssub.s32 %s29, %s41
      %s218 = ssub.s32 %s30, %s37
      %s219 = sor.u32 %s217, %s218
      %p220 = scmp.eq.s32.totalorder %s219, 0
      %s222 = sadd.s32 %s221, 1
      %s223 = scalar_select %p220, %s221, %s222
      %p226 = pneg %p220
      %p227 = scmp.eq.s32.totalorder %s22, 1
      %p228 = por %p226, %p227
      %p229 = scmp.ne.s32.totalorder %s221, %s224
      %p230 = scmp.eq.s32.totalorder %s22, 0
      %p231 = por %p229, %p230
      %p232 = scmp.ne.s32.totalorder %s221, %s224
      %p233 = scmp.eq.s32.totalorder %s27, 1
      %p234 = por %p232, %p233
      %p235 = scmp.ne.s32.totalorder %s224, %s225
      %p236 = scmp.eq.s32.totalorder %s27, 0
      %p237 = por %p235, %p236
      %p238 = scmp.ne.s32.totalorder %s224, %s225
      %p239 = scmp.eq.s32.totalorder %s28, 1
      %p240 = por %p238, %p239
      %p242 = scmp.ne.s32.totalorder %s225, %s241
      %p243 = scmp.eq.s32.totalorder %s28, 0
      %p244 = por %p242, %p243
      %p245 = scmp.le.s32.totalorder 1, %s22
      %p246 = scmp.lt.s32.totalorder %s22, 3
      %p247 = pnand %p245, %p246
      %p248 = pneg %p247
      // Predicated region
      $region9: #{tpu_custom_call.1} parent=5 // pred_check
        _
      $region10: #{tpu_custom_call.1} parent=5 // pred_check_branch
        %250 = sbr.rel (%p247) target = $region12
      $region11: #{tpu_custom_call.1} parent=5 // pred_region
        %s251 = ssub.s32 %s22, 1
        // Predicated region
        $region13: #{tpu_custom_call.1} parent=11 // pred_check
          %p252 = pneg %p83
        $region14: #{tpu_custom_call.1} parent=11 // pred_check_branch
          %254 = sbr.rel (%p252) target = $region16
        $region15: #{tpu_custom_call.1} parent=11 // pred_region
          _
        $region16: #{tpu_custom_call.1} parent=11 // pred_fallthru
          _
        // Predicated region
        $region17: #{tpu_custom_call.1} parent=11 // pred_check
          %p255 = pneg %p104
        $region18: #{tpu_custom_call.1} parent=11 // pred_check_branch
          %257 = sbr.rel (%p255) target = $region20
        $region19: #{tpu_custom_call.1} parent=11 // pred_region
          _
        $region20: #{tpu_custom_call.1} parent=11 // pred_fallthru
          _
        // Predicated region
        $region21: #{tpu_custom_call.1} parent=11 // pred_check
          %p258 = pneg %p125
        $region22: #{tpu_custom_call.1} parent=11 // pred_check_branch
          %260 = sbr.rel (%p258) target = $region24
        $region23: #{tpu_custom_call.1} parent=11 // pred_region
          %s262 = ssub.s32 9216, 9216
          %263 = vsyncadd [#allocation8], %s262
          %s264 = sshll.u32 [#allocation7], 4
          %s265 = int_to_ptr.vmem [resolvable:$true] %s264
          %270 = dma.hbm_to_vmem [thread:$0]  %s3, 9216, %s265, [#allocation8], 64, 64, 4
        $region24: #{tpu_custom_call.1} parent=11 // pred_fallthru
          _
        // Predicated region
        $region25: #{tpu_custom_call.1} parent=11 // pred_check
          %p271 = pneg %p146
        $region26: #{tpu_custom_call.1} parent=11 // pred_check_branch
          %273 = sbr.rel (%p271) target = $region28
        $region27: #{tpu_custom_call.1} parent=11 // pred_region
          _
        $region28: #{tpu_custom_call.1} parent=11 // pred_fallthru
          _
        // Predicated region
        $region29: #{tpu_custom_call.1} parent=11 // pred_check
          %p274 = pneg %p167
        $region30: #{tpu_custom_call.1} parent=11 // pred_check_branch
          %276 = sbr.rel (%p274) target = $region32
        $region31: #{tpu_custom_call.1} parent=11 // pred_region
          _
        $region32: #{tpu_custom_call.1} parent=11 // pred_fallthru
          _
        // Predicated region
        $region33: #{tpu_custom_call.1} parent=11 // pred_check
          %p277 = pneg %p188
        $region34: #{tpu_custom_call.1} parent=11 // pred_check_branch
          %279 = sbr.rel (%p277) target = $region36
        $region35: #{tpu_custom_call.1} parent=11 // pred_region
          %s281 = ssub.s32 9216, 9216
          %282 = vsyncadd [#allocation8], %s281
          %s283 = sshll.u32 [#allocation9], 4
          %s284 = int_to_ptr.vmem [resolvable:$true] %s283
          %289 = dma.hbm_to_vmem [thread:$0]  %s6, 9216, %s284, [#allocation8], 64, 64, 4
        $region36: #{tpu_custom_call.1} parent=11 // pred_fallthru
          _
        // Predicated region
        $region37: #{tpu_custom_call.1} parent=11 // pred_check
          %p290 = pneg %p209
        $region38: #{tpu_custom_call.1} parent=11 // pred_check_branch
          %292 = sbr.rel (%p290) target = $region40
        $region39: #{tpu_custom_call.1} parent=11 // pred_region
          %s294 = ssub.s32 1024, 1024
          %295 = vsyncadd [#allocation11], %s294
          %s296 = sshll.u32 [#allocation10], 4
          %s297 = int_to_ptr.vmem [resolvable:$true] %s296
          %302 = dma.hbm_to_vmem [thread:$0]  %s7, 1024, %s297, [#allocation11], 64, 64, 4
        $region40: #{tpu_custom_call.1} parent=11 // pred_fallthru
          _
      $region12: #{tpu_custom_call.1} parent=5 // pred_fallthru
        _
      %p303 = scmp.lt.s32.totalorder %s22, 2
      // Predicated region
      $region41: #{tpu_custom_call.1} parent=5 // pred_check
        %p304 = pneg %p303
      $region42: #{tpu_custom_call.1} parent=5 // pred_check_branch
        %306 = sbr.rel (%p304) target = $region44
      $region43: #{tpu_custom_call.1} parent=5 // pred_region
        // Predicated region
        $region45: #{tpu_custom_call.1} parent=43 // pred_check
          %p307 = pneg %p56
        $region46: #{tpu_custom_call.1} parent=43 // pred_check_branch
          %309 = sbr.rel (%p307) target = $region48
        $region47: #{tpu_custom_call.1} parent=43 // pred_region
          %s310 = sand.u32 %s46, 1
          %s311 = scalar_lea.sflag [#allocation5], %s310
          %s312 = sand.u32 %s46, 1
          %s313 = smul.addr %s312, 32
          %s314 = scalar_lea.vmem [#allocation4], %s313
          %s316 = ssub.s32 512, 512
          %317 = vsyncadd %s311, %s316
          %s318 = smul.addr %s30, 4
          %s319 = smul.addr %s29, 4
          %s320 = sadd.s32 %s318, %s319
          %s321 = smul.addr %s320, 128
          %s322 = scalar_lea.hbm %s0, %s321
          %s323 = sshll.u32 %s314, 4
          %s324 = int_to_ptr.vmem [resolvable:$true] %s323
          %329 = dma.hbm_to_vmem [thread:$0]  %s322, 512, %s324, %s311, 128, 128, 8
        $region48: #{tpu_custom_call.1} parent=43 // pred_fallthru
          _
      $region44: #{tpu_custom_call.1} parent=5 // pred_fallthru
        _
      %p330 = scmp.le.s32.totalorder 1, %s22
      %p331 = scmp.lt.s32.totalorder %s22, 3
      %p332 = pnand %p330, %p331
      %p333 = pneg %p332
      // Predicated region
      $region49: #{tpu_custom_call.1} parent=5 // pred_check
        _
      $region50: #{tpu_custom_call.1} parent=5 // pred_check_branch
        %335 = sbr.rel (%p332) target = $region52
      $region51: #{tpu_custom_call.1} parent=5 // pred_region
        %s336 = ssub.s32 %s22, 1
        %s337 = sand.u32 %s49, 1
        %s338 = scalar_lea.sflag [#allocation5], %s337
        %s339 = sand.u32 %s49, 1
        %s340 = smul.addr %s339, 32
        %s341 = scalar_lea.vmem [#allocation4], %s340
        // Predicated region
        $region53: #{tpu_custom_call.1} parent=51 // pred_check
          %p342 = pneg %p62
        $region54: #{tpu_custom_call.1} parent=51 // pred_check_branch
          %344 = sbr.rel (%p342) target = $region56
        $region55: #{tpu_custom_call.1} parent=51 // pred_region
          %345 = dma.done %s338, 512
        $region56: #{tpu_custom_call.1} parent=51 // pred_fallthru
          _
        // Predicated region
        $region57: #{tpu_custom_call.1} parent=51 // pred_check
          %p346 = pneg %p125
        $region58: #{tpu_custom_call.1} parent=51 // pred_check_branch
          %348 = sbr.rel (%p346) target = $region60
        $region59: #{tpu_custom_call.1} parent=51 // pred_region
          %349 = dma.done [#allocation8], 9216
        $region60: #{tpu_custom_call.1} parent=51 // pred_fallthru
          _
        // Predicated region
        $region61: #{tpu_custom_call.1} parent=51 // pred_check
          %p350 = pneg %p188
        $region62: #{tpu_custom_call.1} parent=51 // pred_check_branch
          %352 = sbr.rel (%p350) target = $region64
        $region63: #{tpu_custom_call.1} parent=51 // pred_region
          %353 = dma.done [#allocation8], 9216
        $region64: #{tpu_custom_call.1} parent=51 // pred_fallthru
          _
        // Predicated region
        $region65: #{tpu_custom_call.1} parent=51 // pred_check
          %p354 = pneg %p209
        $region66: #{tpu_custom_call.1} parent=51 // pred_check_branch
          %356 = sbr.rel (%p354) target = $region68
        $region67: #{tpu_custom_call.1} parent=51 // pred_region
          %357 = dma.done [#allocation11], 1024
        $region68: #{tpu_custom_call.1} parent=51 // pred_fallthru
          _
        %s358 = sand.u32 %s49, 1
        %s359 = scalar_lea.sflag [#allocation5], %s358
        %s360 = sand.u32 %s49, 1
        %s361 = smul.addr %s360, 32
        %s362 = scalar_lea.vmem [#allocation4], %s361
        %p363 = pneg %p62
        %p364 = pneg %p59
        %p365 = pneg %p83
        %p366 = pneg %p80
        %p367 = pneg %p104
        %p368 = pneg %p101
        %p369 = pneg %p125
        %p370 = pneg %p122
        %p371 = pneg %p146
        %p372 = pneg %p143
        %p373 = pneg %p167
        %p374 = pneg %p164
        %p375 = pneg %p188
        %p376 = pneg %p185
        %p377 = pneg %p209
        %p378 = pneg %p206
        %p379 = pneg %p237
        %p380 = pneg %p234
        %s381 = sand.u32 %s224, 1
        %s382 = scalar_lea.sflag [#allocation6], %s381
        %s383 = sand.u32 %s224, 1
        %s384 = smul.addr %s383, 16
        %s385 = scalar_lea.vmem [#allocation12], %s384
        %s386 = smul.u32 2, %s32
        %s388 = smul.u32 %s32, 16
        %s389 = ssub.s32 %s388, 8
        %v390 = vld [vmem:[%s341] sm:$0xff]
        %v391 = vld [vmem:[%s341 + $0x8] sm:$0xff]
        %v392 = vld [vmem:[%s341 + $0x10] sm:$0xff]
        %v393 = vld [vmem:[%s341 + $0x18] sm:$0xff]
        %v394 = vlaneseq
        %v395 = vshrl.u32 %v394, 7
        %v396 = vadd.s32 %v395, 8
        %v397 = vadd.s32 %v395, 16
        %v398 = vadd.s32 %v395, 24
        %v399 = vstv %s389
        %v400 = vadd.s32 %v399, %v395
        %v401 = vadd.s32 %v399, %v396
        %v402 = vadd.s32 %v399, %v397
        %v403 = vadd.s32 %v399, %v398
        %vm404 = vcmp.ge.s32.totalorder %v400, 0
        %vm405 = vcmp.ge.s32.totalorder %v401, 0
        %vm406 = vcmp.ge.s32.totalorder %v402, 0
        %vm407 = vcmp.ge.s32.totalorder %v403, 0
        %vm408 = vcmp.lt.s32.totalorder %v400, 16
        %vm409 = vcmp.lt.s32.totalorder %v401, 16
        %vm410 = vcmp.lt.s32.totalorder %v402, 16
        %vm411 = vcmp.lt.s32.totalorder %v403, 16
        %vm412 = vmand %vm404, %vm408
        %vm413 = vmand %vm405, %vm409
        %vm414 = vmand %vm406, %vm410
        %vm415 = vmand %vm407, %vm411
        %v416 = vld [vmem:[%s1] sm:$0x1]
        %v418 = vlaneseq
        %v419 = vshrl.u32 %v418, 7
        %v420 = vsub.s32 0, %v419
        %v421 = vrot.slane %v416, %v420
        %v423 = vmul.f32 %v390, %v421
        %v424 = vmul.f32 %v391, %v421
        %v425 = vmul.f32 %v392, %v421
        %v426 = vmul.f32 %v393, %v421
        %v427 = vld [vmem:[%s2] sm:$0x1]
        %v429 = vlaneseq
        %v430 = vshrl.u32 %v429, 7
        %v431 = vsub.s32 0, %v430
        %v432 = vrot.slane %v427, %v431
        %v434 = vadd.f32 %v423, %v432
        %v435 = vadd.f32 %v424, %v432
        %v436 = vadd.f32 %v425, %v432
        %v437 = vadd.f32 %v426, %v432
        %v438 = vmax.f32 %v434, 0.0
        %v439 = vmax.f32 %v435, 0.0
        %v440 = vmax.f32 %v436, 0.0
        %v441 = vmax.f32 %v437, 0.0
        %v442 = vsel %vm412, 1, 0
        %v443 = vsel %vm413, 1, 0
        %v444 = vsel %vm414, 1, 0
        %v445 = vsel %vm415, 1, 0
        %vm446 = vcmp.eq.s32.totalorder %v442, 1
        %vm447 = vcmp.eq.s32.totalorder %v443, 1
        %vm448 = vcmp.eq.s32.totalorder %v444, 1
        %vm449 = vcmp.eq.s32.totalorder %v445, 1
        %v450 = vsel %vm446, %v438, 0.0
        %v451 = vsel %vm447, %v439, 0.0
        %v452 = vsel %vm448, %v440, 0.0
        %v453 = vsel %vm449, %v441, 0.0
        %v454 = vpack.c.bf16 %v451, %v450
        %v455 = vpack.c.bf16 %v453, %v452
        %v458 = vunpack.c.l.b16 %v454
        %v459 = vunpack.c.h.b16 %v454
        %v460 = vunpack.c.l.b16 %v455
        %v461 = vpack.c.b16 %v458, %v458
        %v462 = vpack.c.b16 %v459, %v459
        %v463 = vpack.c.b16 %v460, %v460
        %467 = vst [vmem:[#allocation2] sm:$0xf] %v461
        %468 = vst [vmem:[#allocation2 + $0x24] sm:$0xf] %v462
        %469 = vst [vmem:[#allocation2 + $0x48] sm:$0xf] %v463
        %v470 = vunpack.c.h.b16 %v455
        %v471 = vpack.c.b16 %v470, %v470
        %vm472 = vsmask.f32 3328
        %vm473 = vsmask.f32 7440
        %vm474 = vmor %vm472, %vm473
        %v476 = vshrl.u32 %v461, 16
        %v478 = vrot.slane %v476, 4
        %v479 = vshll.u32 %v461, 16
        %v481 = vrot.slane %v479, 5
        %v482 = vor.u32 %v478, %v481
        %v483 = vrot.slane %v482, 4
        %v485 = vshll.u32 %v462, 16
        %v487 = vrot.slane %v485, 5
        %v488 = vsel %vm474, %v483, %v487
        %v489 = vshrl.u32 %v462, 16
        %v491 = vrot.slane %v489, 4
        %v492 = vor.u32 %v491, %v487
        %v493 = vrot.slane %v492, 4
        %v495 = vshll.u32 %v463, 16
        %v497 = vrot.slane %v495, 5
        %v498 = vsel %vm474, %v493, %v497
        %v499 = vshrl.u32 %v463, 16
        %v501 = vrot.slane %v499, 4
        %v502 = vor.u32 %v501, %v497
        %v503 = vrot.slane %v502, 4
        %v505 = vshll.u32 %v471, 16
        %v507 = vrot.slane %v505, 5
        %v508 = vsel %vm474, %v503, %v507
        %512 = vst [vmem:[#allocation2 + $0x4] sm:$0xf] %v488
        %513 = vst [vmem:[#allocation2 + $0x28] sm:$0xf] %v498
        %514 = vst [vmem:[#allocation2 + $0x4c] sm:$0xf] %v508
        %vm515 = vcmask 1042432
        %vm516 = vcmask 1046532
        %vm517 = vmor %vm515, %vm516
        %v518 = vrot.slane %v461, 5
        %v519 = vrot.slane %v518, 4
        %v520 = vrot.slane %v462, 5
        %v521 = vsel %vm517, %v519, %v520
        %v522 = vrot.slane %v520, 4
        %v523 = vrot.slane %v463, 5
        %v524 = vsel %vm517, %v522, %v523
        %v525 = vrot.slane %v523, 4
        %v526 = vrot.slane %v471, 5
        %v527 = vsel %vm517, %v525, %v526
        %531 = vst [vmem:[#allocation2 + $0x8] sm:$0xf] %v521
        %532 = vst [vmem:[#allocation2 + $0x2c] sm:$0xf] %v524
        %533 = vst [vmem:[#allocation2 + $0x50] sm:$0xf] %v527
        %vm534 = vsmask.f32 2304
        %vm535 = vsmask.f32 6416
        %vm536 = vmor %vm534, %vm535
        %v537 = vrot.slane %v476, 5
        %v538 = vrot.slane %v479, 6
        %v539 = vor.u32 %v537, %v538
        %v540 = vrot.slane %v539, 4
        %v541 = vrot.slane %v489, 5
        %v542 = vrot.slane %v485, 6
        %v543 = vor.u32 %v541, %v542
        %v544 = vsel %vm536, %v540, %v543
        %v545 = vrot.slane %v543, 4
        %v546 = vrot.slane %v499, 5
        %v547 = vrot.slane %v495, 6
        %v548 = vor.u32 %v546, %v547
        %v549 = vsel %vm536, %v545, %v548
        %v550 = vrot.slane %v548, 4
        %v551 = vshrl.u32 %v471, 16
        %v553 = vrot.slane %v551, 5
        %v554 = vrot.slane %v505, 6
        %v555 = vor.u32 %v553, %v554
        %v556 = vsel %vm536, %v550, %v555
        %560 = vst [vmem:[#allocation2 + $0xc] sm:$0xf] %v544
        %561 = vst [vmem:[#allocation2 + $0x30] sm:$0xf] %v549
        %562 = vst [vmem:[#allocation2 + $0x54] sm:$0xf] %v556
        %vm563 = vcmask 1041408
        %vm564 = vcmask 1045508
        %vm565 = vmor %vm563, %vm564
        %v566 = vrot.slane %v461, 6
        %v567 = vrot.slane %v566, 4
        %v568 = vrot.slane %v462, 6
        %v569 = vsel %vm565, %v567, %v568
        %v570 = vrot.slane %v568, 4
        %v571 = vrot.slane %v463, 6
        %v572 = vsel %vm565, %v570, %v571
        %v573 = vrot.slane %v571, 4
        %v574 = vrot.slane %v471, 6
        %v575 = vsel %vm565, %v573, %v574
        %579 = vst [vmem:[#allocation2 + $0x10] sm:$0xf] %v569
        %580 = vst [vmem:[#allocation2 + $0x34] sm:$0xf] %v572
        %581 = vst [vmem:[#allocation2 + $0x58] sm:$0xf] %v575
        %vm582 = vsmask.f32 1280
        %vm583 = vsmask.f32 5392
        %vm584 = vmor %vm582, %vm583
        %v585 = vrot.slane %v476, 6
        %v586 = vrot.slane %v479, 7
        %v587 = vor.u32 %v585, %v586
        %v588 = vrot.slane %v587, 4
        %v589 = vrot.slane %v489, 6
        %v590 = vrot.slane %v485, 7
        %v591 = vor.u32 %v589, %v590
        %v592 = vsel %vm584, %v588, %v591
        %v593 = vrot.slane %v591, 4
        %v594 = vrot.slane %v499, 6
        %v595 = vrot.slane %v495, 7
        %v596 = vor.u32 %v594, %v595
        %v597 = vsel %vm584, %v593, %v596
        %v598 = vrot.slane %v596, 4
        %v599 = vrot.slane %v551, 6
        %v600 = vrot.slane %v505, 7
        %v601 = vor.u32 %v599, %v600
        %v602 = vsel %vm584, %v598, %v601
        %606 = vst [vmem:[#allocation2 + $0x14] sm:$0xf] %v592
        %607 = vst [vmem:[#allocation2 + $0x38] sm:$0xf] %v597
        %608 = vst [vmem:[#allocation2 + $0x5c] sm:$0xf] %v602
        %vm609 = vcmask 1040384
        %vm610 = vcmask 1044484
        %vm611 = vmor %vm609, %vm610
        %v612 = vrot.slane %v461, 7
        %v613 = vrot.slane %v612, 4
        %v614 = vrot.slane %v462, 7
        %v615 = vsel %vm611, %v613, %v614
        %v616 = vrot.slane %v614, 4
        %v617 = vrot.slane %v463, 7
        %v618 = vsel %vm611, %v616, %v617
        %v619 = vrot.slane %v617, 4
        %v620 = vrot.slane %v471, 7
        %v621 = vsel %vm611, %v619, %v620
        %625 = vst [vmem:[#allocation2 + $0x18] sm:$0xf] %v615
        %626 = vst [vmem:[#allocation2 + $0x3c] sm:$0xf] %v618
        %627 = vst [vmem:[#allocation2 + $0x60] sm:$0xf] %v621
        %vm628 = vsmask.f32 256
        %vm629 = vsmask.f32 4368
        %vm630 = vmor %vm628, %vm629
        %v631 = vrot.slane %v476, 7
        %v632 = vrot.slane %v631, 4
        %v633 = vrot.slane %v489, 7
        %v634 = vor.u32 %v633, %v485
        %v635 = vsel %vm630, %v632, %v634
        %v636 = vrot.slane %v633, 4
        %v637 = vrot.slane %v499, 7
        %v638 = vor.u32 %v637, %v495
        %v639 = vsel %vm630, %v636, %v638
        %v640 = vrot.slane %v637, 4
        %v641 = vrot.slane %v551, 7
        %v642 = vor.u32 %v641, %v505
        %v643 = vsel %vm630, %v640, %v642
        %647 = vst [vmem:[#allocation2 + $0x1c] sm:$0xf] %v635
        %648 = vst [vmem:[#allocation2 + $0x40] sm:$0xf] %v639
        %649 = vst [vmem:[#allocation2 + $0x64] sm:$0xf] %v643
        %651 = vst [vmem:[#allocation2 + $0x20] sm:$0xf] %v462
        %652 = vst [vmem:[#allocation2 + $0x44] sm:$0xf] %v463
        %653 = vst [vmem:[#allocation2 + $0x68] sm:$0xf] %v471
        %v654 = vld [vmem:[#allocation2] sm:$0xff]
        %v655 = vld [vmem:[#allocation2 + $0x8] sm:$0xff]
        %v656 = vld [vmem:[#allocation2 + $0x10] sm:$0xff]
        %v657 = vld [vmem:[#allocation2 + $0x18] sm:$0xff]
        %v658 = vld [vmem:[#allocation2 + $0x20] sm:$0xf]
        %v659 = vld [vmem:[#allocation2 + $0x24] sm:$0xff]
        %v660 = vld [vmem:[#allocation2 + $0x2c] sm:$0xff]
        %v661 = vld [vmem:[#allocation2 + $0x34] sm:$0xff]
        %v662 = vld [vmem:[#allocation2 + $0x3c] sm:$0xff]
        %v663 = vld [vmem:[#allocation2 + $0x44] sm:$0xf]
        %v664 = vld [vmem:[#allocation2 + $0x48] sm:$0xff]
        %v665 = vld [vmem:[#allocation2 + $0x50] sm:$0xff]
        %v666 = vld [vmem:[#allocation2 + $0x58] sm:$0xff]
        %v667 = vld [vmem:[#allocation2 + $0x60] sm:$0xff]
        %v668 = vld [vmem:[#allocation2 + $0x68] sm:$0xf]
        %v669 = vld [vmem:[#allocation7] sm:$0xf]
        %v670 = vld [vmem:[#allocation7 + $0x4] sm:$0xf]
        %v671 = vld [vmem:[#allocation7 + $0x8] sm:$0xf]
        %v672 = vld [vmem:[#allocation7 + $0xc] sm:$0xf]
        %v673 = vld [vmem:[#allocation7 + $0x10] sm:$0xf]
        %v674 = vld [vmem:[#allocation7 + $0x14] sm:$0xf]
        %v675 = vld [vmem:[#allocation7 + $0x18] sm:$0xf]
        %v676 = vld [vmem:[#allocation7 + $0x1c] sm:$0xf]
        %v677 = vld [vmem:[#allocation7 + $0x20] sm:$0xf]
        %v678 = vld [vmem:[#allocation7 + $0x24] sm:$0xf]
        %v679 = vld [vmem:[#allocation7 + $0x28] sm:$0xf]
        %v680 = vld [vmem:[#allocation7 + $0x2c] sm:$0xf]
        %v681 = vld [vmem:[#allocation7 + $0x30] sm:$0xf]
        %v682 = vld [vmem:[#allocation7 + $0x34] sm:$0xf]
        %v683 = vld [vmem:[#allocation7 + $0x38] sm:$0xf]
        %v684 = vld [vmem:[#allocation7 + $0x3c] sm:$0xf]
        %v685 = vld [vmem:[#allocation7 + $0x40] sm:$0xf]
        %v686 = vld [vmem:[#allocation7 + $0x44] sm:$0xf]
        %v687 = vld [vmem:[#allocation7 + $0x48] sm:$0xf]
        %v688 = vld [vmem:[#allocation7 + $0x4c] sm:$0xf]
        %v689 = vld [vmem:[#allocation7 + $0x50] sm:$0xf]
        %v690 = vld [vmem:[#allocation7 + $0x54] sm:$0xf]
        %v691 = vld [vmem:[#allocation7 + $0x58] sm:$0xf]
        %v692 = vld [vmem:[#allocation7 + $0x5c] sm:$0xf]
        %v693 = vld [vmem:[#allocation7 + $0x60] sm:$0xf]
        %v694 = vld [vmem:[#allocation7 + $0x64] sm:$0xf]
        %v695 = vld [vmem:[#allocation7 + $0x68] sm:$0xf]
        %v696 = vld [vmem:[#allocation7 + $0x6c] sm:$0xf]
        %v697 = vld [vmem:[#allocation7 + $0x70] sm:$0xf]
        %v698 = vld [vmem:[#allocation7 + $0x74] sm:$0xf]
        %v699 = vld [vmem:[#allocation7 + $0x78] sm:$0xf]
        %v700 = vld [vmem:[#allocation7 + $0x7c] sm:$0xf]
        %v701 = vld [vmem:[#allocation7 + $0x80] sm:$0xf]
        %v702 = vld [vmem:[#allocation7 + $0x84] sm:$0xf]
        %v703 = vld [vmem:[#allocation7 + $0x88] sm:$0xf]
        %v704 = vld [vmem:[#allocation7 + $0x8c] sm:$0xf]
        %v705 = vld [vmem:[#allocation7 + $0x90] sm:$0xf]
        %v706 = vld [vmem:[#allocation7 + $0x94] sm:$0xf]
        %v707 = vld [vmem:[#allocation7 + $0x98] sm:$0xf]
        %v708 = vld [vmem:[#allocation7 + $0x9c] sm:$0xf]
        %v709 = vld [vmem:[#allocation7 + $0xa0] sm:$0xf]
        %v710 = vld [vmem:[#allocation7 + $0xa4] sm:$0xf]
        %v711 = vld [vmem:[#allocation7 + $0xa8] sm:$0xf]
        %v712 = vld [vmem:[#allocation7 + $0xac] sm:$0xf]
        %v713 = vld [vmem:[#allocation7 + $0xb0] sm:$0xf]
        %v714 = vld [vmem:[#allocation7 + $0xb4] sm:$0xf]
        %v715 = vld [vmem:[#allocation7 + $0xb8] sm:$0xf]
        %v716 = vld [vmem:[#allocation7 + $0xbc] sm:$0xf]
        %v717 = vld [vmem:[#allocation7 + $0xc0] sm:$0xf]
        %v718 = vld [vmem:[#allocation7 + $0xc4] sm:$0xf]
        %v719 = vld [vmem:[#allocation7 + $0xc8] sm:$0xf]
        %v720 = vld [vmem:[#allocation7 + $0xcc] sm:$0xf]
        %v721 = vld [vmem:[#allocation7 + $0xd0] sm:$0xf]
        %v722 = vld [vmem:[#allocation7 + $0xd4] sm:$0xf]
        %v723 = vld [vmem:[#allocation7 + $0xd8] sm:$0xf]
        %v724 = vld [vmem:[#allocation7 + $0xdc] sm:$0xf]
        %v725 = vld [vmem:[#allocation7 + $0xe0] sm:$0xf]
        %v726 = vld [vmem:[#allocation7 + $0xe4] sm:$0xf]
        %v727 = vld [vmem:[#allocation7 + $0xe8] sm:$0xf]
        %v728 = vld [vmem:[#allocation7 + $0xec] sm:$0xf]
        %v729 = vld [vmem:[#allocation7 + $0xf0] sm:$0xf]
        %v730 = vld [vmem:[#allocation7 + $0xf4] sm:$0xf]
        %v731 = vld [vmem:[#allocation7 + $0xf8] sm:$0xf]
        %v732 = vld [vmem:[#allocation7 + $0xfc] sm:$0xf]
        %v733 = vld [vmem:[#allocation7 + $0x100] sm:$0xf]
        %v734 = vld [vmem:[#allocation7 + $0x104] sm:$0xf]
        %v735 = vld [vmem:[#allocation7 + $0x108] sm:$0xf]
        %v736 = vld [vmem:[#allocation7 + $0x10c] sm:$0xf]
        %v737 = vld [vmem:[#allocation7 + $0x110] sm:$0xf]
        %v738 = vld [vmem:[#allocation7 + $0x114] sm:$0xf]
        %v739 = vld [vmem:[#allocation7 + $0x118] sm:$0xf]
        %v740 = vld [vmem:[#allocation7 + $0x11c] sm:$0xf]
        %v741 = vld [vmem:[#allocation7 + $0x120] sm:$0xf]
        %v742 = vld [vmem:[#allocation7 + $0x124] sm:$0xf]
        %v743 = vld [vmem:[#allocation7 + $0x128] sm:$0xf]
        %v744 = vld [vmem:[#allocation7 + $0x12c] sm:$0xf]
        %v745 = vld [vmem:[#allocation7 + $0x130] sm:$0xf]
        %v746 = vld [vmem:[#allocation7 + $0x134] sm:$0xf]
        %v747 = vld [vmem:[#allocation7 + $0x138] sm:$0xf]
        %v748 = vld [vmem:[#allocation7 + $0x13c] sm:$0xf]
        %v749 = vld [vmem:[#allocation7 + $0x140] sm:$0xf]
        %v750 = vld [vmem:[#allocation7 + $0x144] sm:$0xf]
        %v751 = vld [vmem:[#allocation7 + $0x148] sm:$0xf]
        %v752 = vld [vmem:[#allocation7 + $0x14c] sm:$0xf]
        %v753 = vld [vmem:[#allocation7 + $0x150] sm:$0xf]
        %v754 = vld [vmem:[#allocation7 + $0x154] sm:$0xf]
        %v755 = vld [vmem:[#allocation7 + $0x158] sm:$0xf]
        %v756 = vld [vmem:[#allocation7 + $0x15c] sm:$0xf]
        %v757 = vld [vmem:[#allocation7 + $0x160] sm:$0xf]
        %v758 = vld [vmem:[#allocation7 + $0x164] sm:$0xf]
        %v759 = vld [vmem:[#allocation7 + $0x168] sm:$0xf]
        %v760 = vld [vmem:[#allocation7 + $0x16c] sm:$0xf]
        %v761 = vld [vmem:[#allocation7 + $0x170] sm:$0xf]
        %v762 = vld [vmem:[#allocation7 + $0x174] sm:$0xf]
        %v763 = vld [vmem:[#allocation7 + $0x178] sm:$0xf]
        %v764 = vld [vmem:[#allocation7 + $0x17c] sm:$0xf]
        %v765 = vld [vmem:[#allocation7 + $0x180] sm:$0xf]
        %v766 = vld [vmem:[#allocation7 + $0x184] sm:$0xf]
        %v767 = vld [vmem:[#allocation7 + $0x188] sm:$0xf]
        %v768 = vld [vmem:[#allocation7 + $0x18c] sm:$0xf]
        %v769 = vld [vmem:[#allocation7 + $0x190] sm:$0xf]
        %v770 = vld [vmem:[#allocation7 + $0x194] sm:$0xf]
        %v771 = vld [vmem:[#allocation7 + $0x198] sm:$0xf]
        %v772 = vld [vmem:[#allocation7 + $0x19c] sm:$0xf]
        %v773 = vld [vmem:[#allocation7 + $0x1a0] sm:$0xf]
        %v774 = vld [vmem:[#allocation7 + $0x1a4] sm:$0xf]
        %v775 = vld [vmem:[#allocation7 + $0x1a8] sm:$0xf]
        %v776 = vld [vmem:[#allocation7 + $0x1ac] sm:$0xf]
        %v777 = vld [vmem:[#allocation7 + $0x1b0] sm:$0xf]
        %v778 = vld [vmem:[#allocation7 + $0x1b4] sm:$0xf]
        %v779 = vld [vmem:[#allocation7 + $0x1b8] sm:$0xf]
        %v780 = vld [vmem:[#allocation7 + $0x1bc] sm:$0xf]
        %v781 = vld [vmem:[#allocation7 + $0x1c0] sm:$0xf]
        %v782 = vld [vmem:[#allocation7 + $0x1c4] sm:$0xf]
        %v783 = vld [vmem:[#allocation7 + $0x1c8] sm:$0xf]
        %v784 = vld [vmem:[#allocation7 + $0x1cc] sm:$0xf]
        %v785 = vld [vmem:[#allocation7 + $0x1d0] sm:$0xf]
        %v786 = vld [vmem:[#allocation7 + $0x1d4] sm:$0xf]
        %v787 = vld [vmem:[#allocation7 + $0x1d8] sm:$0xf]
        %v788 = vld [vmem:[#allocation7 + $0x1dc] sm:$0xf]
        %v789 = vld [vmem:[#allocation7 + $0x1e0] sm:$0xf]
        %v790 = vld [vmem:[#allocation7 + $0x1e4] sm:$0xf]
        %v791 = vld [vmem:[#allocation7 + $0x1e8] sm:$0xf]
        %v792 = vld [vmem:[#allocation7 + $0x1ec] sm:$0xf]
        %v793 = vld [vmem:[#allocation7 + $0x1f0] sm:$0xf]
        %v794 = vld [vmem:[#allocation7 + $0x1f4] sm:$0xf]
        %v795 = vld [vmem:[#allocation7 + $0x1f8] sm:$0xf]
        %v796 = vld [vmem:[#allocation7 + $0x1fc] sm:$0xf]
        %v797 = vld [vmem:[#allocation7 + $0x200] sm:$0xf]
        %v798 = vld [vmem:[#allocation7 + $0x204] sm:$0xf]
        %v799 = vld [vmem:[#allocation7 + $0x208] sm:$0xf]
        %v800 = vld [vmem:[#allocation7 + $0x20c] sm:$0xf]
        %v801 = vld [vmem:[#allocation7 + $0x210] sm:$0xf]
        %v802 = vld [vmem:[#allocation7 + $0x214] sm:$0xf]
        %v803 = vld [vmem:[#allocation7 + $0x218] sm:$0xf]
        %v804 = vld [vmem:[#allocation7 + $0x21c] sm:$0xf]
        %v805 = vld [vmem:[#allocation7 + $0x220] sm:$0xf]
        %v806 = vld [vmem:[#allocation7 + $0x224] sm:$0xf]
        %v807 = vld [vmem:[#allocation7 + $0x228] sm:$0xf]
        %v808 = vld [vmem:[#allocation7 + $0x22c] sm:$0xf]
        %v809 = vld [vmem:[#allocation7 + $0x230] sm:$0xf]
        %v810 = vld [vmem:[#allocation7 + $0x234] sm:$0xf]
        %v811 = vld [vmem:[#allocation7 + $0x238] sm:$0xf]
        %v812 = vld [vmem:[#allocation7 + $0x23c] sm:$0xf]
        %v828 = vunpack.c.l.b16 %v654
        %v829 = vunpack.c.h.b16 %v654
        %v830 = vunpack.c.l.b16 %v655
        %v831 = vunpack.c.h.b16 %v655
        %v832 = vunpack.c.l.b16 %v656
        %v833 = vunpack.c.h.b16 %v656
        %v834 = vunpack.c.l.b16 %v657
        %v835 = vunpack.c.h.b16 %v657
        %v836 = vunpack.c.l.b16 %v658
        %v837 = vunpack.c.l.b16 %v659
        %v838 = vunpack.c.h.b16 %v659
        %v839 = vunpack.c.l.b16 %v660
        %v840 = vunpack.c.h.b16 %v660
        %v841 = vunpack.c.l.b16 %v661
        %v842 = vunpack.c.h.b16 %v661
        %v843 = vunpack.c.l.b16 %v662
        %v844 = vunpack.c.h.b16 %v662
        %v845 = vunpack.c.l.b16 %v663
        %v846 = vunpack.c.l.b16 %v664
        %v847 = vunpack.c.h.b16 %v664
        %v848 = vunpack.c.l.b16 %v665
        %v849 = vunpack.c.h.b16 %v665
        %v850 = vunpack.c.l.b16 %v666
        %v851 = vunpack.c.h.b16 %v666
        %v852 = vunpack.c.l.b16 %v667
        %v853 = vunpack.c.h.b16 %v667
        %v854 = vunpack.c.l.b16 %v668
        %v855 = vpack.c.b16 %v837, %v828
        %v856 = vpack.c.b16 %v838, %v829
        %v857 = vpack.c.b16 %v839, %v830
        %v858 = vpack.c.b16 %v840, %v831
        %v859 = vpack.c.b16 %v841, %v832
        %v860 = vpack.c.b16 %v842, %v833
        %v861 = vpack.c.b16 %v843, %v834
        %v862 = vpack.c.b16 %v844, %v835
        %v863 = vpack.c.b16 %v845, %v836
        %v864 = vpack.c.b16 %v846, %v846
        %v865 = vpack.c.b16 %v847, %v847
        %v866 = vpack.c.b16 %v848, %v848
        %v867 = vpack.c.b16 %v849, %v849
        %v868 = vpack.c.b16 %v850, %v850
        %v869 = vpack.c.b16 %v851, %v851
        %v870 = vpack.c.b16 %v852, %v852
        %v871 = vpack.c.b16 %v853, %v853
        %v872 = vpack.c.b16 %v854, %v854
        %v1035 = vunpack.c.l.b16 %v669
        %v1036 = vunpack.c.l.b16 %v670
        %v1037 = vunpack.c.l.b16 %v671
        %v1038 = vunpack.c.l.b16 %v672
        %v1039 = vunpack.c.l.b16 %v673
        %v1040 = vunpack.c.l.b16 %v674
        %v1041 = vunpack.c.l.b16 %v675
        %v1042 = vunpack.c.l.b16 %v676
        %v1043 = vunpack.c.l.b16 %v677
        %v1044 = vunpack.c.l.b16 %v678
        %v1045 = vunpack.c.l.b16 %v679
        %v1046 = vunpack.c.l.b16 %v680
        %v1047 = vunpack.c.l.b16 %v681
        %v1048 = vunpack.c.l.b16 %v682
        %v1049 = vunpack.c.l.b16 %v683
        %v1050 = vunpack.c.l.b16 %v684
        %v1051 = vunpack.c.l.b16 %v685
        %v1052 = vunpack.c.l.b16 %v686
        %v1053 = vunpack.c.l.b16 %v687
        %v1054 = vunpack.c.l.b16 %v688
        %v1055 = vunpack.c.l.b16 %v689
        %v1056 = vunpack.c.l.b16 %v690
        %v1057 = vunpack.c.l.b16 %v691
        %v1058 = vunpack.c.l.b16 %v692
        %v1059 = vunpack.c.l.b16 %v693
        %v1060 = vunpack.c.l.b16 %v694
        %v1061 = vunpack.c.l.b16 %v695
        %v1062 = vunpack.c.l.b16 %v696
        %v1063 = vunpack.c.l.b16 %v697
        %v1064 = vunpack.c.l.b16 %v698
        %v1065 = vunpack.c.l.b16 %v699
        %v1066 = vunpack.c.l.b16 %v700
        %v1067 = vunpack.c.l.b16 %v701
        %v1068 = vunpack.c.l.b16 %v702
        %v1069 = vunpack.c.l.b16 %v703
        %v1070 = vunpack.c.l.b16 %v704
        %v1071 = vunpack.c.l.b16 %v705
        %v1072 = vunpack.c.l.b16 %v706
        %v1073 = vunpack.c.l.b16 %v707
        %v1074 = vunpack.c.l.b16 %v708
        %v1075 = vunpack.c.l.b16 %v709
        %v1076 = vunpack.c.l.b16 %v710
        %v1077 = vunpack.c.l.b16 %v711
        %v1078 = vunpack.c.l.b16 %v712
        %v1079 = vunpack.c.l.b16 %v713
        %v1080 = vunpack.c.l.b16 %v714
        %v1081 = vunpack.c.l.b16 %v715
        %v1082 = vunpack.c.l.b16 %v716
        %v1083 = vunpack.c.l.b16 %v717
        %v1084 = vunpack.c.l.b16 %v718
        %v1085 = vunpack.c.l.b16 %v719
        %v1086 = vunpack.c.l.b16 %v720
        %v1087 = vunpack.c.l.b16 %v721
        %v1088 = vunpack.c.l.b16 %v722
        %v1089 = vunpack.c.l.b16 %v723
        %v1090 = vunpack.c.l.b16 %v724
        %v1091 = vunpack.c.l.b16 %v725
        %v1092 = vunpack.c.l.b16 %v726
        %v1093 = vunpack.c.l.b16 %v727
        %v1094 = vunpack.c.l.b16 %v728
        %v1095 = vunpack.c.l.b16 %v729
        %v1096 = vunpack.c.l.b16 %v730
        %v1097 = vunpack.c.l.b16 %v731
        %v1098 = vunpack.c.l.b16 %v732
        %v1099 = vunpack.c.l.b16 %v733
        %v1100 = vunpack.c.l.b16 %v734
        %v1101 = vunpack.c.l.b16 %v735
        %v1102 = vunpack.c.l.b16 %v736
        %v1103 = vunpack.c.l.b16 %v737
        %v1104 = vunpack.c.l.b16 %v738
        %v1105 = vunpack.c.l.b16 %v739
        %v1106 = vunpack.c.l.b16 %v740
        %v1107 = vunpack.c.l.b16 %v741
        %v1108 = vunpack.c.l.b16 %v742
        %v1109 = vunpack.c.l.b16 %v743
        %v1110 = vunpack.c.l.b16 %v744
        %v1111 = vunpack.c.l.b16 %v745
        %v1112 = vunpack.c.l.b16 %v746
        %v1113 = vunpack.c.l.b16 %v747
        %v1114 = vunpack.c.l.b16 %v748
        %v1115 = vunpack.c.l.b16 %v749
        %v1116 = vunpack.c.l.b16 %v750
        %v1117 = vunpack.c.l.b16 %v751
        %v1118 = vunpack.c.l.b16 %v752
        %v1119 = vunpack.c.l.b16 %v753
        %v1120 = vunpack.c.l.b16 %v754
        %v1121 = vunpack.c.l.b16 %v755
        %v1122 = vunpack.c.l.b16 %v756
        %v1123 = vunpack.c.l.b16 %v757
        %v1124 = vunpack.c.l.b16 %v758
        %v1125 = vunpack.c.l.b16 %v759
        %v1126 = vunpack.c.l.b16 %v760
        %v1127 = vunpack.c.l.b16 %v761
        %v1128 = vunpack.c.l.b16 %v762
        %v1129 = vunpack.c.l.b16 %v763
        %v1130 = vunpack.c.l.b16 %v764
        %v1131 = vunpack.c.l.b16 %v765
        %v1132 = vunpack.c.l.b16 %v766
        %v1133 = vunpack.c.l.b16 %v767
        %v1134 = vunpack.c.l.b16 %v768
        %v1135 = vunpack.c.l.b16 %v769
        %v1136 = vunpack.c.l.b16 %v770
        %v1137 = vunpack.c.l.b16 %v771
        %v1138 = vunpack.c.l.b16 %v772
        %v1139 = vunpack.c.l.b16 %v773
        %v1140 = vunpack.c.l.b16 %v774
        %v1141 = vunpack.c.l.b16 %v775
        %v1142 = vunpack.c.l.b16 %v776
        %v1143 = vunpack.c.l.b16 %v777
        %v1144 = vunpack.c.l.b16 %v778
        %v1145 = vunpack.c.l.b16 %v779
        %v1146 = vunpack.c.l.b16 %v780
        %v1147 = vunpack.c.l.b16 %v781
        %v1148 = vunpack.c.l.b16 %v782
        %v1149 = vunpack.c.l.b16 %v783
        %v1150 = vunpack.c.l.b16 %v784
        %v1151 = vunpack.c.l.b16 %v785
        %v1152 = vunpack.c.l.b16 %v786
        %v1153 = vunpack.c.l.b16 %v787
        %v1154 = vunpack.c.l.b16 %v788
        %v1155 = vunpack.c.l.b16 %v789
        %v1156 = vunpack.c.l.b16 %v790
        %v1157 = vunpack.c.l.b16 %v791
        %v1158 = vunpack.c.l.b16 %v792
        %v1159 = vunpack.c.l.b16 %v793
        %v1160 = vunpack.c.l.b16 %v794
        %v1161 = vunpack.c.l.b16 %v795
        %v1162 = vunpack.c.l.b16 %v796
        %v1163 = vunpack.c.l.b16 %v797
        %v1164 = vunpack.c.l.b16 %v798
        %v1165 = vunpack.c.l.b16 %v799
        %v1166 = vunpack.c.l.b16 %v800
        %v1167 = vunpack.c.l.b16 %v801
        %v1168 = vunpack.c.l.b16 %v802
        %v1169 = vunpack.c.l.b16 %v803
        %v1170 = vunpack.c.l.b16 %v804
        %v1171 = vunpack.c.l.b16 %v805
        %v1172 = vunpack.c.l.b16 %v806
        %v1173 = vunpack.c.l.b16 %v807
        %v1174 = vunpack.c.l.b16 %v808
        %v1175 = vunpack.c.l.b16 %v809
        %v1176 = vunpack.c.l.b16 %v810
        %v1177 = vunpack.c.l.b16 %v811
        %v1178 = vunpack.c.l.b16 %v812
        %v1179 = vpack.c.b16 %v1036, %v1035
        %v1180 = vpack.c.b16 %v1038, %v1037
        %v1181 = vpack.c.b16 %v1040, %v1039
        %v1182 = vpack.c.b16 %v1042, %v1041
        %v1183 = vpack.c.b16 %v1044, %v1043
        %v1184 = vpack.c.b16 %v1046, %v1045
        %v1185 = vpack.c.b16 %v1048, %v1047
        %v1186 = vpack.c.b16 %v1050, %v1049
        %v1187 = vpack.c.b16 %v1052, %v1051
        %v1188 = vpack.c.b16 %v1054, %v1053
        %v1189 = vpack.c.b16 %v1056, %v1055
        %v1190 = vpack.c.b16 %v1058, %v1057
        %v1191 = vpack.c.b16 %v1060, %v1059
        %v1192 = vpack.c.b16 %v1062, %v1061
        %v1193 = vpack.c.b16 %v1064, %v1063
        %v1194 = vpack.c.b16 %v1066, %v1065
        %v1195 = vpack.c.b16 %v1068, %v1067
        %v1196 = vpack.c.b16 %v1070, %v1069
        %v1197 = vpack.c.b16 %v1072, %v1071
        %v1198 = vpack.c.b16 %v1074, %v1073
        %v1199 = vpack.c.b16 %v1076, %v1075
        %v1200 = vpack.c.b16 %v1078, %v1077
        %v1201 = vpack.c.b16 %v1080, %v1079
        %v1202 = vpack.c.b16 %v1082, %v1081
        %v1203 = vpack.c.b16 %v1084, %v1083
        %v1204 = vpack.c.b16 %v1086, %v1085
        %v1205 = vpack.c.b16 %v1088, %v1087
        %v1206 = vpack.c.b16 %v1090, %v1089
        %v1207 = vpack.c.b16 %v1092, %v1091
        %v1208 = vpack.c.b16 %v1094, %v1093
        %v1209 = vpack.c.b16 %v1096, %v1095
        %v1210 = vpack.c.b16 %v1098, %v1097
        %v1211 = vpack.c.b16 %v1100, %v1099
        %v1212 = vpack.c.b16 %v1102, %v1101
        %v1213 = vpack.c.b16 %v1104, %v1103
        %v1214 = vpack.c.b16 %v1106, %v1105
        %v1215 = vpack.c.b16 %v1108, %v1107
        %v1216 = vpack.c.b16 %v1110, %v1109
        %v1217 = vpack.c.b16 %v1112, %v1111
        %v1218 = vpack.c.b16 %v1114, %v1113
        %v1219 = vpack.c.b16 %v1116, %v1115
        %v1220 = vpack.c.b16 %v1118, %v1117
        %v1221 = vpack.c.b16 %v1120, %v1119
        %v1222 = vpack.c.b16 %v1122, %v1121
        %v1223 = vpack.c.b16 %v1124, %v1123
        %v1224 = vpack.c.b16 %v1126, %v1125
        %v1225 = vpack.c.b16 %v1128, %v1127
        %v1226 = vpack.c.b16 %v1130, %v1129
        %v1227 = vpack.c.b16 %v1132, %v1131
        %v1228 = vpack.c.b16 %v1134, %v1133
        %v1229 = vpack.c.b16 %v1136, %v1135
        %v1230 = vpack.c.b16 %v1138, %v1137
        %v1231 = vpack.c.b16 %v1140, %v1139
        %v1232 = vpack.c.b16 %v1142, %v1141
        %v1233 = vpack.c.b16 %v1144, %v1143
        %v1234 = vpack.c.b16 %v1146, %v1145
        %v1235 = vpack.c.b16 %v1148, %v1147
        %v1236 = vpack.c.b16 %v1150, %v1149
        %v1237 = vpack.c.b16 %v1152, %v1151
        %v1238 = vpack.c.b16 %v1154, %v1153
        %v1239 = vpack.c.b16 %v1156, %v1155
        %v1240 = vpack.c.b16 %v1158, %v1157
        %v1241 = vpack.c.b16 %v1160, %v1159
        %v1242 = vpack.c.b16 %v1162, %v1161
        %v1243 = vpack.c.b16 %v1164, %v1163
        %v1244 = vpack.c.b16 %v1166, %v1165
        %v1245 = vpack.c.b16 %v1168, %v1167
        %v1246 = vpack.c.b16 %v1170, %v1169
        %v1247 = vpack.c.b16 %v1172, %v1171
        %v1248 = vpack.c.b16 %v1174, %v1173
        %v1249 = vpack.c.b16 %v1176, %v1175
        %v1250 = vpack.c.b16 %v1178, %v1177
        %1323 = vmatprep.subr.bf16.mxu0 0
        %1324 = vmatpush1.bf16.msra.mxu0 %v1179
        %1325 = vmatprep.subr.bf16.mxu0 0
        %1326 = vmatpush1.bf16.msra.mxu0 %v1180
        %1327 = vmatprep.subr.bf16.mxu0 0
        %1328 = vmatpush1.bf16.msra.mxu0 %v1181
        %1329 = vmatprep.subr.bf16.mxu0 0
        %1330 = vmatpush1.bf16.msra.mxu0 %v1182
        %1331 = vmatprep.subr.bf16.mxu0 0
        %1332 = vmatpush1.bf16.msra.mxu0 %v1183
        %1333 = vmatprep.subr.bf16.mxu0 0
        %1334 = vmatpush1.bf16.msra.mxu0 %v1184
        %1335 = vmatprep.subr.bf16.mxu0 0
        %1336 = vmatpush1.bf16.msra.mxu0 %v1185
        %1337 = vmatprep.subr.bf16.mxu0 0
        %1338 = vmatpush1.bf16.msra.mxu0 %v1186
        %1339 = vmatprep.subr.bf16.mxu0 0
        %1340 = vmatpush1.bf16.msra.mxu0 %v1187
        %1341 = vmatprep.subr.bf16.mxu0 0
        %1342 = vmatpush1.bf16.msra.mxu0 %v1188
        %1343 = vmatprep.subr.bf16.mxu0 0
        %1344 = vmatpush1.bf16.msra.mxu0 %v1189
        %1345 = vmatprep.subr.bf16.mxu0 0
        %1346 = vmatpush1.bf16.msra.mxu0 %v1190
        %1347 = vmatprep.subr.bf16.mxu0 0
        %1348 = vmatpush1.bf16.msra.mxu0 %v1191
        %1349 = vmatprep.subr.bf16.mxu0 0
        %1350 = vmatpush1.bf16.msra.mxu0 %v1192
        %1351 = vmatprep.subr.bf16.mxu0 0
        %1352 = vmatpush1.bf16.msra.mxu0 %v1193
        %1353 = vmatprep.subr.bf16.mxu0 0
        %1354 = vmatpush1.bf16.msra.mxu0 %v1194
        %1355 = vmatprep.mubr.bf16.mxu0 %v856
        %1356 = vmatmul.mubr.bf16.gmra.mrb[0].mxu0 %v855
        %v1357 = vpop.f32.mrb[0].mxu0
        %v1358 = vadd.f32 0.0, %v1357
        %v1359 = vpop.f32.mrb[0].mxu0
        %v1360 = vpop.f32.mrb[0].mxu0
        %v1361 = vadd.f32 0.0, %v1360
        %v1362 = vpop.f32.mrb[0].mxu0
        %1363 = vmatprep.mubr.bf16.mxu0 %v865
        %1364 = vmatmul.mubr.bf16.gmra.mrb[0].mxu0 %v864
        %v1365 = vpop.f32.mrb[0].mxu0
        %v1366 = vadd.f32 0.0, %v1365
        %v1367 = vpop.f32.mrb[0].mxu0
        %v1368 = vpop.f32.mrb[0].mxu0
        %v1369 = vpop.f32.mrb[0].mxu0
        %1370 = vdwg.mxu0
        %1371 = vmatprep.subr.bf16.mxu0 0
        %1372 = vmatpush1.bf16.msra.mxu0 %v1195
        %1373 = vmatprep.subr.bf16.mxu0 0
        %1374 = vmatpush1.bf16.msra.mxu0 %v1196
        %1375 = vmatprep.subr.bf16.mxu0 0
        %1376 = vmatpush1.bf16.msra.mxu0 %v1197
        %1377 = vmatprep.subr.bf16.mxu0 0
        %1378 = vmatpush1.bf16.msra.mxu0 %v1198
        %1379 = vmatprep.subr.bf16.mxu0 0
        %1380 = vmatpush1.bf16.msra.mxu0 %v1199
        %1381 = vmatprep.subr.bf16.mxu0 0
        %1382 = vmatpush1.bf16.msra.mxu0 %v1200
        %1383 = vmatprep.subr.bf16.mxu0 0
        %1384 = vmatpush1.bf16.msra.mxu0 %v1201
        %1385 = vmatprep.subr.bf16.mxu0 0
        %1386 = vmatpush1.bf16.msra.mxu0 %v1202
        %1387 = vmatprep.subr.bf16.mxu0 0
        %1388 = vmatpush1.bf16.msra.mxu0 %v1203
        %1389 = vmatprep.subr.bf16.mxu0 0
        %1390 = vmatpush1.bf16.msra.mxu0 %v1204
        %1391 = vmatprep.subr.bf16.mxu0 0
        %1392 = vmatpush1.bf16.msra.mxu0 %v1205
        %1393 = vmatprep.subr.bf16.mxu0 0
        %1394 = vmatpush1.bf16.msra.mxu0 %v1206
        %1395 = vmatprep.subr.bf16.mxu0 0
        %1396 = vmatpush1.bf16.msra.mxu0 %v1207
        %1397 = vmatprep.subr.bf16.mxu0 0
        %1398 = vmatpush1.bf16.msra.mxu0 %v1208
        %1399 = vmatprep.subr.bf16.mxu0 0
        %1400 = vmatpush1.bf16.msra.mxu0 %v1209
        %1401 = vmatprep.subr.bf16.mxu0 0
        %1402 = vmatpush1.bf16.msra.mxu0 %v1210
        %1403 = vmatprep.mubr.bf16.mxu0 %v858
        %1404 = vmatmul.mubr.bf16.gmra.mrb[0].mxu0 %v857
        %v1405 = vpop.f32.mrb[0].mxu0
        %v1406 = vadd.f32 %v1358, %v1405
        %v1407 = vpop.f32.mrb[0].mxu0
        %v1408 = vpop.f32.mrb[0].mxu0
        %v1409 = vadd.f32 %v1361, %v1408
        %v1410 = vpop.f32.mrb[0].mxu0
        %1411 = vmatprep.mubr.bf16.mxu0 %v867
        %1412 = vmatmul.mubr.bf16.gmra.mrb[0].mxu0 %v866
        %v1413 = vpop.f32.mrb[0].mxu0
        %v1414 = vadd.f32 %v1366, %v1413
        %v1415 = vpop.f32.mrb[0].mxu0
        %v1416 = vpop.f32.mrb[0].mxu0
        %v1417 = vpop.f32.mrb[0].mxu0
        %1418 = vdwg.mxu0
        %1419 = vmatprep.subr.bf16.mxu0 0
        %1420 = vmatpush1.bf16.msra.mxu0 %v1211
        %1421 = vmatprep.subr.bf16.mxu0 0
        %1422 = vmatpush1.bf16.msra.mxu0 %v1212
        %1423 = vmatprep.subr.bf16.mxu0 0
        %1424 = vmatpush1.bf16.msra.mxu0 %v1213
        %1425 = vmatprep.subr.bf16.mxu0 0
        %1426 = vmatpush1.bf16.msra.mxu0 %v1214
        %1427 = vmatprep.subr.bf16.mxu0 0
        %1428 = vmatpush1.bf16.msra.mxu0 %v1215
        %1429 = vmatprep.subr.bf16.mxu0 0
        %1430 = vmatpush1.bf16.msra.mxu0 %v1216
        %1431 = vmatprep.subr.bf16.mxu0 0
        %1432 = vmatpush1.bf16.msra.mxu0 %v1217
        %1433 = vmatprep.subr.bf16.mxu0 0
        %1434 = vmatpush1.bf16.msra.mxu0 %v1218
        %1435 = vmatprep.subr.bf16.mxu0 0
        %1436 = vmatpush1.bf16.msra.mxu0 %v1219
        %1437 = vmatprep.subr.bf16.mxu0 0
        %1438 = vmatpush1.bf16.msra.mxu0 %v1220
        %1439 = vmatprep.subr.bf16.mxu0 0
        %1440 = vmatpush1.bf16.msra.mxu0 %v1221
        %1441 = vmatprep.subr.bf16.mxu0 0
        %1442 = vmatpush1.bf16.msra.mxu0 %v1222
        %1443 = vmatprep.subr.bf16.mxu0 0
        %1444 = vmatpush1.bf16.msra.mxu0 %v1223
        %1445 = vmatprep.subr.bf16.mxu0 0
        %1446 = vmatpush1.bf16.msra.mxu0 %v1224
        %1447 = vmatprep.subr.bf16.mxu0 0
        %1448 = vmatpush1.bf16.msra.mxu0 %v1225
        %1449 = vmatprep.subr.bf16.mxu0 0
        %1450 = vmatpush1.bf16.msra.mxu0 %v1226
        %1451 = vmatprep.mubr.bf16.mxu0 %v860
        %1452 = vmatmul.mubr.bf16.gmra.mrb[0].mxu0 %v859
        %v1453 = vpop.f32.mrb[0].mxu0
        %v1454 = vadd.f32 %v1406, %v1453
        %v1455 = vpop.f32.mrb[0].mxu0
        %v1456 = vpop.f32.mrb[0].mxu0
        %v1457 = vadd.f32 %v1409, %v1456
        %v1458 = vpop.f32.mrb[0].mxu0
        %1459 = vmatprep.mubr.bf16.mxu0 %v869
        %1460 = vmatmul.mubr.bf16.gmra.mrb[0].mxu0 %v868
        %v1461 = vpop.f32.mrb[0].mxu0
        %v1462 = vadd.f32 %v1414, %v1461
        %v1463 = vpop.f32.mrb[0].mxu0
        %v1464 = vpop.f32.mrb[0].mxu0
        %v1465 = vpop.f32.mrb[0].mxu0
        %1466 = vdwg.mxu0
        %1467 = vmatprep.subr.bf16.mxu0 0
        %1468 = vmatpush1.bf16.msra.mxu0 %v1227
        %1469 = vmatprep.subr.bf16.mxu0 0
        %1470 = vmatpush1.bf16.msra.mxu0 %v1228
        %1471 = vmatprep.subr.bf16.mxu0 0
        %1472 = vmatpush1.bf16.msra.mxu0 %v1229
        %1473 = vmatprep.subr.bf16.mxu0 0
        %1474 = vmatpush1.bf16.msra.mxu0 %v1230
        %1475 = vmatprep.subr.bf16.mxu0 0
        %1476 = vmatpush1.bf16.msra.mxu0 %v1231
        %1477 = vmatprep.subr.bf16.mxu0 0
        %1478 = vmatpush1.bf16.msra.mxu0 %v1232
        %1479 = vmatprep.subr.bf16.mxu0 0
        %1480 = vmatpush1.bf16.msra.mxu0 %v1233
        %1481 = vmatprep.subr.bf16.mxu0 0
        %1482 = vmatpush1.bf16.msra.mxu0 %v1234
        %1483 = vmatprep.subr.bf16.mxu0 0
        %1484 = vmatpush1.bf16.msra.mxu0 %v1235
        %1485 = vmatprep.subr.bf16.mxu0 0
        %1486 = vmatpush1.bf16.msra.mxu0 %v1236
        %1487 = vmatprep.subr.bf16.mxu0 0
        %1488 = vmatpush1.bf16.msra.mxu0 %v1237
        %1489 = vmatprep.subr.bf16.mxu0 0
        %1490 = vmatpush1.bf16.msra.mxu0 %v1238
        %1491 = vmatprep.subr.bf16.mxu0 0
        %1492 = vmatpush1.bf16.msra.mxu0 %v1239
        %1493 = vmatprep.subr.bf16.mxu0 0
        %1494 = vmatpush1.bf16.msra.mxu0 %v1240
        %1495 = vmatprep.subr.bf16.mxu0 0
        %1496 = vmatpush1.bf16.msra.mxu0 %v1241
        %1497 = vmatprep.subr.bf16.mxu0 0
        %1498 = vmatpush1.bf16.msra.mxu0 %v1242
        %1499 = vmatprep.mubr.bf16.mxu0 %v862
        %1500 = vmatmul.mubr.bf16.gmra.mrb[0].mxu0 %v861
        %v1501 = vpop.f32.mrb[0].mxu0
        %v1502 = vadd.f32 %v1454, %v1501
        %v1503 = vpop.f32.mrb[0].mxu0
        %v1504 = vpop.f32.mrb[0].mxu0
        %v1505 = vadd.f32 %v1457, %v1504
        %v1506 = vpop.f32.mrb[0].mxu0
        %1507 = vmatprep.mubr.bf16.mxu0 %v871
        %1508 = vmatmul.mubr.bf16.gmra.mrb[0].mxu0 %v870
        %v1509 = vpop.f32.mrb[0].mxu0
        %v1510 = vadd.f32 %v1462, %v1509
        %v1511 = vpop.f32.mrb[0].mxu0
        %v1512 = vpop.f32.mrb[0].mxu0
        %v1513 = vpop.f32.mrb[0].mxu0
        %1514 = vdwg.mxu0
        %1515 = vmatprep.subr.bf16.mxu0 0
        %1516 = vmatpush1.bf16.msra.mxu0 %v1243
        %1517 = vmatprep.subr.bf16.mxu0 0
        %1518 = vmatpush1.bf16.msra.mxu0 %v1244
        %1519 = vmatprep.subr.bf16.mxu0 0
        %1520 = vmatpush1.bf16.msra.mxu0 %v1245
        %1521 = vmatprep.subr.bf16.mxu0 0
        %1522 = vmatpush1.bf16.msra.mxu0 %v1246
        %1523 = vmatprep.subr.bf16.mxu0 0
        %1524 = vmatpush1.bf16.msra.mxu0 %v1247
        %1525 = vmatprep.subr.bf16.mxu0 0
        %1526 = vmatpush1.bf16.msra.mxu0 %v1248
        %1527 = vmatprep.subr.bf16.mxu0 0
        %1528 = vmatpush1.bf16.msra.mxu0 %v1249
        %1529 = vmatprep.subr.bf16.mxu0 0
        %1530 = vmatpush1.bf16.msra.mxu0 %v1250
        %1531 = vmatprep.subr.bf16.mxu0 0
        %1532 = vmatpush1.bf16.msra.mxu0 0
        %1533 = vmatprep.subr.bf16.mxu0 0
        %1534 = vmatpush1.bf16.msra.mxu0 0
        %1535 = vmatprep.subr.bf16.mxu0 0
        %1536 = vmatpush1.bf16.msra.mxu0 0
        %1537 = vmatprep.subr.bf16.mxu0 0
        %1538 = vmatpush1.bf16.msra.mxu0 0
        %1539 = vmatprep.subr.bf16.mxu0 0
        %1540 = vmatpush1.bf16.msra.mxu0 0
        %1541 = vmatprep.subr.bf16.mxu0 0
        %1542 = vmatpush1.bf16.msra.mxu0 0
        %1543 = vmatprep.subr.bf16.mxu0 0
        %1544 = vmatpush1.bf16.msra.mxu0 0
        %1545 = vmatprep.subr.bf16.mxu0 0
        %1546 = vmatpush1.bf16.msra.mxu0 0
        %1547 = vmatprep.mubr.bf16.mxu0 0
        %1548 = vmatmul.mubr.bf16.gmra.mrb[0].mxu0 %v863
        %v1549 = vpop.f32.mrb[0].mxu0
        %v1550 = vadd.f32 %v1502, %v1549
        %v1551 = vpop.f32.mrb[0].mxu0
        %v1552 = vpop.f32.mrb[0].mxu0
        %v1553 = vadd.f32 %v1505, %v1552
        %v1554 = vpop.f32.mrb[0].mxu0
        %1555 = vmatprep.mubr.bf16.mxu0 0
        %1556 = vmatmul.mubr.bf16.gmra.mrb[0].mxu0 %v872
        %v1557 = vpop.f32.mrb[0].mxu0
        %v1558 = vadd.f32 %v1510, %v1557
        %v1559 = vpop.f32.mrb[0].mxu0
        %v1560 = vpop.f32.mrb[0].mxu0
        %v1561 = vpop.f32.mrb[0].mxu0
        %1562 = vdwg.mxu0
        %s1563 = sadd.s32 %s388, 4294967292
        %v1564 = vstv %s1563
        %v1565 = vadd.s32 %v1564, %v395
        %v1566 = vadd.s32 %v1564, %v396
        %v1567 = vadd.s32 %v1564, %v397
        %vm1568 = vcmp.ge.s32.totalorder %v1565, 0
        %vm1569 = vcmp.ge.s32.totalorder %v1566, 0
        %vm1570 = vcmp.ge.s32.totalorder %v1567, 0
        %vm1571 = vcmp.lt.s32.totalorder %v1565, 16
        %vm1572 = vcmp.lt.s32.totalorder %v1566, 16
        %vm1573 = vcmp.lt.s32.totalorder %v1567, 16
        %vm1574 = vmand %vm1568, %vm1571
        %vm1575 = vmand %vm1569, %vm1572
        %vm1576 = vmand %vm1570, %vm1573
        %v1577 = vld [vmem:[%s4] sm:$0x1]
        %v1579 = vlaneseq
        %v1580 = vshrl.u32 %v1579, 7
        %v1581 = vsub.s32 0, %v1580
        %v1582 = vrot.slane %v1577, %v1581
        %v1584 = vmul.f32 %v1550, %v1582
        %v1585 = vmul.f32 %v1553, %v1582
        %v1586 = vmul.f32 %v1558, %v1582
        %v1587 = vld [vmem:[%s5] sm:$0x1]
        %v1589 = vlaneseq
        %v1590 = vshrl.u32 %v1589, 7
        %v1591 = vsub.s32 0, %v1590
        %v1592 = vrot.slane %v1587, %v1591
        %v1594 = vadd.f32 %v1584, %v1592
        %v1595 = vadd.f32 %v1585, %v1592
        %v1596 = vadd.f32 %v1586, %v1592
        %v1597 = vmax.f32 %v1594, 0.0
        %v1598 = vmax.f32 %v1595, 0.0
        %v1599 = vmax.f32 %v1596, 0.0
        %v1600 = vsel %vm1574, 1, 0
        %v1601 = vsel %vm1575, 1, 0
        %v1602 = vsel %vm1576, 1, 0
        %vm1603 = vcmp.eq.s32.totalorder %v1600, 1
        %vm1604 = vcmp.eq.s32.totalorder %v1601, 1
        %vm1605 = vcmp.eq.s32.totalorder %v1602, 1
        %v1606 = vsel %vm1603, %v1597, 0.0
        %v1607 = vsel %vm1604, %v1598, 0.0
        %v1608 = vsel %vm1605, %v1599, 0.0
        %v1609 = vpack.c.bf16 %v1607, %v1606
        %v1610 = vpack.c.bf16 %v1608, %v1608
        %1611 = vst [vmem:[#allocation3] sm:$0xff] %v1609
        %vm1612 = vsmask.f32 7424
        %v1614 = vshrl.u32 %v1609, 16
        %v1616 = vshll.u32 %v1609, 16
        %v1618 = vrot.slane %v1616, 1
        %v1619 = vor.u32 %v1614, %v1618
        %v1621 = vshll.u32 %v1610, 16
        %v1623 = vrot.slane %v1621, 1
        %v1624 = vsel %vm1612, %v1619, %v1623
        %1626 = vst [vmem:[#allocation3 + $0x8] sm:$0xff] %v1624
        %vm1629 = vcmask 1046528
        %v1630 = vrot.slane %v1609, 1
        %v1631 = vrot.slane %v1610, 1
        %v1632 = vsel %vm1629, %v1630, %v1631
        %1634 = vst [vmem:[#allocation3 + $0x10] sm:$0xff] %v1632
        %vm1635 = vsmask.f32 6400
        %v1636 = vrot.slane %v1614, 1
        %v1637 = vrot.slane %v1616, 2
        %v1638 = vor.u32 %v1636, %v1637
        %v1639 = vshrl.u32 %v1610, 16
        %v1641 = vrot.slane %v1639, 1
        %v1642 = vrot.slane %v1621, 2
        %v1643 = vor.u32 %v1641, %v1642
        %v1644 = vsel %vm1635, %v1638, %v1643
        %1646 = vst [vmem:[#allocation3 + $0x18] sm:$0xff] %v1644
        %vm1647 = vcmask 1045504
        %v1648 = vrot.slane %v1609, 2
        %v1649 = vrot.slane %v1610, 2
        %v1650 = vsel %vm1647, %v1648, %v1649
        %1652 = vst [vmem:[#allocation3 + $0x20] sm:$0xff] %v1650
        %vm1653 = vsmask.f32 5376
        %v1654 = vrot.slane %v1614, 2
        %v1655 = vrot.slane %v1616, 3
        %v1656 = vor.u32 %v1654, %v1655
        %v1657 = vrot.slane %v1639, 2
        %v1658 = vrot.slane %v1621, 3
        %v1659 = vor.u32 %v1657, %v1658
        %v1660 = vsel %vm1653, %v1656, %v1659
        %1662 = vst [vmem:[#allocation3 + $0x28] sm:$0xff] %v1660
        %vm1663 = vcmask 1044480
        %v1664 = vrot.slane %v1609, 3
        %v1665 = vrot.slane %v1610, 3
        %v1666 = vsel %vm1663, %v1664, %v1665
        %1668 = vst [vmem:[#allocation3 + $0x30] sm:$0xff] %v1666
        %vm1669 = vsmask.f32 4352
        %v1670 = vrot.slane %v1614, 3
        %v1671 = vrot.slane %v1616, 4
        %v1672 = vor.u32 %v1670, %v1671
        %v1673 = vrot.slane %v1639, 3
        %v1674 = vrot.slane %v1621, 4
        %v1675 = vor.u32 %v1673, %v1674
        %v1676 = vsel %vm1669, %v1672, %v1675
        %1678 = vst [vmem:[#allocation3 + $0x38] sm:$0xff] %v1676
        %vm1679 = vcmask 1043456
        %v1680 = vrot.slane %v1609, 4
        %v1681 = vrot.slane %v1610, 4
        %v1682 = vsel %vm1679, %v1680, %v1681
        %1684 = vst [vmem:[#allocation3 + $0x40] sm:$0xff] %v1682
        %v1685 = vld [vmem:[#allocation3] sm:$0xff]
        %v1686 = vld [vmem:[#allocation3 + $0x8] sm:$0xff]
        %v1687 = vld [vmem:[#allocation3 + $0x10] sm:$0xff]
        %v1688 = vld [vmem:[#allocation3 + $0x18] sm:$0xff]
        %v1689 = vld [vmem:[#allocation3 + $0x20] sm:$0xff]
        %v1690 = vld [vmem:[#allocation3 + $0x28] sm:$0xff]
        %v1691 = vld [vmem:[#allocation3 + $0x30] sm:$0xff]
        %v1692 = vld [vmem:[#allocation3 + $0x38] sm:$0xff]
        %v1693 = vld [vmem:[#allocation3 + $0x40] sm:$0xff]
        %v1694 = vld [vmem:[#allocation9] sm:$0xf]
        %v1695 = vld [vmem:[#allocation9 + $0x4] sm:$0xf]
        %v1696 = vld [vmem:[#allocation9 + $0x8] sm:$0xf]
        %v1697 = vld [vmem:[#allocation9 + $0xc] sm:$0xf]
        %v1698 = vld [vmem:[#allocation9 + $0x10] sm:$0xf]
        %v1699 = vld [vmem:[#allocation9 + $0x14] sm:$0xf]
        %v1700 = vld [vmem:[#allocation9 + $0x18] sm:$0xf]
        %v1701 = vld [vmem:[#allocation9 + $0x1c] sm:$0xf]
        %v1702 = vld [vmem:[#allocation9 + $0x20] sm:$0xf]
        %v1703 = vld [vmem:[#allocation9 + $0x24] sm:$0xf]
        %v1704 = vld [vmem:[#allocation9 + $0x28] sm:$0xf]
        %v1705 = vld [vmem:[#allocation9 + $0x2c] sm:$0xf]
        %v1706 = vld [vmem:[#allocation9 + $0x30] sm:$0xf]
        %v1707 = vld [vmem:[#allocation9 + $0x34] sm:$0xf]
        %v1708 = vld [vmem:[#allocation9 + $0x38] sm:$0xf]
        %v1709 = vld [vmem:[#allocation9 + $0x3c] sm:$0xf]
        %v1710 = vld [vmem:[#allocation9 + $0x40] sm:$0xf]
        %v1711 = vld [vmem:[#allocation9 + $0x44] sm:$0xf]
        %v1712 = vld [vmem:[#allocation9 + $0x48] sm:$0xf]
        %v1713 = vld [vmem:[#allocation9 + $0x4c] sm:$0xf]
        %v1714 = vld [vmem:[#allocation9 + $0x50] sm:$0xf]
        %v1715 = vld [vmem:[#allocation9 + $0x54] sm:$0xf]
        %v1716 = vld [vmem:[#allocation9 + $0x58] sm:$0xf]
        %v1717 = vld [vmem:[#allocation9 + $0x5c] sm:$0xf]
        %v1718 = vld [vmem:[#allocation9 + $0x60] sm:$0xf]
        %v1719 = vld [vmem:[#allocation9 + $0x64] sm:$0xf]
        %v1720 = vld [vmem:[#allocation9 + $0x68] sm:$0xf]
        %v1721 = vld [vmem:[#allocation9 + $0x6c] sm:$0xf]
        %v1722 = vld [vmem:[#allocation9 + $0x70] sm:$0xf]
        %v1723 = vld [vmem:[#allocation9 + $0x74] sm:$0xf]
        %v1724 = vld [vmem:[#allocation9 + $0x78] sm:$0xf]
        %v1725 = vld [vmem:[#allocation9 + $0x7c] sm:$0xf]
        %v1726 = vld [vmem:[#allocation9 + $0x80] sm:$0xf]
        %v1727 = vld [vmem:[#allocation9 + $0x84] sm:$0xf]
        %v1728 = vld [vmem:[#allocation9 + $0x88] sm:$0xf]
        %v1729 = vld [vmem:[#allocation9 + $0x8c] sm:$0xf]
        %v1730 = vld [vmem:[#allocation9 + $0x90] sm:$0xf]
        %v1731 = vld [vmem:[#allocation9 + $0x94] sm:$0xf]
        %v1732 = vld [vmem:[#allocation9 + $0x98] sm:$0xf]
        %v1733 = vld [vmem:[#allocation9 + $0x9c] sm:$0xf]
        %v1734 = vld [vmem:[#allocation9 + $0xa0] sm:$0xf]
        %v1735 = vld [vmem:[#allocation9 + $0xa4] sm:$0xf]
        %v1736 = vld [vmem:[#allocation9 + $0xa8] sm:$0xf]
        %v1737 = vld [vmem:[#allocation9 + $0xac] sm:$0xf]
        %v1738 = vld [vmem:[#allocation9 + $0xb0] sm:$0xf]
        %v1739 = vld [vmem:[#allocation9 + $0xb4] sm:$0xf]
        %v1740 = vld [vmem:[#allocation9 + $0xb8] sm:$0xf]
        %v1741 = vld [vmem:[#allocation9 + $0xbc] sm:$0xf]
        %v1742 = vld [vmem:[#allocation9 + $0xc0] sm:$0xf]
        %v1743 = vld [vmem:[#allocation9 + $0xc4] sm:$0xf]
        %v1744 = vld [vmem:[#allocation9 + $0xc8] sm:$0xf]
        %v1745 = vld [vmem:[#allocation9 + $0xcc] sm:$0xf]
        %v1746 = vld [vmem:[#allocation9 + $0xd0] sm:$0xf]
        %v1747 = vld [vmem:[#allocation9 + $0xd4] sm:$0xf]
        %v1748 = vld [vmem:[#allocation9 + $0xd8] sm:$0xf]
        %v1749 = vld [vmem:[#allocation9 + $0xdc] sm:$0xf]
        %v1750 = vld [vmem:[#allocation9 + $0xe0] sm:$0xf]
        %v1751 = vld [vmem:[#allocation9 + $0xe4] sm:$0xf]
        %v1752 = vld [vmem:[#allocation9 + $0xe8] sm:$0xf]
        %v1753 = vld [vmem:[#allocation9 + $0xec] sm:$0xf]
        %v1754 = vld [vmem:[#allocation9 + $0xf0] sm:$0xf]
        %v1755 = vld [vmem:[#allocation9 + $0xf4] sm:$0xf]
        %v1756 = vld [vmem:[#allocation9 + $0xf8] sm:$0xf]
        %v1757 = vld [vmem:[#allocation9 + $0xfc] sm:$0xf]
        %v1758 = vld [vmem:[#allocation9 + $0x100] sm:$0xf]
        %v1759 = vld [vmem:[#allocation9 + $0x104] sm:$0xf]
        %v1760 = vld [vmem:[#allocation9 + $0x108] sm:$0xf]
        %v1761 = vld [vmem:[#allocation9 + $0x10c] sm:$0xf]
        %v1762 = vld [vmem:[#allocation9 + $0x110] sm:$0xf]
        %v1763 = vld [vmem:[#allocation9 + $0x114] sm:$0xf]
        %v1764 = vld [vmem:[#allocation9 + $0x118] sm:$0xf]
        %v1765 = vld [vmem:[#allocation9 + $0x11c] sm:$0xf]
        %v1766 = vld [vmem:[#allocation9 + $0x120] sm:$0xf]
        %v1767 = vld [vmem:[#allocation9 + $0x124] sm:$0xf]
        %v1768 = vld [vmem:[#allocation9 + $0x128] sm:$0xf]
        %v1769 = vld [vmem:[#allocation9 + $0x12c] sm:$0xf]
        %v1770 = vld [vmem:[#allocation9 + $0x130] sm:$0xf]
        %v1771 = vld [vmem:[#allocation9 + $0x134] sm:$0xf]
        %v1772 = vld [vmem:[#allocation9 + $0x138] sm:$0xf]
        %v1773 = vld [vmem:[#allocation9 + $0x13c] sm:$0xf]
        %v1774 = vld [vmem:[#allocation9 + $0x140] sm:$0xf]
        %v1775 = vld [vmem:[#allocation9 + $0x144] sm:$0xf]
        %v1776 = vld [vmem:[#allocation9 + $0x148] sm:$0xf]
        %v1777 = vld [vmem:[#allocation9 + $0x14c] sm:$0xf]
        %v1778 = vld [vmem:[#allocation9 + $0x150] sm:$0xf]
        %v1779 = vld [vmem:[#allocation9 + $0x154] sm:$0xf]
        %v1780 = vld [vmem:[#allocation9 + $0x158] sm:$0xf]
        %v1781 = vld [vmem:[#allocation9 + $0x15c] sm:$0xf]
        %v1782 = vld [vmem:[#allocation9 + $0x160] sm:$0xf]
        %v1783 = vld [vmem:[#allocation9 + $0x164] sm:$0xf]
        %v1784 = vld [vmem:[#allocation9 + $0x168] sm:$0xf]
        %v1785 = vld [vmem:[#allocation9 + $0x16c] sm:$0xf]
        %v1786 = vld [vmem:[#allocation9 + $0x170] sm:$0xf]
        %v1787 = vld [vmem:[#allocation9 + $0x174] sm:$0xf]
        %v1788 = vld [vmem:[#allocation9 + $0x178] sm:$0xf]
        %v1789 = vld [vmem:[#allocation9 + $0x17c] sm:$0xf]
        %v1790 = vld [vmem:[#allocation9 + $0x180] sm:$0xf]
        %v1791 = vld [vmem:[#allocation9 + $0x184] sm:$0xf]
        %v1792 = vld [vmem:[#allocation9 + $0x188] sm:$0xf]
        %v1793 = vld [vmem:[#allocation9 + $0x18c] sm:$0xf]
        %v1794 = vld [vmem:[#allocation9 + $0x190] sm:$0xf]
        %v1795 = vld [vmem:[#allocation9 + $0x194] sm:$0xf]
        %v1796 = vld [vmem:[#allocation9 + $0x198] sm:$0xf]
        %v1797 = vld [vmem:[#allocation9 + $0x19c] sm:$0xf]
        %v1798 = vld [vmem:[#allocation9 + $0x1a0] sm:$0xf]
        %v1799 = vld [vmem:[#allocation9 + $0x1a4] sm:$0xf]
        %v1800 = vld [vmem:[#allocation9 + $0x1a8] sm:$0xf]
        %v1801 = vld [vmem:[#allocation9 + $0x1ac] sm:$0xf]
        %v1802 = vld [vmem:[#allocation9 + $0x1b0] sm:$0xf]
        %v1803 = vld [vmem:[#allocation9 + $0x1b4] sm:$0xf]
        %v1804 = vld [vmem:[#allocation9 + $0x1b8] sm:$0xf]
        %v1805 = vld [vmem:[#allocation9 + $0x1bc] sm:$0xf]
        %v1806 = vld [vmem:[#allocation9 + $0x1c0] sm:$0xf]
        %v1807 = vld [vmem:[#allocation9 + $0x1c4] sm:$0xf]
        %v1808 = vld [vmem:[#allocation9 + $0x1c8] sm:$0xf]
        %v1809 = vld [vmem:[#allocation9 + $0x1cc] sm:$0xf]
        %v1810 = vld [vmem:[#allocation9 + $0x1d0] sm:$0xf]
        %v1811 = vld [vmem:[#allocation9 + $0x1d4] sm:$0xf]
        %v1812 = vld [vmem:[#allocation9 + $0x1d8] sm:$0xf]
        %v1813 = vld [vmem:[#allocation9 + $0x1dc] sm:$0xf]
        %v1814 = vld [vmem:[#allocation9 + $0x1e0] sm:$0xf]
        %v1815 = vld [vmem:[#allocation9 + $0x1e4] sm:$0xf]
        %v1816 = vld [vmem:[#allocation9 + $0x1e8] sm:$0xf]
        %v1817 = vld [vmem:[#allocation9 + $0x1ec] sm:$0xf]
        %v1818 = vld [vmem:[#allocation9 + $0x1f0] sm:$0xf]
        %v1819 = vld [vmem:[#allocation9 + $0x1f4] sm:$0xf]
        %v1820 = vld [vmem:[#allocation9 + $0x1f8] sm:$0xf]
        %v1821 = vld [vmem:[#allocation9 + $0x1fc] sm:$0xf]
        %v1822 = vld [vmem:[#allocation9 + $0x200] sm:$0xf]
        %v1823 = vld [vmem:[#allocation9 + $0x204] sm:$0xf]
        %v1824 = vld [vmem:[#allocation9 + $0x208] sm:$0xf]
        %v1825 = vld [vmem:[#allocation9 + $0x20c] sm:$0xf]
        %v1826 = vld [vmem:[#allocation9 + $0x210] sm:$0xf]
        %v1827 = vld [vmem:[#allocation9 + $0x214] sm:$0xf]
        %v1828 = vld [vmem:[#allocation9 + $0x218] sm:$0xf]
        %v1829 = vld [vmem:[#allocation9 + $0x21c] sm:$0xf]
        %v1830 = vld [vmem:[#allocation9 + $0x220] sm:$0xf]
        %v1831 = vld [vmem:[#allocation9 + $0x224] sm:$0xf]
        %v1832 = vld [vmem:[#allocation9 + $0x228] sm:$0xf]
        %v1833 = vld [vmem:[#allocation9 + $0x22c] sm:$0xf]
        %v1834 = vld [vmem:[#allocation9 + $0x230] sm:$0xf]
        %v1835 = vld [vmem:[#allocation9 + $0x234] sm:$0xf]
        %v1836 = vld [vmem:[#allocation9 + $0x238] sm:$0xf]
        %v1837 = vld [vmem:[#allocation9 + $0x23c] sm:$0xf]
        %v1982 = vunpack.c.l.b16 %v1694
        %v1983 = vunpack.c.l.b16 %v1695
        %v1984 = vunpack.c.l.b16 %v1696
        %v1985 = vunpack.c.l.b16 %v1697
        %v1986 = vunpack.c.l.b16 %v1698
        %v1987 = vunpack.c.l.b16 %v1699
        %v1988 = vunpack.c.l.b16 %v1700
        %v1989 = vunpack.c.l.b16 %v1701
        %v1990 = vunpack.c.l.b16 %v1702
        %v1991 = vunpack.c.l.b16 %v1703
        %v1992 = vunpack.c.l.b16 %v1704
        %v1993 = vunpack.c.l.b16 %v1705
        %v1994 = vunpack.c.l.b16 %v1706
        %v1995 = vunpack.c.l.b16 %v1707
        %v1996 = vunpack.c.l.b16 %v1708
        %v1997 = vunpack.c.l.b16 %v1709
        %v1998 = vunpack.c.l.b16 %v1710
        %v1999 = vunpack.c.l.b16 %v1711
        %v2000 = vunpack.c.l.b16 %v1712
        %v2001 = vunpack.c.l.b16 %v1713
        %v2002 = vunpack.c.l.b16 %v1714
        %v2003 = vunpack.c.l.b16 %v1715
        %v2004 = vunpack.c.l.b16 %v1716
        %v2005 = vunpack.c.l.b16 %v1717
        %v2006 = vunpack.c.l.b16 %v1718
        %v2007 = vunpack.c.l.b16 %v1719
        %v2008 = vunpack.c.l.b16 %v1720
        %v2009 = vunpack.c.l.b16 %v1721
        %v2010 = vunpack.c.l.b16 %v1722
        %v2011 = vunpack.c.l.b16 %v1723
        %v2012 = vunpack.c.l.b16 %v1724
        %v2013 = vunpack.c.l.b16 %v1725
        %v2014 = vunpack.c.l.b16 %v1726
        %v2015 = vunpack.c.l.b16 %v1727
        %v2016 = vunpack.c.l.b16 %v1728
        %v2017 = vunpack.c.l.b16 %v1729
        %v2018 = vunpack.c.l.b16 %v1730
        %v2019 = vunpack.c.l.b16 %v1731
        %v2020 = vunpack.c.l.b16 %v1732
        %v2021 = vunpack.c.l.b16 %v1733
        %v2022 = vunpack.c.l.b16 %v1734
        %v2023 = vunpack.c.l.b16 %v1735
        %v2024 = vunpack.c.l.b16 %v1736
        %v2025 = vunpack.c.l.b16 %v1737
        %v2026 = vunpack.c.l.b16 %v1738
        %v2027 = vunpack.c.l.b16 %v1739
        %v2028 = vunpack.c.l.b16 %v1740
        %v2029 = vunpack.c.l.b16 %v1741
        %v2030 = vunpack.c.l.b16 %v1742
        %v2031 = vunpack.c.l.b16 %v1743
        %v2032 = vunpack.c.l.b16 %v1744
        %v2033 = vunpack.c.l.b16 %v1745
        %v2034 = vunpack.c.l.b16 %v1746
        %v2035 = vunpack.c.l.b16 %v1747
        %v2036 = vunpack.c.l.b16 %v1748
        %v2037 = vunpack.c.l.b16 %v1749
        %v2038 = vunpack.c.l.b16 %v1750
        %v2039 = vunpack.c.l.b16 %v1751
        %v2040 = vunpack.c.l.b16 %v1752
        %v2041 = vunpack.c.l.b16 %v1753
        %v2042 = vunpack.c.l.b16 %v1754
        %v2043 = vunpack.c.l.b16 %v1755
        %v2044 = vunpack.c.l.b16 %v1756
        %v2045 = vunpack.c.l.b16 %v1757
        %v2046 = vunpack.c.l.b16 %v1758
        %v2047 = vunpack.c.l.b16 %v1759
        %v2048 = vunpack.c.l.b16 %v1760
        %v2049 = vunpack.c.l.b16 %v1761
        %v2050 = vunpack.c.l.b16 %v1762
        %v2051 = vunpack.c.l.b16 %v1763
        %v2052 = vunpack.c.l.b16 %v1764
        %v2053 = vunpack.c.l.b16 %v1765
        %v2054 = vunpack.c.l.b16 %v1766
        %v2055 = vunpack.c.l.b16 %v1767
        %v2056 = vunpack.c.l.b16 %v1768
        %v2057 = vunpack.c.l.b16 %v1769
        %v2058 = vunpack.c.l.b16 %v1770
        %v2059 = vunpack.c.l.b16 %v1771
        %v2060 = vunpack.c.l.b16 %v1772
        %v2061 = vunpack.c.l.b16 %v1773
        %v2062 = vunpack.c.l.b16 %v1774
        %v2063 = vunpack.c.l.b16 %v1775
        %v2064 = vunpack.c.l.b16 %v1776
        %v2065 = vunpack.c.l.b16 %v1777
        %v2066 = vunpack.c.l.b16 %v1778
        %v2067 = vunpack.c.l.b16 %v1779
        %v2068 = vunpack.c.l.b16 %v1780
        %v2069 = vunpack.c.l.b16 %v1781
        %v2070 = vunpack.c.l.b16 %v1782
        %v2071 = vunpack.c.l.b16 %v1783
        %v2072 = vunpack.c.l.b16 %v1784
        %v2073 = vunpack.c.l.b16 %v1785
        %v2074 = vunpack.c.l.b16 %v1786
        %v2075 = vunpack.c.l.b16 %v1787
        %v2076 = vunpack.c.l.b16 %v1788
        %v2077 = vunpack.c.l.b16 %v1789
        %v2078 = vunpack.c.l.b16 %v1790
        %v2079 = vunpack.c.l.b16 %v1791
        %v2080 = vunpack.c.l.b16 %v1792
        %v2081 = vunpack.c.l.b16 %v1793
        %v2082 = vunpack.c.l.b16 %v1794
        %v2083 = vunpack.c.l.b16 %v1795
        %v2084 = vunpack.c.l.b16 %v1796
        %v2085 = vunpack.c.l.b16 %v1797
        %v2086 = vunpack.c.l.b16 %v1798
        %v2087 = vunpack.c.l.b16 %v1799
        %v2088 = vunpack.c.l.b16 %v1800
        %v2089 = vunpack.c.l.b16 %v1801
        %v2090 = vunpack.c.l.b16 %v1802
        %v2091 = vunpack.c.l.b16 %v1803
        %v2092 = vunpack.c.l.b16 %v1804
        %v2093 = vunpack.c.l.b16 %v1805
        %v2094 = vunpack.c.l.b16 %v1806
        %v2095 = vunpack.c.l.b16 %v1807
        %v2096 = vunpack.c.l.b16 %v1808
        %v2097 = vunpack.c.l.b16 %v1809
        %v2098 = vunpack.c.l.b16 %v1810
        %v2099 = vunpack.c.l.b16 %v1811
        %v2100 = vunpack.c.l.b16 %v1812
        %v2101 = vunpack.c.l.b16 %v1813
        %v2102 = vunpack.c.l.b16 %v1814
        %v2103 = vunpack.c.l.b16 %v1815
        %v2104 = vunpack.c.l.b16 %v1816
        %v2105 = vunpack.c.l.b16 %v1817
        %v2106 = vunpack.c.l.b16 %v1818
        %v2107 = vunpack.c.l.b16 %v1819
        %v2108 = vunpack.c.l.b16 %v1820
        %v2109 = vunpack.c.l.b16 %v1821
        %v2110 = vunpack.c.l.b16 %v1822
        %v2111 = vunpack.c.l.b16 %v1823
        %v2112 = vunpack.c.l.b16 %v1824
        %v2113 = vunpack.c.l.b16 %v1825
        %v2114 = vunpack.c.l.b16 %v1826
        %v2115 = vunpack.c.l.b16 %v1827
        %v2116 = vunpack.c.l.b16 %v1828
        %v2117 = vunpack.c.l.b16 %v1829
        %v2118 = vunpack.c.l.b16 %v1830
        %v2119 = vunpack.c.l.b16 %v1831
        %v2120 = vunpack.c.l.b16 %v1832
        %v2121 = vunpack.c.l.b16 %v1833
        %v2122 = vunpack.c.l.b16 %v1834
        %v2123 = vunpack.c.l.b16 %v1835
        %v2124 = vunpack.c.l.b16 %v1836
        %v2125 = vunpack.c.l.b16 %v1837
        %v2126 = vpack.c.b16 %v1983, %v1982
        %v2127 = vpack.c.b16 %v1985, %v1984
        %v2128 = vpack.c.b16 %v1987, %v1986
        %v2129 = vpack.c.b16 %v1989, %v1988
        %v2130 = vpack.c.b16 %v1991, %v1990
        %v2131 = vpack.c.b16 %v1993, %v1992
        %v2132 = vpack.c.b16 %v1995, %v1994
        %v2133 = vpack.c.b16 %v1997, %v1996
        %v2134 = vpack.c.b16 %v1999, %v1998
        %v2135 = vpack.c.b16 %v2001, %v2000
        %v2136 = vpack.c.b16 %v2003, %v2002
        %v2137 = vpack.c.b16 %v2005, %v2004
        %v2138 = vpack.c.b16 %v2007, %v2006
        %v2139 = vpack.c.b16 %v2009, %v2008
        %v2140 = vpack.c.b16 %v2011, %v2010
        %v2141 = vpack.c.b16 %v2013, %v2012
        %v2142 = vpack.c.b16 %v2015, %v2014
        %v2143 = vpack.c.b16 %v2017, %v2016
        %v2144 = vpack.c.b16 %v2019, %v2018
        %v2145 = vpack.c.b16 %v2021, %v2020
        %v2146 = vpack.c.b16 %v2023, %v2022
        %v2147 = vpack.c.b16 %v2025, %v2024
        %v2148 = vpack.c.b16 %v2027, %v2026
        %v2149 = vpack.c.b16 %v2029, %v2028
        %v2150 = vpack.c.b16 %v2031, %v2030
        %v2151 = vpack.c.b16 %v2033, %v2032
        %v2152 = vpack.c.b16 %v2035, %v2034
        %v2153 = vpack.c.b16 %v2037, %v2036
        %v2154 = vpack.c.b16 %v2039, %v2038
        %v2155 = vpack.c.b16 %v2041, %v2040
        %v2156 = vpack.c.b16 %v2043, %v2042
        %v2157 = vpack.c.b16 %v2045, %v2044
        %v2158 = vpack.c.b16 %v2047, %v2046
        %v2159 = vpack.c.b16 %v2049, %v2048
        %v2160 = vpack.c.b16 %v2051, %v2050
        %v2161 = vpack.c.b16 %v2053, %v2052
        %v2162 = vpack.c.b16 %v2055, %v2054
        %v2163 = vpack.c.b16 %v2057, %v2056
        %v2164 = vpack.c.b16 %v2059, %v2058
        %v2165 = vpack.c.b16 %v2061, %v2060
        %v2166 = vpack.c.b16 %v2063, %v2062
        %v2167 = vpack.c.b16 %v2065, %v2064
        %v2168 = vpack.c.b16 %v2067, %v2066
        %v2169 = vpack.c.b16 %v2069, %v2068
        %v2170 = vpack.c.b16 %v2071, %v2070
        %v2171 = vpack.c.b16 %v2073, %v2072
        %v2172 = vpack.c.b16 %v2075, %v2074
        %v2173 = vpack.c.b16 %v2077, %v2076
        %v2174 = vpack.c.b16 %v2079, %v2078
        %v2175 = vpack.c.b16 %v2081, %v2080
        %v2176 = vpack.c.b16 %v2083, %v2082
        %v2177 = vpack.c.b16 %v2085, %v2084
        %v2178 = vpack.c.b16 %v2087, %v2086
        %v2179 = vpack.c.b16 %v2089, %v2088
        %v2180 = vpack.c.b16 %v2091, %v2090
        %v2181 = vpack.c.b16 %v2093, %v2092
        %v2182 = vpack.c.b16 %v2095, %v2094
        %v2183 = vpack.c.b16 %v2097, %v2096
        %v2184 = vpack.c.b16 %v2099, %v2098
        %v2185 = vpack.c.b16 %v2101, %v2100
        %v2186 = vpack.c.b16 %v2103, %v2102
        %v2187 = vpack.c.b16 %v2105, %v2104
        %v2188 = vpack.c.b16 %v2107, %v2106
        %v2189 = vpack.c.b16 %v2109, %v2108
        %v2190 = vpack.c.b16 %v2111, %v2110
        %v2191 = vpack.c.b16 %v2113, %v2112
        %v2192 = vpack.c.b16 %v2115, %v2114
        %v2193 = vpack.c.b16 %v2117, %v2116
        %v2194 = vpack.c.b16 %v2119, %v2118
        %v2195 = vpack.c.b16 %v2121, %v2120
        %v2196 = vpack.c.b16 %v2123, %v2122
        %v2197 = vpack.c.b16 %v2125, %v2124
        %2270 = vmatprep.subr.bf16.mxu0 0
        %2271 = vmatpush1.bf16.msra.mxu0 %v2126
        %2272 = vmatprep.subr.bf16.mxu0 0
        %2273 = vmatpush1.bf16.msra.mxu0 %v2127
        %2274 = vmatprep.subr.bf16.mxu0 0
        %2275 = vmatpush1.bf16.msra.mxu0 %v2128
        %2276 = vmatprep.subr.bf16.mxu0 0
        %2277 = vmatpush1.bf16.msra.mxu0 %v2129
        %2278 = vmatprep.subr.bf16.mxu0 0
        %2279 = vmatpush1.bf16.msra.mxu0 %v2130
        %2280 = vmatprep.subr.bf16.mxu0 0
        %2281 = vmatpush1.bf16.msra.mxu0 %v2131
        %2282 = vmatprep.subr.bf16.mxu0 0
        %2283 = vmatpush1.bf16.msra.mxu0 %v2132
        %2284 = vmatprep.subr.bf16.mxu0 0
        %2285 = vmatpush1.bf16.msra.mxu0 %v2133
        %2286 = vmatprep.subr.bf16.mxu0 0
        %2287 = vmatpush1.bf16.msra.mxu0 %v2134
        %2288 = vmatprep.subr.bf16.mxu0 0
        %2289 = vmatpush1.bf16.msra.mxu0 %v2135
        %2290 = vmatprep.subr.bf16.mxu0 0
        %2291 = vmatpush1.bf16.msra.mxu0 %v2136
        %2292 = vmatprep.subr.bf16.mxu0 0
        %2293 = vmatpush1.bf16.msra.mxu0 %v2137
        %2294 = vmatprep.subr.bf16.mxu0 0
        %2295 = vmatpush1.bf16.msra.mxu0 %v2138
        %2296 = vmatprep.subr.bf16.mxu0 0
        %2297 = vmatpush1.bf16.msra.mxu0 %v2139
        %2298 = vmatprep.subr.bf16.mxu0 0
        %2299 = vmatpush1.bf16.msra.mxu0 %v2140
        %2300 = vmatprep.subr.bf16.mxu0 0
        %2301 = vmatpush1.bf16.msra.mxu0 %v2141
        %2302 = vmatprep.mubr.bf16.mxu0 %v1686
        %2303 = vmatmul.mubr.bf16.gmra.mrb[0].mxu0 %v1685
        %v2304 = vpop.f32.mrb[0].mxu0
        %v2305 = vadd.f32 0.0, %v2304
        %v2306 = vpop.f32.mrb[0].mxu0
        %v2307 = vpop.f32.mrb[0].mxu0
        %v2308 = vadd.f32 0.0, %v2307
        %v2309 = vpop.f32.mrb[0].mxu0
        %2310 = vdwg.mxu0
        %2311 = vmatprep.subr.bf16.mxu0 0
        %2312 = vmatpush1.bf16.msra.mxu0 %v2142
        %2313 = vmatprep.subr.bf16.mxu0 0
        %2314 = vmatpush1.bf16.msra.mxu0 %v2143
        %2315 = vmatprep.subr.bf16.mxu0 0
        %2316 = vmatpush1.bf16.msra.mxu0 %v2144
        %2317 = vmatprep.subr.bf16.mxu0 0
        %2318 = vmatpush1.bf16.msra.mxu0 %v2145
        %2319 = vmatprep.subr.bf16.mxu0 0
        %2320 = vmatpush1.bf16.msra.mxu0 %v2146
        %2321 = vmatprep.subr.bf16.mxu0 0
        %2322 = vmatpush1.bf16.msra.mxu0 %v2147
        %2323 = vmatprep.subr.bf16.mxu0 0
        %2324 = vmatpush1.bf16.msra.mxu0 %v2148
        %2325 = vmatprep.subr.bf16.mxu0 0
        %2326 = vmatpush1.bf16.msra.mxu0 %v2149
        %2327 = vmatprep.subr.bf16.mxu0 0
        %2328 = vmatpush1.bf16.msra.mxu0 %v2150
        %2329 = vmatprep.subr.bf16.mxu0 0
        %2330 = vmatpush1.bf16.msra.mxu0 %v2151
        %2331 = vmatprep.subr.bf16.mxu0 0
        %2332 = vmatpush1.bf16.msra.mxu0 %v2152
        %2333 = vmatprep.subr.bf16.mxu0 0
        %2334 = vmatpush1.bf16.msra.mxu0 %v2153
        %2335 = vmatprep.subr.bf16.mxu0 0
        %2336 = vmatpush1.bf16.msra.mxu0 %v2154
        %2337 = vmatprep.subr.bf16.mxu0 0
        %2338 = vmatpush1.bf16.msra.mxu0 %v2155
        %2339 = vmatprep.subr.bf16.mxu0 0
        %2340 = vmatpush1.bf16.msra.mxu0 %v2156
        %2341 = vmatprep.subr.bf16.mxu0 0
        %2342 = vmatpush1.bf16.msra.mxu0 %v2157
        %2343 = vmatprep.mubr.bf16.mxu0 %v1688
        %2344 = vmatmul.mubr.bf16.gmra.mrb[0].mxu0 %v1687
        %v2345 = vpop.f32.mrb[0].mxu0
        %v2346 = vadd.f32 %v2305, %v2345
        %v2347 = vpop.f32.mrb[0].mxu0
        %v2348 = vpop.f32.mrb[0].mxu0
        %v2349 = vadd.f32 %v2308, %v2348
        %v2350 = vpop.f32.mrb[0].mxu0
        %2351 = vdwg.mxu0
        %2352 = vmatprep.subr.bf16.mxu0 0
        %2353 = vmatpush1.bf16.msra.mxu0 %v2158
        %2354 = vmatprep.subr.bf16.mxu0 0
        %2355 = vmatpush1.bf16.msra.mxu0 %v2159
        %2356 = vmatprep.subr.bf16.mxu0 0
        %2357 = vmatpush1.bf16.msra.mxu0 %v2160
        %2358 = vmatprep.subr.bf16.mxu0 0
        %2359 = vmatpush1.bf16.msra.mxu0 %v2161
        %2360 = vmatprep.subr.bf16.mxu0 0
        %2361 = vmatpush1.bf16.msra.mxu0 %v2162
        %2362 = vmatprep.subr.bf16.mxu0 0
        %2363 = vmatpush1.bf16.msra.mxu0 %v2163
        %2364 = vmatprep.subr.bf16.mxu0 0
        %2365 = vmatpush1.bf16.msra.mxu0 %v2164
        %2366 = vmatprep.subr.bf16.mxu0 0
        %2367 = vmatpush1.bf16.msra.mxu0 %v2165
        %2368 = vmatprep.subr.bf16.mxu0 0
        %2369 = vmatpush1.bf16.msra.mxu0 %v2166
        %2370 = vmatprep.subr.bf16.mxu0 0
        %2371 = vmatpush1.bf16.msra.mxu0 %v2167
        %2372 = vmatprep.subr.bf16.mxu0 0
        %2373 = vmatpush1.bf16.msra.mxu0 %v2168
        %2374 = vmatprep.subr.bf16.mxu0 0
        %2375 = vmatpush1.bf16.msra.mxu0 %v2169
        %2376 = vmatprep.subr.bf16.mxu0 0
        %2377 = vmatpush1.bf16.msra.mxu0 %v2170
        %2378 = vmatprep.subr.bf16.mxu0 0
        %2379 = vmatpush1.bf16.msra.mxu0 %v2171
        %2380 = vmatprep.subr.bf16.mxu0 0
        %2381 = vmatpush1.bf16.msra.mxu0 %v2172
        %2382 = vmatprep.subr.bf16.mxu0 0
        %2383 = vmatpush1.bf16.msra.mxu0 %v2173
        %2384 = vmatprep.mubr.bf16.mxu0 %v1690
        %2385 = vmatmul.mubr.bf16.gmra.mrb[0].mxu0 %v1689
        %v2386 = vpop.f32.mrb[0].mxu0
        %v2387 = vadd.f32 %v2346, %v2386
        %v2388 = vpop.f32.mrb[0].mxu0
        %v2389 = vpop.f32.mrb[0].mxu0
        %v2390 = vadd.f32 %v2349, %v2389
        %v2391 = vpop.f32.mrb[0].mxu0
        %2392 = vdwg.mxu0
        %2393 = vmatprep.subr.bf16.mxu0 0
        %2394 = vmatpush1.bf16.msra.mxu0 %v2174
        %2395 = vmatprep.subr.bf16.mxu0 0
        %2396 = vmatpush1.bf16.msra.mxu0 %v2175
        %2397 = vmatprep.subr.bf16.mxu0 0
        %2398 = vmatpush1.bf16.msra.mxu0 %v2176
        %2399 = vmatprep.subr.bf16.mxu0 0
        %2400 = vmatpush1.bf16.msra.mxu0 %v2177
        %2401 = vmatprep.subr.bf16.mxu0 0
        %2402 = vmatpush1.bf16.msra.mxu0 %v2178
        %2403 = vmatprep.subr.bf16.mxu0 0
        %2404 = vmatpush1.bf16.msra.mxu0 %v2179
        %2405 = vmatprep.subr.bf16.mxu0 0
        %2406 = vmatpush1.bf16.msra.mxu0 %v2180
        %2407 = vmatprep.subr.bf16.mxu0 0
        %2408 = vmatpush1.bf16.msra.mxu0 %v2181
        %2409 = vmatprep.subr.bf16.mxu0 0
        %2410 = vmatpush1.bf16.msra.mxu0 %v2182
        %2411 = vmatprep.subr.bf16.mxu0 0
        %2412 = vmatpush1.bf16.msra.mxu0 %v2183
        %2413 = vmatprep.subr.bf16.mxu0 0
        %2414 = vmatpush1.bf16.msra.mxu0 %v2184
        %2415 = vmatprep.subr.bf16.mxu0 0
        %2416 = vmatpush1.bf16.msra.mxu0 %v2185
        %2417 = vmatprep.subr.bf16.mxu0 0
        %2418 = vmatpush1.bf16.msra.mxu0 %v2186
        %2419 = vmatprep.subr.bf16.mxu0 0
        %2420 = vmatpush1.bf16.msra.mxu0 %v2187
        %2421 = vmatprep.subr.bf16.mxu0 0
        %2422 = vmatpush1.bf16.msra.mxu0 %v2188
        %2423 = vmatprep.subr.bf16.mxu0 0
        %2424 = vmatpush1.bf16.msra.mxu0 %v2189
        %2425 = vmatprep.mubr.bf16.mxu0 %v1692
        %2426 = vmatmul.mubr.bf16.gmra.mrb[0].mxu0 %v1691
        %v2427 = vpop.f32.mrb[0].mxu0
        %v2428 = vadd.f32 %v2387, %v2427
        %v2429 = vpop.f32.mrb[0].mxu0
        %v2430 = vpop.f32.mrb[0].mxu0
        %v2431 = vadd.f32 %v2390, %v2430
        %v2432 = vpop.f32.mrb[0].mxu0
        %2433 = vdwg.mxu0
        %2434 = vmatprep.subr.bf16.mxu0 0
        %2435 = vmatpush1.bf16.msra.mxu0 %v2190
        %2436 = vmatprep.subr.bf16.mxu0 0
        %2437 = vmatpush1.bf16.msra.mxu0 %v2191
        %2438 = vmatprep.subr.bf16.mxu0 0
        %2439 = vmatpush1.bf16.msra.mxu0 %v2192
        %2440 = vmatprep.subr.bf16.mxu0 0
        %2441 = vmatpush1.bf16.msra.mxu0 %v2193
        %2442 = vmatprep.subr.bf16.mxu0 0
        %2443 = vmatpush1.bf16.msra.mxu0 %v2194
        %2444 = vmatprep.subr.bf16.mxu0 0
        %2445 = vmatpush1.bf16.msra.mxu0 %v2195
        %2446 = vmatprep.subr.bf16.mxu0 0
        %2447 = vmatpush1.bf16.msra.mxu0 %v2196
        %2448 = vmatprep.subr.bf16.mxu0 0
        %2449 = vmatpush1.bf16.msra.mxu0 %v2197
        %2450 = vmatprep.subr.bf16.mxu0 0
        %2451 = vmatpush1.bf16.msra.mxu0 0
        %2452 = vmatprep.subr.bf16.mxu0 0
        %2453 = vmatpush1.bf16.msra.mxu0 0
        %2454 = vmatprep.subr.bf16.mxu0 0
        %2455 = vmatpush1.bf16.msra.mxu0 0
        %2456 = vmatprep.subr.bf16.mxu0 0
        %2457 = vmatpush1.bf16.msra.mxu0 0
        %2458 = vmatprep.subr.bf16.mxu0 0
        %2459 = vmatpush1.bf16.msra.mxu0 0
        %2460 = vmatprep.subr.bf16.mxu0 0
        %2461 = vmatpush1.bf16.msra.mxu0 0
        %2462 = vmatprep.subr.bf16.mxu0 0
        %2463 = vmatpush1.bf16.msra.mxu0 0
        %2464 = vmatprep.subr.bf16.mxu0 0
        %2465 = vmatpush1.bf16.msra.mxu0 0
        %2466 = vmatprep.mubr.bf16.mxu0 0
        %2467 = vmatmul.mubr.bf16.gmra.mrb[0].mxu0 %v1693
        %v2468 = vpop.f32.mrb[0].mxu0
        %v2469 = vadd.f32 %v2428, %v2468
        %v2470 = vpop.f32.mrb[0].mxu0
        %v2471 = vpop.f32.mrb[0].mxu0
        %v2472 = vadd.f32 %v2431, %v2471
        %v2473 = vpop.f32.mrb[0].mxu0
        %2474 = vdwg.mxu0
        %v2475 = vld [vmem:[#allocation10] sm:$0xf]
        %v2476 = vld [vmem:[#allocation10 + $0x4] sm:$0xf]
        %v2477 = vld [vmem:[#allocation10 + $0x8] sm:$0xf]
        %v2478 = vld [vmem:[#allocation10 + $0xc] sm:$0xf]
        %v2479 = vld [vmem:[#allocation10 + $0x10] sm:$0xf]
        %v2480 = vld [vmem:[#allocation10 + $0x14] sm:$0xf]
        %v2481 = vld [vmem:[#allocation10 + $0x18] sm:$0xf]
        %v2482 = vld [vmem:[#allocation10 + $0x1c] sm:$0xf]
        %v2483 = vld [vmem:[#allocation10 + $0x20] sm:$0xf]
        %v2484 = vld [vmem:[#allocation10 + $0x24] sm:$0xf]
        %v2485 = vld [vmem:[#allocation10 + $0x28] sm:$0xf]
        %v2486 = vld [vmem:[#allocation10 + $0x2c] sm:$0xf]
        %v2487 = vld [vmem:[#allocation10 + $0x30] sm:$0xf]
        %v2488 = vld [vmem:[#allocation10 + $0x34] sm:$0xf]
        %v2489 = vld [vmem:[#allocation10 + $0x38] sm:$0xf]
        %v2490 = vld [vmem:[#allocation10 + $0x3c] sm:$0xf]
        %v2491 = vrot.slane %v454, 4
        %v2492 = vrot.slane %v455, 4
        %v2493 = vsel %vm1679, %v2491, %v2492
        %v2511 = vunpack.c.l.b16 %v2475
        %v2512 = vunpack.c.l.b16 %v2476
        %v2513 = vunpack.c.l.b16 %v2477
        %v2514 = vunpack.c.l.b16 %v2478
        %v2515 = vunpack.c.l.b16 %v2479
        %v2516 = vunpack.c.l.b16 %v2480
        %v2517 = vunpack.c.l.b16 %v2481
        %v2518 = vunpack.c.l.b16 %v2482
        %v2519 = vunpack.c.l.b16 %v2483
        %v2520 = vunpack.c.l.b16 %v2484
        %v2521 = vunpack.c.l.b16 %v2485
        %v2522 = vunpack.c.l.b16 %v2486
        %v2523 = vunpack.c.l.b16 %v2487
        %v2524 = vunpack.c.l.b16 %v2488
        %v2525 = vunpack.c.l.b16 %v2489
        %v2526 = vunpack.c.l.b16 %v2490
        %v2527 = vpack.c.b16 %v2512, %v2511
        %v2528 = vpack.c.b16 %v2514, %v2513
        %v2529 = vpack.c.b16 %v2516, %v2515
        %v2530 = vpack.c.b16 %v2518, %v2517
        %v2531 = vpack.c.b16 %v2520, %v2519
        %v2532 = vpack.c.b16 %v2522, %v2521
        %v2533 = vpack.c.b16 %v2524, %v2523
        %v2534 = vpack.c.b16 %v2526, %v2525
        %2543 = vmatprep.subr.bf16.mxu0 0
        %2544 = vmatpush1.bf16.msra.mxu0 %v2527
        %2545 = vmatprep.subr.bf16.mxu0 0
        %2546 = vmatpush1.bf16.msra.mxu0 %v2528
        %2547 = vmatprep.subr.bf16.mxu0 0
        %2548 = vmatpush1.bf16.msra.mxu0 %v2529
        %2549 = vmatprep.subr.bf16.mxu0 0
        %2550 = vmatpush1.bf16.msra.mxu0 %v2530
        %2551 = vmatprep.subr.bf16.mxu0 0
        %2552 = vmatpush1.bf16.msra.mxu0 %v2531
        %2553 = vmatprep.subr.bf16.mxu0 0
        %2554 = vmatpush1.bf16.msra.mxu0 %v2532
        %2555 = vmatprep.subr.bf16.mxu0 0
        %2556 = vmatpush1.bf16.msra.mxu0 %v2533
        %2557 = vmatprep.subr.bf16.mxu0 0
        %2558 = vmatpush1.bf16.msra.mxu0 %v2534
        %2559 = vmatprep.subr.bf16.mxu0 0
        %2560 = vmatpush1.bf16.msra.mxu0 0
        %2561 = vmatprep.subr.bf16.mxu0 0
        %2562 = vmatpush1.bf16.msra.mxu0 0
        %2563 = vmatprep.subr.bf16.mxu0 0
        %2564 = vmatpush1.bf16.msra.mxu0 0
        %2565 = vmatprep.subr.bf16.mxu0 0
        %2566 = vmatpush1.bf16.msra.mxu0 0
        %2567 = vmatprep.subr.bf16.mxu0 0
        %2568 = vmatpush1.bf16.msra.mxu0 0
        %2569 = vmatprep.subr.bf16.mxu0 0
        %2570 = vmatpush1.bf16.msra.mxu0 0
        %2571 = vmatprep.subr.bf16.mxu0 0
        %2572 = vmatpush1.bf16.msra.mxu0 0
        %2573 = vmatprep.subr.bf16.mxu0 0
        %2574 = vmatpush1.bf16.msra.mxu0 0
        %2575 = vmatprep.mubr.bf16.mxu0 0
        %2576 = vmatmul.mubr.bf16.gmra.mrb[0].mxu0 %v2493
        %v2577 = vpop.f32.mrb[0].mxu0
        %v2578 = vadd.f32 %v2469, %v2577
        %v2579 = vpop.f32.mrb[0].mxu0
        %v2580 = vpop.f32.mrb[0].mxu0
        %v2581 = vadd.f32 %v2472, %v2580
        %v2582 = vpop.f32.mrb[0].mxu0
        %2583 = vdwg.mxu0
        %2584 = vst [vmem:[%s385] sm:$0xff] %v2578
        %2585 = vst [vmem:[%s385 + $0x8] sm:$0xff] %v2581
        %s2586 = sand.u32 %s224, 1
        %s2587 = scalar_lea.sflag [#allocation6], %s2586
        %s2588 = sand.u32 %s224, 1
        %s2589 = smul.addr %s2588, 16
        %s2590 = scalar_lea.vmem [#allocation12], %s2589
        // Predicated region
        $region69: #{tpu_custom_call.1} parent=51 // pred_check
          %p2591 = pneg %p234
        $region70: #{tpu_custom_call.1} parent=51 // pred_check_branch
          %2593 = sbr.rel (%p2591) target = $region72
        $region71: #{tpu_custom_call.1} parent=51 // pred_region
          %s2594 = smul.u32 2, %s32
          %s2596 = ssub.s32 256, 256
          %2597 = vsyncadd %s2587, %s2596
          %s2598 = smul.addr %s31, 2
          %s2599 = sadd.s32 %s2594, %s2598
          %s2600 = smul.addr %s2599, 128
          %s2601 = scalar_lea.hbm %s8, %s2600
          %s2602 = sshll.u32 %s2590, 4
          %s2603 = int_to_ptr.vmem [resolvable:$true] %s2602
          %2608 = dma.vmem_to_hbm [thread:$0]  %s2603, 256, %s2601, %s2587, 128, 128, 8
        $region72: #{tpu_custom_call.1} parent=51 // pred_fallthru
          _
      $region52: #{tpu_custom_call.1} parent=5 // pred_fallthru
        _
      %p2609 = scmp.le.s32.totalorder 2, %s22
      // Predicated region
      $region73: #{tpu_custom_call.1} parent=5 // pred_check
        %p2610 = pneg %p2609
      $region74: #{tpu_custom_call.1} parent=5 // pred_check_branch
        %2612 = sbr.rel (%p2610) target = $region76
      $region75: #{tpu_custom_call.1} parent=5 // pred_region
        %s2613 = ssub.s32 %s22, 2
        // Predicated region
        $region77: #{tpu_custom_call.1} parent=75 // pred_check
          %p2614 = pneg %p240
        $region78: #{tpu_custom_call.1} parent=75 // pred_check_branch
          %2616 = sbr.rel (%p2614) target = $region80
        $region79: #{tpu_custom_call.1} parent=75 // pred_region
          %s2617 = sand.u32 %s225, 1
          %s2618 = scalar_lea.sflag [#allocation6], %s2617
          %s2619 = sand.u32 %s225, 1
          %s2620 = smul.addr %s2619, 16
          %s2621 = scalar_lea.vmem [#allocation12], %s2620
          %2622 = dma.done %s2618, 256
        $region80: #{tpu_custom_call.1} parent=75 // pred_fallthru
          _
      $region76: #{tpu_custom_call.1} parent=5 // pred_fallthru
        _
    $region6: #{tpu_custom_call.1} parent=1 // loop_footer
      %s26 = sadd.s32 1, %s22
    $region7: #{tpu_custom_call.1} parent=1 // loop_footer_branch
      %21 = sbr.rel target = $region3
    $region8: #{tpu_custom_call.1} parent=1 // loop_exit
      _
    %2623 = vsyncpa [#allocation5], 1
    %s2624 = scalar_lea.sflag [#allocation5], 1
    %2625 = vsyncpa %s2624, 1
    %2626 = vsyncpa [#allocation8], 1
    %2627 = vsyncpa [#allocation11], 1
    %2628 = vsyncpa [#allocation6], 1
    %s2629 = scalar_lea.sflag [#allocation6], 1
    %2630 = vsyncpa %s2629, 1

// kernel: tpu_custom_call.1
$region0: #{tpu_custom_call.1}
  #allocation0 [shape = 'u32[]', space=smem, size = 0x4, offset = 0x4, fixed_abs, tag = 'smem constant byte address 0x4 - core index']
  #allocation1 [shape = 'u32[144,128]{1,0:T(1,128)}', space=vmem, size = 0x12000, scoped, tag = 'internal scratch']
  #allocation2 [shape = 'bf16[24,1152]{1,0:T(8,128)(2,1)}', space=vmem, size = 0xd800, scoped, tag = 'scratch operand']
  #allocation3 [shape = 'bf16[16,1152]{1,0:T(16,128)(2,1)}', space=vmem, size = 0x9000, scoped, tag = 'scratch operand']
  %s0 = inlined_call_operand.hbm [shape: f32[2,1,32,128], index: 0, kind: input, shape index: {}]
  %s1 = inlined_call_operand.vmem [shape: f32[1,128], index: 1, kind: input, shape index: {}]
  %s2 = inlined_call_operand.vmem [shape: f32[1,128], index: 2, kind: input, shape index: {}]
  %s3 = inlined_call_operand.hbm [shape: bf16[1152,128], index: 3, kind: input, shape index: {}]
  %s4 = inlined_call_operand.vmem [shape: f32[1,128], index: 4, kind: input, shape index: {}]
  %s5 = inlined_call_operand.vmem [shape: f32[1,128], index: 5, kind: input, shape index: {}]
  %s6 = inlined_call_operand.hbm [shape: bf16[1152,128], index: 6, kind: input, shape index: {}]
  %s7 = inlined_call_operand.hbm [shape: bf16[128,128], index: 7, kind: input, shape index: {}]
  %s8 = inlined_call_operand.hbm [shape: f32[2,16,128], index: 8, kind: output, shape index: {}]
  %s9 = sld [smem:[#allocation0]]
  $region81: #{tpu_custom_call.1} parent=0
    _
  %s11 = ssub.s32 1, %s9
  %s12 = scalar_select 0, %s11, %s9
  $region1: #{tpu_custom_call.1} parent=0
    #allocation4 [shape = 'u8[32768]{0}', space=vmem, size = 0x8000, scoped, tag = 'input window, operand 0']
    #allocation5 [shape = 's32[2]{0}', space=sflag, size = 0x8, scoped, tag = 'scoped memory for tpu_custom_call.1']
    #allocation6 [shape = 's32[2]{0}', space=sflag, size = 0x8, scoped, tag = 'scoped memory for tpu_custom_call.1']
    #allocation7 [shape = 'u8[294912]{0}', space=vmem, size = 0x48000, scoped, tag = 'input window, operand 3, single buffered']
    #allocation8 [shape = 's32[1]{0}', space=sflag, size = 0x4, scoped, tag = 'scoped memory for tpu_custom_call.1']
    #allocation9 [shape = 'u8[294912]{0}', space=vmem, size = 0x48000, scoped, tag = 'input window, operand 6, single buffered']
    #allocation10 [shape = 'u8[32768]{0}', space=vmem, size = 0x8000, scoped, tag = 'input window, operand 7, single buffered']
    #allocation11 [shape = 's32[1]{0}', space=sflag, size = 0x4, scoped, tag = 'scoped memory for tpu_custom_call.1']
    #allocation12 [shape = 'u8[16384]{0}', space=vmem, size = 0x4000, scoped, tag = 'output window, operand 0']
    %13 = vsyncpa [#allocation5], 0
    %s14 = scalar_lea.sflag [#allocation5], 1
    %15 = vsyncpa %s14, 0
    %16 = vsyncpa [#allocation8], 0
    %17 = vsyncpa [#allocation11], 0
    %18 = vsyncpa [#allocation6], 0
    %s19 = scalar_lea.sflag [#allocation6], 1
    %20 = vsyncpa %s19, 0
    loop: start=0, step=1, limit=4
    $region2: #{tpu_custom_call.1} parent=1 // loop_pre_header
      _
    $region3: #{tpu_custom_call.1} parent=1 // loop_header
      %s22 = sphi 0, %s26
      %p23 = scmp.ge.s32.totalorder %s22, 4
      %s29 = sphi 0, %s41
      %s30 = sphi 0, %s37
      %s31 = sphi 0, %s29
      %s32 = sphi 0, %s30
      %s33 = sphi 0, %s31
      %s34 = sphi 0, %s32
      %s46 = sphi 0, %s48
      %s49 = sphi 0, %s46
      %s50 = sphi 0, %s49
      %s66 = sphi 0, %s50
      %s70 = sphi 0, %s70
      %s72 = sphi 0, %s70
      %s73 = sphi 0, %s72
      %s87 = sphi 0, %s73
      %s91 = sphi 0, %s91
      %s93 = sphi 0, %s91
      %s94 = sphi 0, %s93
      %s108 = sphi 0, %s94
      %s112 = sphi 0, %s112
      %s114 = sphi 0, %s112
      %s115 = sphi 0, %s114
      %s129 = sphi 0, %s115
      %s133 = sphi 0, %s133
      %s135 = sphi 0, %s133
      %s136 = sphi 0, %s135
      %s150 = sphi 0, %s136
      %s154 = sphi 0, %s154
      %s156 = sphi 0, %s154
      %s157 = sphi 0, %s156
      %s171 = sphi 0, %s157
      %s175 = sphi 0, %s175
      %s177 = sphi 0, %s175
      %s178 = sphi 0, %s177
      %s192 = sphi 0, %s178
      %s196 = sphi 0, %s196
      %s198 = sphi 0, %s196
      %s199 = sphi 0, %s198
      %s213 = sphi 0, %s199
      %s221 = sphi 0, %s223
      %s224 = sphi 0, %s221
      %s225 = sphi 0, %s224
      %s241 = sphi 0, %s225
    $region4: #{tpu_custom_call.1} parent=1 // loop_header_branch
      %25 = sbr.rel (%p23) target = $region8
    $region5: #{tpu_custom_call.1} parent=1 // loop_body
      %s27 = ssub.s32 %s22, 1
      %s28 = ssub.s32 %s22, 2
      %s35 = sadd.s32 1, %s30
      %p36 = scmp.ge.s32.totalorder %s35, 1
      %s37 = scalar_select %p36, 0, %s35
      %s38 = sadd.s32 1, %s29
      %s39 = scalar_select %p36, %s38, %s29
      %p40 = scmp.ge.s32.totalorder %s39, 2
      %s41 = scalar_select %p40, 0, %s39
      %s42 = ssub.s32 %s29, %s41
      %s43 = ssub.s32 %s30, %s37
      %s44 = sor.u32 %s42, %s43
      %p45 = scmp.eq.s32.totalorder %s44, 0
      %s47 = sadd.s32 %s46, 1
      %s48 = scalar_select %p45, %s46, %s47
      %p51 = pneg %p45
      %p52 = scmp.eq.s32.totalorder %s22, 1
      %p53 = por %p51, %p52
      %p54 = scmp.ne.s32.totalorder %s46, %s49
      %p55 = scmp.eq.s32.totalorder %s22, 0
      %p56 = por %p54, %p55
      %p57 = scmp.ne.s32.totalorder %s46, %s49
      %p58 = scmp.eq.s32.totalorder %s27, 1
      %p59 = por %p57, %p58
      %p60 = scmp.ne.s32.totalorder %s49, %s50
      %p61 = scmp.eq.s32.totalorder %s27, 0
      %p62 = por %p60, %p61
      %p63 = scmp.ne.s32.totalorder %s49, %s50
      %p64 = scmp.eq.s32.totalorder %s28, 1
      %p65 = por %p63, %p64
      %p67 = scmp.ne.s32.totalorder %s50, %s66
      %p68 = scmp.eq.s32.totalorder %s28, 0
      %p69 = por %p67, %p68
      %s71 = sadd.s32 %s70, 1
      %p74 = scmp.eq.s32.totalorder %s22, 1
      %p75 = scmp.ne.s32.totalorder %s70, %s72
      %p76 = scmp.eq.s32.totalorder %s22, 0
      %p77 = por %p75, %p76
      %p78 = scmp.ne.s32.totalorder %s70, %s72
      %p79 = scmp.eq.s32.totalorder %s27, 1
      %p80 = por %p78, %p79
      %p81 = scmp.ne.s32.totalorder %s72, %s73
      %p82 = scmp.eq.s32.totalorder %s27, 0
      %p83 = por %p81, %p82
      %p84 = scmp.ne.s32.totalorder %s72, %s73
      %p85 = scmp.eq.s32.totalorder %s28, 1
      %p86 = por %p84, %p85
      %p88 = scmp.ne.s32.totalorder %s73, %s87
      %p89 = scmp.eq.s32.totalorder %s28, 0
      %p90 = por %p88, %p89
      %s92 = sadd.s32 %s91, 1
      %p95 = scmp.eq.s32.totalorder %s22, 1
      %p96 = scmp.ne.s32.totalorder %s91, %s93
      %p97 = scmp.eq.s32.totalorder %s22, 0
      %p98 = por %p96, %p97
      %p99 = scmp.ne.s32.totalorder %s91, %s93
      %p100 = scmp.eq.s32.totalorder %s27, 1
      %p101 = por %p99, %p100
      %p102 = scmp.ne.s32.totalorder %s93, %s94
      %p103 = scmp.eq.s32.totalorder %s27, 0
      %p104 = por %p102, %p103
      %p105 = scmp.ne.s32.totalorder %s93, %s94
      %p106 = scmp.eq.s32.totalorder %s28, 1
      %p107 = por %p105, %p106
      %p109 = scmp.ne.s32.totalorder %s94, %s108
      %p110 = scmp.eq.s32.totalorder %s28, 0
      %p111 = por %p109, %p110
      %s113 = sadd.s32 %s112, 1
      %p116 = scmp.eq.s32.totalorder %s22, 1
      %p117 = scmp.ne.s32.totalorder %s112, %s114
      %p118 = scmp.eq.s32.totalorder %s22, 0
      %p119 = por %p117, %p118
      %p120 = scmp.ne.s32.totalorder %s112, %s114
      %p121 = scmp.eq.s32.totalorder %s27, 1
      %p122 = por %p120, %p121
      %p123 = scmp.ne.s32.totalorder %s114, %s115
      %p124 = scmp.eq.s32.totalorder %s27, 0
      %p125 = por %p123, %p124
      %p126 = scmp.ne.s32.totalorder %s114, %s115
      %p127 = scmp.eq.s32.totalorder %s28, 1
      %p128 = por %p126, %p127
      %p130 = scmp.ne.s32.totalorder %s115, %s129
      %p131 = scmp.eq.s32.totalorder %s28, 0
      %p132 = por %p130, %p131
      %s134 = sadd.s32 %s133, 1
      %p137 = scmp.eq.s32.totalorder %s22, 1
      %p138 = scmp.ne.s32.totalorder %s133, %s135
      %p139 = scmp.eq.s32.totalorder %s22, 0
      %p140 = por %p138, %p139
      %p141 = scmp.ne.s32.totalorder %s133, %s135
      %p142 = scmp.eq.s32.totalorder %s27, 1
      %p143 = por %p141, %p142
      %p144 = scmp.ne.s32.totalorder %s135, %s136
      %p145 = scmp.eq.s32.totalorder %s27, 0
      %p146 = por %p144, %p145
      %p147 = scmp.ne.s32.totalorder %s135, %s136
      %p148 = scmp.eq.s32.totalorder %s28, 1
      %p149 = por %p147, %p148
      %p151 = scmp.ne.s32.totalorder %s136, %s150
      %p152 = scmp.eq.s32.totalorder %s28, 0
      %p153 = por %p151, %p152
      %s155 = sadd.s32 %s154, 1
      %p158 = scmp.eq.s32.totalorder %s22, 1
      %p159 = scmp.ne.s32.totalorder %s154, %s156
      %p160 = scmp.eq.s32.totalorder %s22, 0
      %p161 = por %p159, %p160
      %p162 = scmp.ne.s32.totalorder %s154, %s156
      %p163 = scmp.eq.s32.totalorder %s27, 1
      %p164 = por %p162, %p163
      %p165 = scmp.ne.s32.totalorder %s156, %s157
      %p166 = scmp.eq.s32.totalorder %s27, 0
      %p167 = por %p165, %p166
      %p168 = scmp.ne.s32.totalorder %s156, %s157
      %p169 = scmp.eq.s32.totalorder %s28, 1
      %p170 = por %p168, %p169
      %p172 = scmp.ne.s32.totalorder %s157, %s171
      %p173 = scmp.eq.s32.totalorder %s28, 0
      %p174 = por %p172, %p173
      %s176 = sadd.s32 %s175, 1
      %p179 = scmp.eq.s32.totalorder %s22, 1
      %p180 = scmp.ne.s32.totalorder %s175, %s177
      %p181 = scmp.eq.s32.totalorder %s22, 0
      %p182 = por %p180, %p181
      %p183 = scmp.ne.s32.totalorder %s175, %s177
      %p184 = scmp.eq.s32.totalorder %s27, 1
      %p185 = por %p183, %p184
      %p186 = scmp.ne.s32.totalorder %s177, %s178
      %p187 = scmp.eq.s32.totalorder %s27, 0
      %p188 = por %p186, %p187
      %p189 = scmp.ne.s32.totalorder %s177, %s178
      %p190 = scmp.eq.s32.totalorder %s28, 1
      %p191 = por %p189, %p190
      %p193 = scmp.ne.s32.totalorder %s178, %s192
      %p194 = scmp.eq.s32.totalorder %s28, 0
      %p195 = por %p193, %p194
      %s197 = sadd.s32 %s196, 1
      %p200 = scmp.eq.s32.totalorder %s22, 1
      %p201 = scmp.ne.s32.totalorder %s196, %s198
      %p202 = scmp.eq.s32.totalorder %s22, 0
      %p203 = por %p201, %p202
      %p204 = scmp.ne.s32.totalorder %s196, %s198
      %p205 = scmp.eq.s32.totalorder %s27, 1
      %p206 = por %p204, %p205
      %p207 = scmp.ne.s32.totalorder %s198, %s199
      %p208 = scmp.eq.s32.totalorder %s27, 0
      %p209 = por %p207, %p208
      %p210 = scmp.ne.s32.totalorder %s198, %s199
      %p211 = scmp.eq.s32.totalorder %s28, 1
      %p212 = por %p210, %p211
      %p214 = scmp.ne.s32.totalorder %s199, %s213
      %p215 = scmp.eq.s32.totalorder %s28, 0
      %p216 = por %p214, %p215
      %s217 = ssub.s32 %s29, %s41
      %s218 = ssub.s32 %s30, %s37
      %s219 = sor.u32 %s217, %s218
      %p220 = scmp.eq.s32.totalorder %s219, 0
      %s222 = sadd.s32 %s221, 1
      %s223 = scalar_select %p220, %s221, %s222
      %p226 = pneg %p220
      %p227 = scmp.eq.s32.totalorder %s22, 1
      %p228 = por %p226, %p227
      %p229 = scmp.ne.s32.totalorder %s221, %s224
      %p230 = scmp.eq.s32.totalorder %s22, 0
      %p231 = por %p229, %p230
      %p232 = scmp.ne.s32.totalorder %s221, %s224
      %p233 = scmp.eq.s32.totalorder %s27, 1
      %p234 = por %p232, %p233
      %p235 = scmp.ne.s32.totalorder %s224, %s225
      %p236 = scmp.eq.s32.totalorder %s27, 0
      %p237 = por %p235, %p236
      %p238 = scmp.ne.s32.totalorder %s224, %s225
      %p239 = scmp.eq.s32.totalorder %s28, 1
      %p240 = por %p238, %p239
      %p242 = scmp.ne.s32.totalorder %s225, %s241
      %p243 = scmp.eq.s32.totalorder %s28, 0
      %p244 = por %p242, %p243
      %p245 = scmp.le.s32.totalorder 1, %s22
      %p246 = scmp.lt.s32.totalorder %s22, 3
      %p247 = pnand %p245, %p246
      %p248 = pneg %p247
      // Predicated region
      $region9: #{tpu_custom_call.1} parent=5 // pred_check
        _
      $region10: #{tpu_custom_call.1} parent=5 // pred_check_branch
        %250 = sbr.rel (%p247) target = $region12
      $region11: #{tpu_custom_call.1} parent=5 // pred_region
        %s251 = ssub.s32 %s22, 1
        // Predicated region
        $region13: #{tpu_custom_call.1} parent=11 // pred_check
          %p252 = pneg %p83
        $region14: #{tpu_custom_call.1} parent=11 // pred_check_branch
          %254 = sbr.rel (%p252) target = $region16
        $region15: #{tpu_custom_call.1} parent=11 // pred_region
          _
        $region16: #{tpu_custom_call.1} parent=11 // pred_fallthru
          _
        // Predicated region
        $region17: #{tpu_custom_call.1} parent=11 // pred_check
          %p255 = pneg %p104
        $region18: #{tpu_custom_call.1} parent=11 // pred_check_branch
          %257 = sbr.rel (%p255) target = $region20
        $region19: #{tpu_custom_call.1} parent=11 // pred_region
          _
        $region20: #{tpu_custom_call.1} parent=11 // pred_fallthru
          _
        // Predicated region
        $region21: #{tpu_custom_call.1} parent=11 // pred_check
          %p258 = pneg %p125
        $region22: #{tpu_custom_call.1} parent=11 // pred_check_branch
          %260 = sbr.rel (%p258) target = $region24
        $region23: #{tpu_custom_call.1} parent=11 // pred_region
          %s262 = ssub.s32 9216, 9216
          %263 = vsyncadd [#allocation8], %s262
          %s264 = sshll.u32 [#allocation7], 4
          %s265 = int_to_ptr.vmem [resolvable:$true] %s264
          %270 = dma.hbm_to_vmem [thread:$0]  %s3, 9216, %s265, [#allocation8], 64, 64, 4
        $region24: #{tpu_custom_call.1} parent=11 // pred_fallthru
          _
        // Predicated region
        $region25: #{tpu_custom_call.1} parent=11 // pred_check
          %p271 = pneg %p146
        $region26: #{tpu_custom_call.1} parent=11 // pred_check_branch
          %273 = sbr.rel (%p271) target = $region28
        $region27: #{tpu_custom_call.1} parent=11 // pred_region
          _
        $region28: #{tpu_custom_call.1} parent=11 // pred_fallthru
          _
        // Predicated region
        $region29: #{tpu_custom_call.1} parent=11 // pred_check
          %p274 = pneg %p167
        $region30: #{tpu_custom_call.1} parent=11 // pred_check_branch
          %276 = sbr.rel (%p274) target = $region32
        $region31: #{tpu_custom_call.1} parent=11 // pred_region
          _
        $region32: #{tpu_custom_call.1} parent=11 // pred_fallthru
          _
        // Predicated region
        $region33: #{tpu_custom_call.1} parent=11 // pred_check
          %p277 = pneg %p188
        $region34: #{tpu_custom_call.1} parent=11 // pred_check_branch
          %279 = sbr.rel (%p277) target = $region36
        $region35: #{tpu_custom_call.1} parent=11 // pred_region
          %s281 = ssub.s32 9216, 9216
          %282 = vsyncadd [#allocation8], %s281
          %s283 = sshll.u32 [#allocation9], 4
          %s284 = int_to_ptr.vmem [resolvable:$true] %s283
          %289 = dma.hbm_to_vmem [thread:$0]  %s6, 9216, %s284, [#allocation8], 64, 64, 4
        $region36: #{tpu_custom_call.1} parent=11 // pred_fallthru
          _
        // Predicated region
        $region37: #{tpu_custom_call.1} parent=11 // pred_check
          %p290 = pneg %p209
        $region38: #{tpu_custom_call.1} parent=11 // pred_check_branch
          %292 = sbr.rel (%p290) target = $region40
        $region39: #{tpu_custom_call.1} parent=11 // pred_region
          %s294 = ssub.s32 1024, 1024
          %295 = vsyncadd [#allocation11], %s294
          %s296 = sshll.u32 [#allocation10], 4
          %s297 = int_to_ptr.vmem [resolvable:$true] %s296
          %302 = dma.hbm_to_vmem [thread:$0]  %s7, 1024, %s297, [#allocation11], 64, 64, 4
        $region40: #{tpu_custom_call.1} parent=11 // pred_fallthru
          _
      $region12: #{tpu_custom_call.1} parent=5 // pred_fallthru
        _
      %p303 = scmp.lt.s32.totalorder %s22, 2
      // Predicated region
      $region41: #{tpu_custom_call.1} parent=5 // pred_check
        %p304 = pneg %p303
      $region42: #{tpu_custom_call.1} parent=5 // pred_check_branch
        %306 = sbr.rel (%p304) target = $region44
      $region43: #{tpu_custom_call.1} parent=5 // pred_region
        // Predicated region
        $region45: #{tpu_custom_call.1} parent=43 // pred_check
          %p307 = pneg %p56
        $region46: #{tpu_custom_call.1} parent=43 // pred_check_branch
          %309 = sbr.rel (%p307) target = $region48
        $region47: #{tpu_custom_call.1} parent=43 // pred_region
          %s310 = sand.u32 %s46, 1
          %s311 = scalar_lea.sflag [#allocation5], %s310
          %s312 = sand.u32 %s46, 1
          %s313 = smul.addr %s312, 32
          %s314 = scalar_lea.vmem [#allocation4], %s313
          %s316 = ssub.s32 512, 512
          %317 = vsyncadd %s311, %s316
          %s318 = smul.addr %s30, 4
          %s319 = smul.addr %s29, 4
          %s320 = sadd.s32 %s318, %s319
          %s321 = smul.addr %s320, 128
          %s322 = scalar_lea.hbm %s0, %s321
          %s323 = sshll.u32 %s314, 4
          %s324 = int_to_ptr.vmem [resolvable:$true] %s323
          %329 = dma.hbm_to_vmem [thread:$0]  %s322, 512, %s324, %s311, 128, 128, 8
        $region48: #{tpu_custom_call.1} parent=43 // pred_fallthru
          _
      $region44: #{tpu_custom_call.1} parent=5 // pred_fallthru
        _
      %p330 = scmp.le.s32.totalorder 1, %s22
      %p331 = scmp.lt.s32.totalorder %s22, 3
      %p332 = pnand %p330, %p331
      %p333 = pneg %p332
      // Predicated region
      $region49: #{tpu_custom_call.1} parent=5 // pred_check
        _
      $region50: #{tpu_custom_call.1} parent=5 // pred_check_branch
        %335 = sbr.rel (%p332) target = $region52
      $region51: #{tpu_custom_call.1} parent=5 // pred_region
        %s336 = ssub.s32 %s22, 1
        %s337 = sand.u32 %s49, 1
        %s338 = scalar_lea.sflag [#allocation5], %s337
        %s339 = sand.u32 %s49, 1
        %s340 = smul.addr %s339, 32
        %s341 = scalar_lea.vmem [#allocation4], %s340
        // Predicated region
        $region53: #{tpu_custom_call.1} parent=51 // pred_check
          %p342 = pneg %p62
        $region54: #{tpu_custom_call.1} parent=51 // pred_check_branch
          %344 = sbr.rel (%p342) target = $region56
        $region55: #{tpu_custom_call.1} parent=51 // pred_region
          %345 = dma.done %s338, 512
        $region56: #{tpu_custom_call.1} parent=51 // pred_fallthru
          _
        // Predicated region
        $region57: #{tpu_custom_call.1} parent=51 // pred_check
          %p346 = pneg %p125
        $region58: #{tpu_custom_call.1} parent=51 // pred_check_branch
          %348 = sbr.rel (%p346) target = $region60
        $region59: #{tpu_custom_call.1} parent=51 // pred_region
          %349 = dma.done [#allocation8], 9216
        $region60: #{tpu_custom_call.1} parent=51 // pred_fallthru
          _
        // Predicated region
        $region61: #{tpu_custom_call.1} parent=51 // pred_check
          %p350 = pneg %p188
        $region62: #{tpu_custom_call.1} parent=51 // pred_check_branch
          %352 = sbr.rel (%p350) target = $region64
        $region63: #{tpu_custom_call.1} parent=51 // pred_region
          %353 = dma.done [#allocation8], 9216
        $region64: #{tpu_custom_call.1} parent=51 // pred_fallthru
          _
        // Predicated region
        $region65: #{tpu_custom_call.1} parent=51 // pred_check
          %p354 = pneg %p209
        $region66: #{tpu_custom_call.1} parent=51 // pred_check_branch
          %356 = sbr.rel (%p354) target = $region68
        $region67: #{tpu_custom_call.1} parent=51 // pred_region
          %357 = dma.done [#allocation11], 1024
        $region68: #{tpu_custom_call.1} parent=51 // pred_fallthru
          _
        %s358 = sand.u32 %s49, 1
        %s359 = scalar_lea.sflag [#allocation5], %s358
        %s360 = sand.u32 %s49, 1
        %s361 = smul.addr %s360, 32
        %s362 = scalar_lea.vmem [#allocation4], %s361
        %p363 = pneg %p62
        %p364 = pneg %p59
        %p365 = pneg %p83
        %p366 = pneg %p80
        %p367 = pneg %p104
        %p368 = pneg %p101
        %p369 = pneg %p125
        %p370 = pneg %p122
        %p371 = pneg %p146
        %p372 = pneg %p143
        %p373 = pneg %p167
        %p374 = pneg %p164
        %p375 = pneg %p188
        %p376 = pneg %p185
        %p377 = pneg %p209
        %p378 = pneg %p206
        %p379 = pneg %p237
        %p380 = pneg %p234
        %s381 = sand.u32 %s224, 1
        %s382 = scalar_lea.sflag [#allocation6], %s381
        %s383 = sand.u32 %s224, 1
        %s384 = smul.addr %s383, 16
        %s385 = scalar_lea.vmem [#allocation12], %s384
        %s386 = smul.u32 2, %s32
        %s388 = smul.u32 %s32, 16
        %s389 = ssub.s32 %s388, 8
        %v390 = vld [vmem:[%s341] sm:$0xff]
        %v391 = vld [vmem:[%s341 + $0x8] sm:$0xff]
        %v392 = vld [vmem:[%s341 + $0x10] sm:$0xff]
        %v393 = vld [vmem:[%s341 + $0x18] sm:$0xff]
        %v394 = vlaneseq
        %v395 = vshrl.u32 %v394, 7
        %v396 = vadd.s32 %v395, 8
        %v397 = vadd.s32 %v395, 16
        %v398 = vadd.s32 %v395, 24
        %v399 = vstv %s389
        %v400 = vadd.s32 %v399, %v395
        %v401 = vadd.s32 %v399, %v396
        %v402 = vadd.s32 %v399, %v397
        %v403 = vadd.s32 %v399, %v398
        %vm404 = vcmp.ge.s32.totalorder %v400, 0
        %vm405 = vcmp.ge.s32.totalorder %v401, 0
        %vm406 = vcmp.ge.s32.totalorder %v402, 0
        %vm407 = vcmp.ge.s32.totalorder %v403, 0
        %vm408 = vcmp.lt.s32.totalorder %v400, 16
        %vm409 = vcmp.lt.s32.totalorder %v401, 16
        %vm410 = vcmp.lt.s32.totalorder %v402, 16
        %vm411 = vcmp.lt.s32.totalorder %v403, 16
        %vm412 = vmand %vm404, %vm408
        %vm413 = vmand %vm405, %vm409
        %vm414 = vmand %vm406, %vm410
        %vm415 = vmand %vm407, %vm411
        %v416 = vld [vmem:[%s1] sm:$0x1]
        %v418 = vlaneseq
        %v419 = vshrl.u32 %v418, 7
        %v420 = vsub.s32 0, %v419
        %v421 = vrot.slane %v416, %v420
        %v423 = vmul.f32 %v390, %v421
        %v424 = vmul.f32 %v391, %v421
        %v425 = vmul.f32 %v392, %v421
        %v426 = vmul.f32 %v393, %v421
        %v427 = vld [vmem:[%s2] sm:$0x1]
        %v429 = vlaneseq
        %v430 = vshrl.u32 %v429, 7
        %v431 = vsub.s32 0, %v430
        %v432 = vrot.slane %v427, %v431
        %v434 = vadd.f32 %v423, %v432
        %v435 = vadd.f32 %v424, %v432
        %v436 = vadd.f32 %v425, %v432
        %v437 = vadd.f32 %v426, %v432
        %v438 = vmax.f32 %v434, 0.0
        %v439 = vmax.f32 %v435, 0.0
        %v440 = vmax.f32 %v436, 0.0
        %v441 = vmax.f32 %v437, 0.0
        %v442 = vsel %vm412, 1, 0
        %v443 = vsel %vm413, 1, 0
        %v444 = vsel %vm414, 1, 0
        %v445 = vsel %vm415, 1, 0
        %vm446 = vcmp.eq.s32.totalorder %v442, 1
        %vm447 = vcmp.eq.s32.totalorder %v443, 1
        %vm448 = vcmp.eq.s32.totalorder %v444, 1
        %vm449 = vcmp.eq.s32.totalorder %v445, 1
        %v450 = vsel %vm446, %v438, 0.0
        %v451 = vsel %vm447, %v439, 0.0
        %v452 = vsel %vm448, %v440, 0.0
        %v453 = vsel %vm449, %v441, 0.0
        %v454 = vpack.c.bf16 %v451, %v450
        %v455 = vpack.c.bf16 %v453, %v452
        %v458 = vunpack.c.l.b16 %v454
        %v459 = vunpack.c.h.b16 %v454
        %v460 = vunpack.c.l.b16 %v455
        %v461 = vpack.c.b16 %v458, %v458
        %v462 = vpack.c.b16 %v459, %v459
        %v463 = vpack.c.b16 %v460, %v460
        %467 = vst [vmem:[#allocation2] sm:$0xf] %v461
        %468 = vst [vmem:[#allocation2 + $0x24] sm:$0xf] %v462
        %469 = vst [vmem:[#allocation2 + $0x48] sm:$0xf] %v463
        %v470 = vunpack.c.h.b16 %v455
        %v471 = vpack.c.b16 %v470, %v470
        %vm472 = vsmask.f32 3328
        %vm473 = vsmask.f32 7440
        %vm474 = vmor %vm472, %vm473
        %v476 = vshrl.u32 %v461, 16
        %v478 = vrot.slane %v476, 4
        %v479 = vshll.u32 %v461, 16
        %v481 = vrot.slane %v479, 5
        %v482 = vor.u32 %v478, %v481
        %v483 = vrot.slane %v482, 4
        %v485 = vshll.u32 %v462, 16
        %v487 = vrot.slane %v485, 5
        %v488 = vsel %vm474, %v483, %v487
        %v489 = vshrl.u32 %v462, 16
        %v491 = vrot.slane %v489, 4
        %v492 = vor.u32 %v491, %v487
        %v493 = vrot.slane %v492, 4
        %v495 = vshll.u32 %v463, 16
        %v497 = vrot.slane %v495, 5
        %v498 = vsel %vm474, %v493, %v497
        %v499 = vshrl.u32 %v463, 16
        %v501 = vrot.slane %v499, 4
        %v502 = vor.u32 %v501, %v497
        %v503 = vrot.slane %v502, 4
        %v505 = vshll.u32 %v471, 16
        %v507 = vrot.slane %v505, 5
        %v508 = vsel %vm474, %v503, %v507
        %512 = vst [vmem:[#allocation2 + $0x4] sm:$0xf] %v488
        %513 = vst [vmem:[#allocation2 + $0x28] sm:$0xf] %v498
        %514 = vst [vmem:[#allocation2 + $0x4c] sm:$0xf] %v508
        %vm515 = vcmask 1042432
        %vm516 = vcmask 1046532
        %vm517 = vmor %vm515, %vm516
        %v518 = vrot.slane %v461, 5
        %v519 = vrot.slane %v518, 4
        %v520 = vrot.slane %v462, 5
        %v521 = vsel %vm517, %v519, %v520
        %v522 = vrot.slane %v520, 4
        %v523 = vrot.slane %v463, 5
        %v524 = vsel %vm517, %v522, %v523
        %v525 = vrot.slane %v523, 4
        %v526 = vrot.slane %v471, 5
        %v527 = vsel %vm517, %v525, %v526
        %531 = vst [vmem:[#allocation2 + $0x8] sm:$0xf] %v521
        %532 = vst [vmem:[#allocation2 + $0x2c] sm:$0xf] %v524
        %533 = vst [vmem:[#allocation2 + $0x50] sm:$0xf] %v527
        %vm534 = vsmask.f32 2304
        %vm535 = vsmask.f32 6416
        %vm536 = vmor %vm534, %vm535
        %v537 = vrot.slane %v476, 5
        %v538 = vrot.slane %v479, 6
        %v539 = vor.u32 %v537, %v538
        %v540 = vrot.slane %v539, 4
        %v541 = vrot.slane %v489, 5
        %v542 = vrot.slane %v485, 6
        %v543 = vor.u32 %v541, %v542
        %v544 = vsel %vm536, %v540, %v543
        %v545 = vrot.slane %v543, 4
        %v546 = vrot.slane %v499, 5
        %v547 = vrot.slane %v495, 6
        %v548 = vor.u32 %v546, %v547
        %v549 = vsel %vm536, %v545, %v548
        %v550 = vrot.slane %v548, 4
        %v551 = vshrl.u32 %v471, 16
        %v553 = vrot.slane %v551, 5
        %v554 = vrot.slane %v505, 6
        %v555 = vor.u32 %v553, %v554
        %v556 = vsel %vm536, %v550, %v555
        %560 = vst [vmem:[#allocation2 + $0xc] sm:$0xf] %v544
        %561 = vst [vmem:[#allocation2 + $0x30] sm:$0xf] %v549
        %562 = vst [vmem:[#allocation2 + $0x54] sm:$0xf] %v556
        %vm563 = vcmask 1041408
        %vm564 = vcmask 1045508
        %vm565 = vmor %vm563, %vm564
        %v566 = vrot.slane %v461, 6
        %v567 = vrot.slane %v566, 4
        %v568 = vrot.slane %v462, 6
        %v569 = vsel %vm565, %v567, %v568
        %v570 = vrot.slane %v568, 4
        %v571 = vrot.slane %v463, 6
        %v572 = vsel %vm565, %v570, %v571
        %v573 = vrot.slane %v571, 4
        %v574 = vrot.slane %v471, 6
        %v575 = vsel %vm565, %v573, %v574
        %579 = vst [vmem:[#allocation2 + $0x10] sm:$0xf] %v569
        %580 = vst [vmem:[#allocation2 + $0x34] sm:$0xf] %v572
        %581 = vst [vmem:[#allocation2 + $0x58] sm:$0xf] %v575
        %vm582 = vsmask.f32 1280
        %vm583 = vsmask.f32 5392
        %vm584 = vmor %vm582, %vm583
        %v585 = vrot.slane %v476, 6
        %v586 = vrot.slane %v479, 7
        %v587 = vor.u32 %v585, %v586
        %v588 = vrot.slane %v587, 4
        %v589 = vrot.slane %v489, 6
        %v590 = vrot.slane %v485, 7
        %v591 = vor.u32 %v589, %v590
        %v592 = vsel %vm584, %v588, %v591
        %v593 = vrot.slane %v591, 4
        %v594 = vrot.slane %v499, 6
        %v595 = vrot.slane %v495, 7
        %v596 = vor.u32 %v594, %v595
        %v597 = vsel %vm584, %v593, %v596
        %v598 = vrot.slane %v596, 4
        %v599 = vrot.slane %v551, 6
        %v600 = vrot.slane %v505, 7
        %v601 = vor.u32 %v599, %v600
        %v602 = vsel %vm584, %v598, %v601
        %606 = vst [vmem:[#allocation2 + $0x14] sm:$0xf] %v592
        %607 = vst [vmem:[#allocation2 + $0x38] sm:$0xf] %v597
        %608 = vst [vmem:[#allocation2 + $0x5c] sm:$0xf] %v602
        %vm609 = vcmask 1040384
        %vm610 = vcmask 1044484
        %vm611 = vmor %vm609, %vm610
        %v612 = vrot.slane %v461, 7
        %v613 = vrot.slane %v612, 4
        %v614 = vrot.slane %v462, 7
        %v615 = vsel %vm611, %v613, %v614
        %v616 = vrot.slane %v614, 4
        %v617 = vrot.slane %v463, 7
        %v618 = vsel %vm611, %v616, %v617
        %v619 = vrot.slane %v617, 4
        %v620 = vrot.slane %v471, 7
        %v621 = vsel %vm611, %v619, %v620
        %625 = vst [vmem:[#allocation2 + $0x18] sm:$0xf] %v615
        %626 = vst [vmem:[#allocation2 + $0x3c] sm:$0xf] %v618
        %627 = vst [vmem:[#allocation2 + $0x60] sm:$0xf] %v621
        %vm628 = vsmask.f32 256
        %vm629 = vsmask.f32 4368
        %vm630 = vmor %vm628, %vm629
        %v631 = vrot.slane %v476, 7
        %v632 = vrot.slane %v631, 4
        %v633 = vrot.slane %v489, 7
        %v634 = vor.u32 %v633, %v485
        %v635 = vsel %vm630, %v632, %v634
        %v636 = vrot.slane %v633, 4
        %v637 = vrot.slane %v499, 7
        %v638 = vor.u32 %v637, %v495
        %v639 = vsel %vm630, %v636, %v638
        %v640 = vrot.slane %v637, 4
        %v641 = vrot.slane %v551, 7
        %v642 = vor.u32 %v641, %v505
        %v643 = vsel %vm630, %v640, %v642
        %647 = vst [vmem:[#allocation2 + $0x1c] sm:$0xf] %v635
        %648 = vst [vmem:[#allocation2 + $0x40] sm:$0xf] %v639
        %649 = vst [vmem:[#allocation2 + $0x64] sm:$0xf] %v643
        %651 = vst [vmem:[#allocation2 + $0x20] sm:$0xf] %v462
        %652 = vst [vmem:[#allocation2 + $0x44] sm:$0xf] %v463
        %653 = vst [vmem:[#allocation2 + $0x68] sm:$0xf] %v471
        %v654 = vld [vmem:[#allocation2] sm:$0xff]
        %v655 = vld [vmem:[#allocation2 + $0x8] sm:$0xff]
        %v656 = vld [vmem:[#allocation2 + $0x10] sm:$0xff]
        %v657 = vld [vmem:[#allocation2 + $0x18] sm:$0xff]
        %v658 = vld [vmem:[#allocation2 + $0x20] sm:$0xf]
        %v659 = vld [vmem:[#allocation2 + $0x24] sm:$0xff]
        %v660 = vld [vmem:[#allocation2 + $0x2c] sm:$0xff]
        %v661 = vld [vmem:[#allocation2 + $0x34] sm:$0xff]
        %v662 = vld [vmem:[#allocation2 + $0x3c] sm:$0xff]
        %v663 = vld [vmem:[#allocation2 + $0x44] sm:$0xf]
        %v664 = vld [vmem:[#allocation2 + $0x48] sm:$0xff]
        %v665 = vld [vmem:[#allocation2 + $0x50] sm:$0xff]
        %v666 = vld [vmem:[#allocation2 + $0x58] sm:$0xff]
        %v667 = vld [vmem:[#allocation2 + $0x60] sm:$0xff]
        %v668 = vld [vmem:[#allocation2 + $0x68] sm:$0xf]
        %v669 = vld [vmem:[#allocation7] sm:$0xf]
        %v670 = vld [vmem:[#allocation7 + $0x4] sm:$0xf]
        %v671 = vld [vmem:[#allocation7 + $0x8] sm:$0xf]
        %v672 = vld [vmem:[#allocation7 + $0xc] sm:$0xf]
        %v673 = vld [vmem:[#allocation7 + $0x10] sm:$0xf]
        %v674 = vld [vmem:[#allocation7 + $0x14] sm:$0xf]
        %v675 = vld [vmem:[#allocation7 + $0x18] sm:$0xf]
        %v676 = vld [vmem:[#allocation7 + $0x1c] sm:$0xf]
        %v677 = vld [vmem:[#allocation7 + $0x20] sm:$0xf]
        %v678 = vld [vmem:[#allocation7 + $0x24] sm:$0xf]
        %v679 = vld [vmem:[#allocation7 + $0x28] sm:$0xf]
        %v680 = vld [vmem:[#allocation7 + $0x2c] sm:$0xf]
        %v681 = vld [vmem:[#allocation7 + $0x30] sm:$0xf]
        %v682 = vld [vmem:[#allocation7 + $0x34] sm:$0xf]
        %v683 = vld [vmem:[#allocation7 + $0x38] sm:$0xf]
        %v684 = vld [vmem:[#allocation7 + $0x3c] sm:$0xf]
        %v685 = vld [vmem:[#allocation7 + $0x40] sm:$0xf]
        %v686 = vld [vmem:[#allocation7 + $0x44] sm:$0xf]
        %v687 = vld [vmem:[#allocation7 + $0x48] sm:$0xf]
        %v688 = vld [vmem:[#allocation7 + $0x4c] sm:$0xf]
        %v689 = vld [vmem:[#allocation7 + $0x50] sm:$0xf]
        %v690 = vld [vmem:[#allocation7 + $0x54] sm:$0xf]
        %v691 = vld [vmem:[#allocation7 + $0x58] sm:$0xf]
        %v692 = vld [vmem:[#allocation7 + $0x5c] sm:$0xf]
        %v693 = vld [vmem:[#allocation7 + $0x60] sm:$0xf]
        %v694 = vld [vmem:[#allocation7 + $0x64] sm:$0xf]
        %v695 = vld [vmem:[#allocation7 + $0x68] sm:$0xf]
        %v696 = vld [vmem:[#allocation7 + $0x6c] sm:$0xf]
        %v697 = vld [vmem:[#allocation7 + $0x70] sm:$0xf]
        %v698 = vld [vmem:[#allocation7 + $0x74] sm:$0xf]
        %v699 = vld [vmem:[#allocation7 + $0x78] sm:$0xf]
        %v700 = vld [vmem:[#allocation7 + $0x7c] sm:$0xf]
        %v701 = vld [vmem:[#allocation7 + $0x80] sm:$0xf]
        %v702 = vld [vmem:[#allocation7 + $0x84] sm:$0xf]
        %v703 = vld [vmem:[#allocation7 + $0x88] sm:$0xf]
        %v704 = vld [vmem:[#allocation7 + $0x8c] sm:$0xf]
        %v705 = vld [vmem:[#allocation7 + $0x90] sm:$0xf]
        %v706 = vld [vmem:[#allocation7 + $0x94] sm:$0xf]
        %v707 = vld [vmem:[#allocation7 + $0x98] sm:$0xf]
        %v708 = vld [vmem:[#allocation7 + $0x9c] sm:$0xf]
        %v709 = vld [vmem:[#allocation7 + $0xa0] sm:$0xf]
        %v710 = vld [vmem:[#allocation7 + $0xa4] sm:$0xf]
        %v711 = vld [vmem:[#allocation7 + $0xa8] sm:$0xf]
        %v712 = vld [vmem:[#allocation7 + $0xac] sm:$0xf]
        %v713 = vld [vmem:[#allocation7 + $0xb0] sm:$0xf]
        %v714 = vld [vmem:[#allocation7 + $0xb4] sm:$0xf]
        %v715 = vld [vmem:[#allocation7 + $0xb8] sm:$0xf]
        %v716 = vld [vmem:[#allocation7 + $0xbc] sm:$0xf]
        %v717 = vld [vmem:[#allocation7 + $0xc0] sm:$0xf]
        %v718 = vld [vmem:[#allocation7 + $0xc4] sm:$0xf]
        %v719 = vld [vmem:[#allocation7 + $0xc8] sm:$0xf]
        %v720 = vld [vmem:[#allocation7 + $0xcc] sm:$0xf]
        %v721 = vld [vmem:[#allocation7 + $0xd0] sm:$0xf]
        %v722 = vld [vmem:[#allocation7 + $0xd4] sm:$0xf]
        %v723 = vld [vmem:[#allocation7 + $0xd8] sm:$0xf]
        %v724 = vld [vmem:[#allocation7 + $0xdc] sm:$0xf]
        %v725 = vld [vmem:[#allocation7 + $0xe0] sm:$0xf]
        %v726 = vld [vmem:[#allocation7 + $0xe4] sm:$0xf]
        %v727 = vld [vmem:[#allocation7 + $0xe8] sm:$0xf]
        %v728 = vld [vmem:[#allocation7 + $0xec] sm:$0xf]
        %v729 = vld [vmem:[#allocation7 + $0xf0] sm:$0xf]
        %v730 = vld [vmem:[#allocation7 + $0xf4] sm:$0xf]
        %v731 = vld [vmem:[#allocation7 + $0xf8] sm:$0xf]
        %v732 = vld [vmem:[#allocation7 + $0xfc] sm:$0xf]
        %v733 = vld [vmem:[#allocation7 + $0x100] sm:$0xf]
        %v734 = vld [vmem:[#allocation7 + $0x104] sm:$0xf]
        %v735 = vld [vmem:[#allocation7 + $0x108] sm:$0xf]
        %v736 = vld [vmem:[#allocation7 + $0x10c] sm:$0xf]
        %v737 = vld [vmem:[#allocation7 + $0x110] sm:$0xf]
        %v738 = vld [vmem:[#allocation7 + $0x114] sm:$0xf]
        %v739 = vld [vmem:[#allocation7 + $0x118] sm:$0xf]
        %v740 = vld [vmem:[#allocation7 + $0x11c] sm:$0xf]
        %v741 = vld [vmem:[#allocation7 + $0x120] sm:$0xf]
        %v742 = vld [vmem:[#allocation7 + $0x124] sm:$0xf]
        %v743 = vld [vmem:[#allocation7 + $0x128] sm:$0xf]
        %v744 = vld [vmem:[#allocation7 + $0x12c] sm:$0xf]
        %v745 = vld [vmem:[#allocation7 + $0x130] sm:$0xf]
        %v746 = vld [vmem:[#allocation7 + $0x134] sm:$0xf]
        %v747 = vld [vmem:[#allocation7 + $0x138] sm:$0xf]
        %v748 = vld [vmem:[#allocation7 + $0x13c] sm:$0xf]
        %v749 = vld [vmem:[#allocation7 + $0x140] sm:$0xf]
        %v750 = vld [vmem:[#allocation7 + $0x144] sm:$0xf]
        %v751 = vld [vmem:[#allocation7 + $0x148] sm:$0xf]
        %v752 = vld [vmem:[#allocation7 + $0x14c] sm:$0xf]
        %v753 = vld [vmem:[#allocation7 + $0x150] sm:$0xf]
        %v754 = vld [vmem:[#allocation7 + $0x154] sm:$0xf]
        %v755 = vld [vmem:[#allocation7 + $0x158] sm:$0xf]
        %v756 = vld [vmem:[#allocation7 + $0x15c] sm:$0xf]
        %v757 = vld [vmem:[#allocation7 + $0x160] sm:$0xf]
        %v758 = vld [vmem:[#allocation7 + $0x164] sm:$0xf]
        %v759 = vld [vmem:[#allocation7 + $0x168] sm:$0xf]
        %v760 = vld [vmem:[#allocation7 + $0x16c] sm:$0xf]
        %v761 = vld [vmem:[#allocation7 + $0x170] sm:$0xf]
        %v762 = vld [vmem:[#allocation7 + $0x174] sm:$0xf]
        %v763 = vld [vmem:[#allocation7 + $0x178] sm:$0xf]
        %v764 = vld [vmem:[#allocation7 + $0x17c] sm:$0xf]
        %v765 = vld [vmem:[#allocation7 + $0x180] sm:$0xf]
        %v766 = vld [vmem:[#allocation7 + $0x184] sm:$0xf]
        %v767 = vld [vmem:[#allocation7 + $0x188] sm:$0xf]
        %v768 = vld [vmem:[#allocation7 + $0x18c] sm:$0xf]
        %v769 = vld [vmem:[#allocation7 + $0x190] sm:$0xf]
        %v770 = vld [vmem:[#allocation7 + $0x194] sm:$0xf]
        %v771 = vld [vmem:[#allocation7 + $0x198] sm:$0xf]
        %v772 = vld [vmem:[#allocation7 + $0x19c] sm:$0xf]
        %v773 = vld [vmem:[#allocation7 + $0x1a0] sm:$0xf]
        %v774 = vld [vmem:[#allocation7 + $0x1a4] sm:$0xf]
        %v775 = vld [vmem:[#allocation7 + $0x1a8] sm:$0xf]
        %v776 = vld [vmem:[#allocation7 + $0x1ac] sm:$0xf]
        %v777 = vld [vmem:[#allocation7 + $0x1b0] sm:$0xf]
        %v778 = vld [vmem:[#allocation7 + $0x1b4] sm:$0xf]
        %v779 = vld [vmem:[#allocation7 + $0x1b8] sm:$0xf]
        %v780 = vld [vmem:[#allocation7 + $0x1bc] sm:$0xf]
        %v781 = vld [vmem:[#allocation7 + $0x1c0] sm:$0xf]
        %v782 = vld [vmem:[#allocation7 + $0x1c4] sm:$0xf]
        %v783 = vld [vmem:[#allocation7 + $0x1c8] sm:$0xf]
        %v784 = vld [vmem:[#allocation7 + $0x1cc] sm:$0xf]
        %v785 = vld [vmem:[#allocation7 + $0x1d0] sm:$0xf]
        %v786 = vld [vmem:[#allocation7 + $0x1d4] sm:$0xf]
        %v787 = vld [vmem:[#allocation7 + $0x1d8] sm:$0xf]
        %v788 = vld [vmem:[#allocation7 + $0x1dc] sm:$0xf]
        %v789 = vld [vmem:[#allocation7 + $0x1e0] sm:$0xf]
        %v790 = vld [vmem:[#allocation7 + $0x1e4] sm:$0xf]
        %v791 = vld [vmem:[#allocation7 + $0x1e8] sm:$0xf]
        %v792 = vld [vmem:[#allocation7 + $0x1ec] sm:$0xf]
        %v793 = vld [vmem:[#allocation7 + $0x1f0] sm:$0xf]
        %v794 = vld [vmem:[#allocation7 + $0x1f4] sm:$0xf]
        %v795 = vld [vmem:[#allocation7 + $0x1f8] sm:$0xf]
        %v796 = vld [vmem:[#allocation7 + $0x1fc] sm:$0xf]
        %v797 = vld [vmem:[#allocation7 + $0x200] sm:$0xf]
        %v798 = vld [vmem:[#allocation7 + $0x204] sm:$0xf]
        %v799 = vld [vmem:[#allocation7 + $0x208] sm:$0xf]
        %v800 = vld [vmem:[#allocation7 + $0x20c] sm:$0xf]
        %v801 = vld [vmem:[#allocation7 + $0x210] sm:$0xf]
        %v802 = vld [vmem:[#allocation7 + $0x214] sm:$0xf]
        %v803 = vld [vmem:[#allocation7 + $0x218] sm:$0xf]
        %v804 = vld [vmem:[#allocation7 + $0x21c] sm:$0xf]
        %v805 = vld [vmem:[#allocation7 + $0x220] sm:$0xf]
        %v806 = vld [vmem:[#allocation7 + $0x224] sm:$0xf]
        %v807 = vld [vmem:[#allocation7 + $0x228] sm:$0xf]
        %v808 = vld [vmem:[#allocation7 + $0x22c] sm:$0xf]
        %v809 = vld [vmem:[#allocation7 + $0x230] sm:$0xf]
        %v810 = vld [vmem:[#allocation7 + $0x234] sm:$0xf]
        %v811 = vld [vmem:[#allocation7 + $0x238] sm:$0xf]
        %v812 = vld [vmem:[#allocation7 + $0x23c] sm:$0xf]
        %v828 = vunpack.c.l.b16 %v654
        %v829 = vunpack.c.h.b16 %v654
        %v830 = vunpack.c.l.b16 %v655
        %v831 = vunpack.c.h.b16 %v655
        %v832 = vunpack.c.l.b16 %v656
        %v833 = vunpack.c.h.b16 %v656
        %v834 = vunpack.c.l.b16 %v657
        %v835 = vunpack.c.h.b16 %v657
        %v836 = vunpack.c.l.b16 %v658
        %v837 = vunpack.c.l.b16 %v659
        %v838 = vunpack.c.h.b16 %v659
        %v839 = vunpack.c.l.b16 %v660
        %v840 = vunpack.c.h.b16 %v660
        %v841 = vunpack.c.l.b16 %v661
        %v842 = vunpack.c.h.b16 %v661
        %v843 = vunpack.c.l.b16 %v662
        %v844 = vunpack.c.h.b16 %v662
        %v845 = vunpack.c.l.b16 %v663
        %v846 = vunpack.c.l.b16 %v664
        %v847 = vunpack.c.h.b16 %v664
        %v848 = vunpack.c.l.b16 %v665
        %v849 = vunpack.c.h.b16 %v665
        %v850 = vunpack.c.l.b16 %v666
        %v851 = vunpack.c.h.b16 %v666
        %v852 = vunpack.c.l.b16 %v667
        %v853 = vunpack.c.h.b16 %v667
        %v854 = vunpack.c.l.b16 %v668
        %v855 = vpack.c.b16 %v837, %v828
        %v856 = vpack.c.b16 %v838, %v829
        %v857 = vpack.c.b16 %v839, %v830
        %v858 = vpack.c.b16 %v840, %v831
        %v859 = vpack.c.b16 %v841, %v832
        %v860 = vpack.c.b16 %v842, %v833
        %v861 = vpack.c.b16 %v843, %v834
        %v862 = vpack.c.b16 %v844, %v835
        %v863 = vpack.c.b16 %v845, %v836
        %v864 = vpack.c.b16 %v846, %v846
        %v865 = vpack.c.b16 %v847, %v847
        %v866 = vpack.c.b16 %v848, %v848
        %v867 = vpack.c.b16 %v849, %v849
        %v868 = vpack.c.b16 %v850, %v850
        %v869 = vpack.c.b16 %v851, %v851
        %v870 = vpack.c.b16 %v852, %v852
        %v871 = vpack.c.b16 %v853, %v853
        %v872 = vpack.c.b16 %v854, %v854
        %v1035 = vunpack.c.l.b16 %v669
        %v1036 = vunpack.c.l.b16 %v670
        %v1037 = vunpack.c.l.b16 %v671
        %v1038 = vunpack.c.l.b16 %v672
        %v1039 = vunpack.c.l.b16 %v673
        %v1040 = vunpack.c.l.b16 %v674
        %v1041 = vunpack.c.l.b16 %v675
        %v1042 = vunpack.c.l.b16 %v676
        %v1043 = vunpack.c.l.b16 %v677
        %v1044 = vunpack.c.l.b16 %v678
        %v1045 = vunpack.c.l.b16 %v679
        %v1046 = vunpack.c.l.b16 %v680
        %v1047 = vunpack.c.l.b16 %v681
        %v1048 = vunpack.c.l.b16 %v682
        %v1049 = vunpack.c.l.b16 %v683
        %v1050 = vunpack.c.l.b16 %v684
        %v1051 = vunpack.c.l.b16 %v685
        %v1052 = vunpack.c.l.b16 %v686
        %v1053 = vunpack.c.l.b16 %v687
        %v1054 = vunpack.c.l.b16 %v688
        %v1055 = vunpack.c.l.b16 %v689
        %v1056 = vunpack.c.l.b16 %v690
        %v1057 = vunpack.c.l.b16 %v691
        %v1058 = vunpack.c.l.b16 %v692
        %v1059 = vunpack.c.l.b16 %v693
        %v1060 = vunpack.c.l.b16 %v694
        %v1061 = vunpack.c.l.b16 %v695
        %v1062 = vunpack.c.l.b16 %v696
        %v1063 = vunpack.c.l.b16 %v697
        %v1064 = vunpack.c.l.b16 %v698
        %v1065 = vunpack.c.l.b16 %v699
        %v1066 = vunpack.c.l.b16 %v700
        %v1067 = vunpack.c.l.b16 %v701
        %v1068 = vunpack.c.l.b16 %v702
        %v1069 = vunpack.c.l.b16 %v703
        %v1070 = vunpack.c.l.b16 %v704
        %v1071 = vunpack.c.l.b16 %v705
        %v1072 = vunpack.c.l.b16 %v706
        %v1073 = vunpack.c.l.b16 %v707
        %v1074 = vunpack.c.l.b16 %v708
        %v1075 = vunpack.c.l.b16 %v709
        %v1076 = vunpack.c.l.b16 %v710
        %v1077 = vunpack.c.l.b16 %v711
        %v1078 = vunpack.c.l.b16 %v712
        %v1079 = vunpack.c.l.b16 %v713
        %v1080 = vunpack.c.l.b16 %v714
        %v1081 = vunpack.c.l.b16 %v715
        %v1082 = vunpack.c.l.b16 %v716
        %v1083 = vunpack.c.l.b16 %v717
        %v1084 = vunpack.c.l.b16 %v718
        %v1085 = vunpack.c.l.b16 %v719
        %v1086 = vunpack.c.l.b16 %v720
        %v1087 = vunpack.c.l.b16 %v721
        %v1088 = vunpack.c.l.b16 %v722
        %v1089 = vunpack.c.l.b16 %v723
        %v1090 = vunpack.c.l.b16 %v724
        %v1091 = vunpack.c.l.b16 %v725
        %v1092 = vunpack.c.l.b16 %v726
        %v1093 = vunpack.c.l.b16 %v727
        %v1094 = vunpack.c.l.b16 %v728
        %v1095 = vunpack.c.l.b16 %v729
        %v1096 = vunpack.c.l.b16 %v730
        %v1097 = vunpack.c.l.b16 %v731
        %v1098 = vunpack.c.l.b16 %v732
        %v1099 = vunpack.c.l.b16 %v733
        %v1100 = vunpack.c.l.b16 %v734
        %v1101 = vunpack.c.l.b16 %v735
        %v1102 = vunpack.c.l.b16 %v736
        %v1103 = vunpack.c.l.b16 %v737
        %v1104 = vunpack.c.l.b16 %v738
        %v1105 = vunpack.c.l.b16 %v739
        %v1106 = vunpack.c.l.b16 %v740
        %v1107 = vunpack.c.l.b16 %v741
        %v1108 = vunpack.c.l.b16 %v742
        %v1109 = vunpack.c.l.b16 %v743
        %v1110 = vunpack.c.l.b16 %v744
        %v1111 = vunpack.c.l.b16 %v745
        %v1112 = vunpack.c.l.b16 %v746
        %v1113 = vunpack.c.l.b16 %v747
        %v1114 = vunpack.c.l.b16 %v748
        %v1115 = vunpack.c.l.b16 %v749
        %v1116 = vunpack.c.l.b16 %v750
        %v1117 = vunpack.c.l.b16 %v751
        %v1118 = vunpack.c.l.b16 %v752
        %v1119 = vunpack.c.l.b16 %v753
        %v1120 = vunpack.c.l.b16 %v754
        %v1121 = vunpack.c.l.b16 %v755
        %v1122 = vunpack.c.l.b16 %v756
        %v1123 = vunpack.c.l.b16 %v757
        %v1124 = vunpack.c.l.b16 %v758
        %v1125 = vunpack.c.l.b16 %v759
        %v1126 = vunpack.c.l.b16 %v760
        %v1127 = vunpack.c.l.b16 %v761
        %v1128 = vunpack.c.l.b16 %v762
        %v1129 = vunpack.c.l.b16 %v763
        %v1130 = vunpack.c.l.b16 %v764
        %v1131 = vunpack.c.l.b16 %v765
        %v1132 = vunpack.c.l.b16 %v766
        %v1133 = vunpack.c.l.b16 %v767
        %v1134 = vunpack.c.l.b16 %v768
        %v1135 = vunpack.c.l.b16 %v769
        %v1136 = vunpack.c.l.b16 %v770
        %v1137 = vunpack.c.l.b16 %v771
        %v1138 = vunpack.c.l.b16 %v772
        %v1139 = vunpack.c.l.b16 %v773
        %v1140 = vunpack.c.l.b16 %v774
        %v1141 = vunpack.c.l.b16 %v775
        %v1142 = vunpack.c.l.b16 %v776
        %v1143 = vunpack.c.l.b16 %v777
        %v1144 = vunpack.c.l.b16 %v778
        %v1145 = vunpack.c.l.b16 %v779
        %v1146 = vunpack.c.l.b16 %v780
        %v1147 = vunpack.c.l.b16 %v781
        %v1148 = vunpack.c.l.b16 %v782
        %v1149 = vunpack.c.l.b16 %v783
        %v1150 = vunpack.c.l.b16 %v784
        %v1151 = vunpack.c.l.b16 %v785
        %v1152 = vunpack.c.l.b16 %v786
        %v1153 = vunpack.c.l.b16 %v787
        %v1154 = vunpack.c.l.b16 %v788
        %v1155 = vunpack.c.l.b16 %v789
        %v1156 = vunpack.c.l.b16 %v790
        %v1157 = vunpack.c.l.b16 %v791
        %v1158 = vunpack.c.l.b16 %v792
        %v1159 = vunpack.c.l.b16 %v793
        %v1160 = vunpack.c.l.b16 %v794
        %v1161 = vunpack.c.l.b16 %v795
        %v1162 = vunpack.c.l.b16 %v796
        %v1163 = vunpack.c.l.b16 %v797
        %v1164 = vunpack.c.l.b16 %v798
        %v1165 = vunpack.c.l.b16 %v799
        %v1166 = vunpack.c.l.b16 %v800
        %v1167 = vunpack.c.l.b16 %v801
        %v1168 = vunpack.c.l.b16 %v802
        %v1169 = vunpack.c.l.b16 %v803
        %v1170 = vunpack.c.l.b16 %v804
        %v1171 = vunpack.c.l.b16 %v805
        %v1172 = vunpack.c.l.b16 %v806
        %v1173 = vunpack.c.l.b16 %v807
        %v1174 = vunpack.c.l.b16 %v808
        %v1175 = vunpack.c.l.b16 %v809
        %v1176 = vunpack.c.l.b16 %v810
        %v1177 = vunpack.c.l.b16 %v811
        %v1178 = vunpack.c.l.b16 %v812
        %v1179 = vpack.c.b16 %v1036, %v1035
        %v1180 = vpack.c.b16 %v1038, %v1037
        %v1181 = vpack.c.b16 %v1040, %v1039
        %v1182 = vpack.c.b16 %v1042, %v1041
        %v1183 = vpack.c.b16 %v1044, %v1043
        %v1184 = vpack.c.b16 %v1046, %v1045
        %v1185 = vpack.c.b16 %v1048, %v1047
        %v1186 = vpack.c.b16 %v1050, %v1049
        %v1187 = vpack.c.b16 %v1052, %v1051
        %v1188 = vpack.c.b16 %v1054, %v1053
        %v1189 = vpack.c.b16 %v1056, %v1055
        %v1190 = vpack.c.b16 %v1058, %v1057
        %v1191 = vpack.c.b16 %v1060, %v1059
        %v1192 = vpack.c.b16 %v1062, %v1061
        %v1193 = vpack.c.b16 %v1064, %v1063
        %v1194 = vpack.c.b16 %v1066, %v1065
        %v1195 = vpack.c.b16 %v1068, %v1067
        %v1196 = vpack.c.b16 %v1070, %v1069
        %v1197 = vpack.c.b16 %v1072, %v1071
        %v1198 = vpack.c.b16 %v1074, %v1073
        %v1199 = vpack.c.b16 %v1076, %v1075
        %v1200 = vpack.c.b16 %v1078, %v1077
        %v1201 = vpack.c.b16 %v1080, %v1079
        %v1202 = vpack.c.b16 %v1082, %v1081
        %v1203 = vpack.c.b16 %v1084, %v1083
        %v1204 = vpack.c.b16 %v1086, %v1085
        %v1205 = vpack.c.b16 %v1088, %v1087
        %v1206 = vpack.c.b16 %v1090, %v1089
        %v1207 = vpack.c.b16 %v1092, %v1091
        %v1208 = vpack.c.b16 %v1094, %v1093
        %v1209 = vpack.c.b16 %v1096, %v1095
        %v1210 = vpack.c.b16 %v1098, %v1097
        %v1211 = vpack.c.b16 %v1100, %v1099
        %v1212 = vpack.c.b16 %v1102, %v1101
        %v1213 = vpack.c.b16 %v1104, %v1103
        %v1214 = vpack.c.b16 %v1106, %v1105
        %v1215 = vpack.c.b16 %v1108, %v1107
        %v1216 = vpack.c.b16 %v1110, %v1109
        %v1217 = vpack.c.b16 %v1112, %v1111
        %v1218 = vpack.c.b16 %v1114, %v1113
        %v1219 = vpack.c.b16 %v1116, %v1115
        %v1220 = vpack.c.b16 %v1118, %v1117
        %v1221 = vpack.c.b16 %v1120, %v1119
        %v1222 = vpack.c.b16 %v1122, %v1121
        %v1223 = vpack.c.b16 %v1124, %v1123
        %v1224 = vpack.c.b16 %v1126, %v1125
        %v1225 = vpack.c.b16 %v1128, %v1127
        %v1226 = vpack.c.b16 %v1130, %v1129
        %v1227 = vpack.c.b16 %v1132, %v1131
        %v1228 = vpack.c.b16 %v1134, %v1133
        %v1229 = vpack.c.b16 %v1136, %v1135
        %v1230 = vpack.c.b16 %v1138, %v1137
        %v1231 = vpack.c.b16 %v1140, %v1139
        %v1232 = vpack.c.b16 %v1142, %v1141
        %v1233 = vpack.c.b16 %v1144, %v1143
        %v1234 = vpack.c.b16 %v1146, %v1145
        %v1235 = vpack.c.b16 %v1148, %v1147
        %v1236 = vpack.c.b16 %v1150, %v1149
        %v1237 = vpack.c.b16 %v1152, %v1151
        %v1238 = vpack.c.b16 %v1154, %v1153
        %v1239 = vpack.c.b16 %v1156, %v1155
        %v1240 = vpack.c.b16 %v1158, %v1157
        %v1241 = vpack.c.b16 %v1160, %v1159
        %v1242 = vpack.c.b16 %v1162, %v1161
        %v1243 = vpack.c.b16 %v1164, %v1163
        %v1244 = vpack.c.b16 %v1166, %v1165
        %v1245 = vpack.c.b16 %v1168, %v1167
        %v1246 = vpack.c.b16 %v1170, %v1169
        %v1247 = vpack.c.b16 %v1172, %v1171
        %v1248 = vpack.c.b16 %v1174, %v1173
        %v1249 = vpack.c.b16 %v1176, %v1175
        %v1250 = vpack.c.b16 %v1178, %v1177
        %1323 = vmatprep.subr.bf16.mxu0 0
        %1324 = vmatpush1.bf16.msra.mxu0 %v1179
        %1325 = vmatprep.subr.bf16.mxu0 0
        %1326 = vmatpush1.bf16.msra.mxu0 %v1180
        %1327 = vmatprep.subr.bf16.mxu0 0
        %1328 = vmatpush1.bf16.msra.mxu0 %v1181
        %1329 = vmatprep.subr.bf16.mxu0 0
        %1330 = vmatpush1.bf16.msra.mxu0 %v1182
        %1331 = vmatprep.subr.bf16.mxu0 0
        %1332 = vmatpush1.bf16.msra.mxu0 %v1183
        %1333 = vmatprep.subr.bf16.mxu0 0
        %1334 = vmatpush1.bf16.msra.mxu0 %v1184
        %1335 = vmatprep.subr.bf16.mxu0 0
        %1336 = vmatpush1.bf16.msra.mxu0 %v1185
        %1337 = vmatprep.subr.bf16.mxu0 0
        %1338 = vmatpush1.bf16.msra.mxu0 %v1186
        %1339 = vmatprep.subr.bf16.mxu0 0
        %1340 = vmatpush1.bf16.msra.mxu0 %v1187
        %1341 = vmatprep.subr.bf16.mxu0 0
        %1342 = vmatpush1.bf16.msra.mxu0 %v1188
        %1343 = vmatprep.subr.bf16.mxu0 0
        %1344 = vmatpush1.bf16.msra.mxu0 %v1189
        %1345 = vmatprep.subr.bf16.mxu0 0
        %1346 = vmatpush1.bf16.msra.mxu0 %v1190
        %1347 = vmatprep.subr.bf16.mxu0 0
        %1348 = vmatpush1.bf16.msra.mxu0 %v1191
        %1349 = vmatprep.subr.bf16.mxu0 0
        %1350 = vmatpush1.bf16.msra.mxu0 %v1192
        %1351 = vmatprep.subr.bf16.mxu0 0
        %1352 = vmatpush1.bf16.msra.mxu0 %v1193
        %1353 = vmatprep.subr.bf16.mxu0 0
        %1354 = vmatpush1.bf16.msra.mxu0 %v1194
        %1355 = vmatprep.mubr.bf16.mxu0 %v856
        %1356 = vmatmul.mubr.bf16.gmra.mrb[0].mxu0 %v855
        %v1357 = vpop.f32.mrb[0].mxu0
        %v1358 = vadd.f32 0.0, %v1357
        %v1359 = vpop.f32.mrb[0].mxu0
        %v1360 = vpop.f32.mrb[0].mxu0
        %v1361 = vadd.f32 0.0, %v1360
        %v1362 = vpop.f32.mrb[0].mxu0
        %1363 = vmatprep.mubr.bf16.mxu0 %v865
        %1364 = vmatmul.mubr.bf16.gmra.mrb[0].mxu0 %v864
        %v1365 = vpop.f32.mrb[0].mxu0
        %v1366 = vadd.f32 0.0, %v1365
        %v1367 = vpop.f32.mrb[0].mxu0
        %v1368 = vpop.f32.mrb[0].mxu0
        %v1369 = vpop.f32.mrb[0].mxu0
        %1370 = vdwg.mxu0
        %1371 = vmatprep.subr.bf16.mxu0 0
        %1372 = vmatpush1.bf16.msra.mxu0 %v1195
        %1373 = vmatprep.subr.bf16.mxu0 0
        %1374 = vmatpush1.bf16.msra.mxu0 %v1196
        %1375 = vmatprep.subr.bf16.mxu0 0
        %1376 = vmatpush1.bf16.msra.mxu0 %v1197
        %1377 = vmatprep.subr.bf16.mxu0 0
        %1378 = vmatpush1.bf16.msra.mxu0 %v1198
        %1379 = vmatprep.subr.bf16.mxu0 0
        %1380 = vmatpush1.bf16.msra.mxu0 %v1199
        %1381 = vmatprep.subr.bf16.mxu0 0
        %1382 = vmatpush1.bf16.msra.mxu0 %v1200
        %1383 = vmatprep.subr.bf16.mxu0 0
        %1384 = vmatpush1.bf16.msra.mxu0 %v1201
        %1385 = vmatprep.subr.bf16.mxu0 0
        %1386 = vmatpush1.bf16.msra.mxu0 %v1202
        %1387 = vmatprep.subr.bf16.mxu0 0
        %1388 = vmatpush1.bf16.msra.mxu0 %v1203
        %1389 = vmatprep.subr.bf16.mxu0 0
        %1390 = vmatpush1.bf16.msra.mxu0 %v1204
        %1391 = vmatprep.subr.bf16.mxu0 0
        %1392 = vmatpush1.bf16.msra.mxu0 %v1205
        %1393 = vmatprep.subr.bf16.mxu0 0
        %1394 = vmatpush1.bf16.msra.mxu0 %v1206
        %1395 = vmatprep.subr.bf16.mxu0 0
        %1396 = vmatpush1.bf16.msra.mxu0 %v1207
        %1397 = vmatprep.subr.bf16.mxu0 0
        %1398 = vmatpush1.bf16.msra.mxu0 %v1208
        %1399 = vmatprep.subr.bf16.mxu0 0
        %1400 = vmatpush1.bf16.msra.mxu0 %v1209
        %1401 = vmatprep.subr.bf16.mxu0 0
        %1402 = vmatpush1.bf16.msra.mxu0 %v1210
        %1403 = vmatprep.mubr.bf16.mxu0 %v858
        %1404 = vmatmul.mubr.bf16.gmra.mrb[0].mxu0 %v857
        %v1405 = vpop.f32.mrb[0].mxu0
        %v1406 = vadd.f32 %v1358, %v1405
        %v1407 = vpop.f32.mrb[0].mxu0
        %v1408 = vpop.f32.mrb[0].mxu0
        %v1409 = vadd.f32 %v1361, %v1408
        %v1410 = vpop.f32.mrb[0].mxu0
        %1411 = vmatprep.mubr.bf16.mxu0 %v867
        %1412 = vmatmul.mubr.bf16.gmra.mrb[0].mxu0 %v866
        %v1413 = vpop.f32.mrb[0].mxu0
        %v1414 = vadd.f32 %v1366, %v1413
        %v1415 = vpop.f32.mrb[0].mxu0
        %v1416 = vpop.f32.mrb[0].mxu0
        %v1417 = vpop.f32.mrb[0].mxu0
        %1418 = vdwg.mxu0
        %1419 = vmatprep.subr.bf16.mxu0 0
        %1420 = vmatpush1.bf16.msra.mxu0 %v1211
        %1421 = vmatprep.subr.bf16.mxu0 0
        %1422 = vmatpush1.bf16.msra.mxu0 %v1212
        %1423 = vmatprep.subr.bf16.mxu0 0
        %1424 = vmatpush1.bf16.msra.mxu0 %v1213
        %1425 = vmatprep.subr.bf16.mxu0 0
        %1426 = vmatpush1.bf16.msra.mxu0 %v1214
        %1427 = vmatprep.subr.bf16.mxu0 0
        %1428 = vmatpush1.bf16.msra.mxu0 %v1215
        %1429 = vmatprep.subr.bf16.mxu0 0
        %1430 = vmatpush1.bf16.msra.mxu0 %v1216
        %1431 = vmatprep.subr.bf16.mxu0 0
        %1432 = vmatpush1.bf16.msra.mxu0 %v1217
        %1433 = vmatprep.subr.bf16.mxu0 0
        %1434 = vmatpush1.bf16.msra.mxu0 %v1218
        %1435 = vmatprep.subr.bf16.mxu0 0
        %1436 = vmatpush1.bf16.msra.mxu0 %v1219
        %1437 = vmatprep.subr.bf16.mxu0 0
        %1438 = vmatpush1.bf16.msra.mxu0 %v1220
        %1439 = vmatprep.subr.bf16.mxu0 0
        %1440 = vmatpush1.bf16.msra.mxu0 %v1221
        %1441 = vmatprep.subr.bf16.mxu0 0
        %1442 = vmatpush1.bf16.msra.mxu0 %v1222
        %1443 = vmatprep.subr.bf16.mxu0 0
        %1444 = vmatpush1.bf16.msra.mxu0 %v1223
        %1445 = vmatprep.subr.bf16.mxu0 0
        %1446 = vmatpush1.bf16.msra.mxu0 %v1224
        %1447 = vmatprep.subr.bf16.mxu0 0
        %1448 = vmatpush1.bf16.msra.mxu0 %v1225
        %1449 = vmatprep.subr.bf16.mxu0 0
        %1450 = vmatpush1.bf16.msra.mxu0 %v1226
        %1451 = vmatprep.mubr.bf16.mxu0 %v860
        %1452 = vmatmul.mubr.bf16.gmra.mrb[0].mxu0 %v859
        %v1453 = vpop.f32.mrb[0].mxu0
        %v1454 = vadd.f32 %v1406, %v1453
        %v1455 = vpop.f32.mrb[0].mxu0
        %v1456 = vpop.f32.mrb[0].mxu0
        %v1457 = vadd.f32 %v1409, %v1456
        %v1458 = vpop.f32.mrb[0].mxu0
        %1459 = vmatprep.mubr.bf16.mxu0 %v869
        %1460 = vmatmul.mubr.bf16.gmra.mrb[0].mxu0 %v868
        %v1461 = vpop.f32.mrb[0].mxu0
        %v1462 = vadd.f32 %v1414, %v1461
        %v1463 = vpop.f32.mrb[0].mxu0
        %v1464 = vpop.f32.mrb[0].mxu0
        %v1465 = vpop.f32.mrb[0].mxu0
        %1466 = vdwg.mxu0
        %1467 = vmatprep.subr.bf16.mxu0 0
        %1468 = vmatpush1.bf16.msra.mxu0 %v1227
        %1469 = vmatprep.subr.bf16.mxu0 0
        %1470 = vmatpush1.bf16.msra.mxu0 %v1228
        %1471 = vmatprep.subr.bf16.mxu0 0
        %1472 = vmatpush1.bf16.msra.mxu0 %v1229
        %1473 = vmatprep.subr.bf16.mxu0 0
        %1474 = vmatpush1.bf16.msra.mxu0 %v1230
        %1475 = vmatprep.subr.bf16.mxu0 0
        %1476 = vmatpush1.bf16.msra.mxu0 %v1231
        %1477 = vmatprep.subr.bf16.mxu0 0
        %1478 = vmatpush1.bf16.msra.mxu0 %v1232
        %1479 = vmatprep.subr.bf16.mxu0 0
        %1480 = vmatpush1.bf16.msra.mxu0 %v1233
        %1481 = vmatprep.subr.bf16.mxu0 0
        %1482 = vmatpush1.bf16.msra.mxu0 %v1234
        %1483 = vmatprep.subr.bf16.mxu0 0
        %1484 = vmatpush1.bf16.msra.mxu0 %v1235
        %1485 = vmatprep.subr.bf16.mxu0 0
        %1486 = vmatpush1.bf16.msra.mxu0 %v1236
        %1487 = vmatprep.subr.bf16.mxu0 0
        %1488 = vmatpush1.bf16.msra.mxu0 %v1237
        %1489 = vmatprep.subr.bf16.mxu0 0
        %1490 = vmatpush1.bf16.msra.mxu0 %v1238
        %1491 = vmatprep.subr.bf16.mxu0 0
        %1492 = vmatpush1.bf16.msra.mxu0 %v1239
        %1493 = vmatprep.subr.bf16.mxu0 0
        %1494 = vmatpush1.bf16.msra.mxu0 %v1240
        %1495 = vmatprep.subr.bf16.mxu0 0
        %1496 = vmatpush1.bf16.msra.mxu0 %v1241
        %1497 = vmatprep.subr.bf16.mxu0 0
        %1498 = vmatpush1.bf16.msra.mxu0 %v1242
        %1499 = vmatprep.mubr.bf16.mxu0 %v862
        %1500 = vmatmul.mubr.bf16.gmra.mrb[0].mxu0 %v861
        %v1501 = vpop.f32.mrb[0].mxu0
        %v1502 = vadd.f32 %v1454, %v1501
        %v1503 = vpop.f32.mrb[0].mxu0
        %v1504 = vpop.f32.mrb[0].mxu0
        %v1505 = vadd.f32 %v1457, %v1504
        %v1506 = vpop.f32.mrb[0].mxu0
        %1507 = vmatprep.mubr.bf16.mxu0 %v871
        %1508 = vmatmul.mubr.bf16.gmra.mrb[0].mxu0 %v870
        %v1509 = vpop.f32.mrb[0].mxu0
        %v1510 = vadd.f32 %v1462, %v1509
        %v1511 = vpop.f32.mrb[0].mxu0
        %v1512 = vpop.f32.mrb[0].mxu0
        %v1513 = vpop.f32.mrb[0].mxu0
        %1514 = vdwg.mxu0
        %1515 = vmatprep.subr.bf16.mxu0 0
        %1516 = vmatpush1.bf16.msra.mxu0 %v1243
        %1517 = vmatprep.subr.bf16.mxu0 0
        %1518 = vmatpush1.bf16.msra.mxu0 %v1244
        %1519 = vmatprep.subr.bf16.mxu0 0
        %1520 = vmatpush1.bf16.msra.mxu0 %v1245
        %1521 = vmatprep.subr.bf16.mxu0 0
        %1522 = vmatpush1.bf16.msra.mxu0 %v1246
        %1523 = vmatprep.subr.bf16.mxu0 0
        %1524 = vmatpush1.bf16.msra.mxu0 %v1247
        %1525 = vmatprep.subr.bf16.mxu0 0
        %1526 = vmatpush1.bf16.msra.mxu0 %v1248
        %1527 = vmatprep.subr.bf16.mxu0 0
        %1528 = vmatpush1.bf16.msra.mxu0 %v1249
        %1529 = vmatprep.subr.bf16.mxu0 0
        %1530 = vmatpush1.bf16.msra.mxu0 %v1250
        %1531 = vmatprep.subr.bf16.mxu0 0
        %1532 = vmatpush1.bf16.msra.mxu0 0
        %1533 = vmatprep.subr.bf16.mxu0 0
        %1534 = vmatpush1.bf16.msra.mxu0 0
        %1535 = vmatprep.subr.bf16.mxu0 0
        %1536 = vmatpush1.bf16.msra.mxu0 0
        %1537 = vmatprep.subr.bf16.mxu0 0
        %1538 = vmatpush1.bf16.msra.mxu0 0
        %1539 = vmatprep.subr.bf16.mxu0 0
        %1540 = vmatpush1.bf16.msra.mxu0 0
        %1541 = vmatprep.subr.bf16.mxu0 0
        %1542 = vmatpush1.bf16.msra.mxu0 0
        %1543 = vmatprep.subr.bf16.mxu0 0
        %1544 = vmatpush1.bf16.msra.mxu0 0
        %1545 = vmatprep.subr.bf16.mxu0 0
        %1546 = vmatpush1.bf16.msra.mxu0 0
        %1547 = vmatprep.mubr.bf16.mxu0 0
        %1548 = vmatmul.mubr.bf16.gmra.mrb[0].mxu0 %v863
        %v1549 = vpop.f32.mrb[0].mxu0
        %v1550 = vadd.f32 %v1502, %v1549
        %v1551 = vpop.f32.mrb[0].mxu0
        %v1552 = vpop.f32.mrb[0].mxu0
        %v1553 = vadd.f32 %v1505, %v1552
        %v1554 = vpop.f32.mrb[0].mxu0
        %1555 = vmatprep.mubr.bf16.mxu0 0
        %1556 = vmatmul.mubr.bf16.gmra.mrb[0].mxu0 %v872
        %v1557 = vpop.f32.mrb[0].mxu0
        %v1558 = vadd.f32 %v1510, %v1557
        %v1559 = vpop.f32.mrb[0].mxu0
        %v1560 = vpop.f32.mrb[0].mxu0
        %v1561 = vpop.f32.mrb[0].mxu0
        %1562 = vdwg.mxu0
        %s1563 = sadd.s32 %s388, 4294967292
        %v1564 = vstv %s1563
        %v1565 = vadd.s32 %v1564, %v395
        %v1566 = vadd.s32 %v1564, %v396
        %v1567 = vadd.s32 %v1564, %v397
        %vm1568 = vcmp.ge.s32.totalorder %v1565, 0
        %vm1569 = vcmp.ge.s32.totalorder %v1566, 0
        %vm1570 = vcmp.ge.s32.totalorder %v1567, 0
        %vm1571 = vcmp.lt.s32.totalorder %v1565, 16
        %vm1572 = vcmp.lt.s32.totalorder %v1566, 16
        %vm1573 = vcmp.lt.s32.totalorder %v1567, 16
        %vm1574 = vmand %vm1568, %vm1571
        %vm1575 = vmand %vm1569, %vm1572
        %vm1576 = vmand %vm1570, %vm1573
        %v1577 = vld [vmem:[%s4] sm:$0x1]
        %v1579 = vlaneseq
        %v1580 = vshrl.u32 %v1579, 7
        %v1581 = vsub.s32 0, %v1580
        %v1582 = vrot.slane %v1577, %v1581
        %v1584 = vmul.f32 %v1550, %v1582
        %v1585 = vmul.f32 %v1553, %v1582
        %v1586 = vmul.f32 %v1558, %v1582
        %v1587 = vld [vmem:[%s5] sm:$0x1]
        %v1589 = vlaneseq
        %v1590 = vshrl.u32 %v1589, 7
        %v1591 = vsub.s32 0, %v1590
        %v1592 = vrot.slane %v1587, %v1591
        %v1594 = vadd.f32 %v1584, %v1592
        %v1595 = vadd.f32 %v1585, %v1592
        %v1596 = vadd.f32 %v1586, %v1592
        %v1597 = vmax.f32 %v1594, 0.0
        %v1598 = vmax.f32 %v1595, 0.0
        %v1599 = vmax.f32 %v1596, 0.0
        %v1600 = vsel %vm1574, 1, 0
        %v1601 = vsel %vm1575, 1, 0
        %v1602 = vsel %vm1576, 1, 0
        %vm1603 = vcmp.eq.s32.totalorder %v1600, 1
        %vm1604 = vcmp.eq.s32.totalorder %v1601, 1
        %vm1605 = vcmp.eq.s32.totalorder %v1602, 1
        %v1606 = vsel %vm1603, %v1597, 0.0
        %v1607 = vsel %vm1604, %v1598, 0.0
        %v1608 = vsel %vm1605, %v1599, 0.0
        %v1609 = vpack.c.bf16 %v1607, %v1606
        %v1610 = vpack.c.bf16 %v1608, %v1608
        %1611 = vst [vmem:[#allocation3] sm:$0xff] %v1609
        %vm1612 = vsmask.f32 7424
        %v1614 = vshrl.u32 %v1609, 16
        %v1616 = vshll.u32 %v1609, 16
        %v1618 = vrot.slane %v1616, 1
        %v1619 = vor.u32 %v1614, %v1618
        %v1621 = vshll.u32 %v1610, 16
        %v1623 = vrot.slane %v1621, 1
        %v1624 = vsel %vm1612, %v1619, %v1623
        %1626 = vst [vmem:[#allocation3 + $0x8] sm:$0xff] %v1624
        %vm1629 = vcmask 1046528
        %v1630 = vrot.slane %v1609, 1
        %v1631 = vrot.slane %v1610, 1
        %v1632 = vsel %vm1629, %v1630, %v1631
        %1634 = vst [vmem:[#allocation3 + $0x10] sm:$0xff] %v1632
        %vm1635 = vsmask.f32 6400
        %v1636 = vrot.slane %v1614, 1
        %v1637 = vrot.slane %v1616, 2
        %v1638 = vor.u32 %v1636, %v1637
        %v1639 = vshrl.u32 %v1610, 16
        %v1641 = vrot.slane %v1639, 1
        %v1642 = vrot.slane %v1621, 2
        %v1643 = vor.u32 %v1641, %v1642
        %v1644 = vsel %vm1635, %v1638, %v1643
        %1646 = vst [vmem:[#allocation3 + $0x18] sm:$0xff] %v1644
        %vm1647 = vcmask 1045504
        %v1648 = vrot.slane %v1609, 2
        %v1649 = vrot.slane %v1610, 2
        %v1650 = vsel %vm1647, %v1648, %v1649
        %1652 = vst [vmem:[#allocation3 + $0x20] sm:$0xff] %v1650
        %vm1653 = vsmask.f32 5376
        %v1654 = vrot.slane %v1614, 2
        %v1655 = vrot.slane %v1616, 3
        %v1656 = vor.u32 %v1654, %v1655
        %v1657 = vrot.slane %v1639, 2
        %v1658 = vrot.slane %v1621, 3
        %v1659 = vor.u32 %v1657, %v1658
        %v1660 = vsel %vm1653, %v1656, %v1659
        %1662 = vst [vmem:[#allocation3 + $0x28] sm:$0xff] %v1660
        %vm1663 = vcmask 1044480
        %v1664 = vrot.slane %v1609, 3
        %v1665 = vrot.slane %v1610, 3
        %v1666 = vsel %vm1663, %v1664, %v1665
        %1668 = vst [vmem:[#allocation3 + $0x30] sm:$0xff] %v1666
        %vm1669 = vsmask.f32 4352
        %v1670 = vrot.slane %v1614, 3
        %v1671 = vrot.slane %v1616, 4
        %v1672 = vor.u32 %v1670, %v1671
        %v1673 = vrot.slane %v1639, 3
        %v1674 = vrot.slane %v1621, 4
        %v1675 = vor.u32 %v1673, %v1674
        %v1676 = vsel %vm1669, %v1672, %v1675
        %1678 = vst [vmem:[#allocation3 + $0x38] sm:$0xff] %v1676
        %vm1679 = vcmask 1043456
        %v1680 = vrot.slane %v1609, 4
        %v1681 = vrot.slane %v1610, 4
        %v1682 = vsel %vm1679, %v1680, %v1681
        %1684 = vst [vmem:[#allocation3 + $0x40] sm:$0xff] %v1682
        %v1685 = vld [vmem:[#allocation3] sm:$0xff]
        %v1686 = vld [vmem:[#allocation3 + $0x8] sm:$0xff]
        %v1687 = vld [vmem:[#allocation3 + $0x10] sm:$0xff]
        %v1688 = vld [vmem:[#allocation3 + $0x18] sm:$0xff]
        %v1689 = vld [vmem:[#allocation3 + $0x20] sm:$0xff]
        %v1690 = vld [vmem:[#allocation3 + $0x28] sm:$0xff]
        %v1691 = vld [vmem:[#allocation3 + $0x30] sm:$0xff]
        %v1692 = vld [vmem:[#allocation3 + $0x38] sm:$0xff]
        %v1693 = vld [vmem:[#allocation3 + $0x40] sm:$0xff]
        %v1694 = vld [vmem:[#allocation9] sm:$0xf]
        %v1695 = vld [vmem:[#allocation9 + $0x4] sm:$0xf]
        %v1696 = vld [vmem:[#allocation9 + $0x8] sm:$0xf]
        %v1697 = vld [vmem:[#allocation9 + $0xc] sm:$0xf]
        %v1698 = vld [vmem:[#allocation9 + $0x10] sm:$0xf]
        %v1699 = vld [vmem:[#allocation9 + $0x14] sm:$0xf]
        %v1700 = vld [vmem:[#allocation9 + $0x18] sm:$0xf]
        %v1701 = vld [vmem:[#allocation9 + $0x1c] sm:$0xf]
        %v1702 = vld [vmem:[#allocation9 + $0x20] sm:$0xf]
        %v1703 = vld [vmem:[#allocation9 + $0x24] sm:$0xf]
        %v1704 = vld [vmem:[#allocation9 + $0x28] sm:$0xf]
        %v1705 = vld [vmem:[#allocation9 + $0x2c] sm:$0xf]
        %v1706 = vld [vmem:[#allocation9 + $0x30] sm:$0xf]
        %v1707 = vld [vmem:[#allocation9 + $0x34] sm:$0xf]
        %v1708 = vld [vmem:[#allocation9 + $0x38] sm:$0xf]
        %v1709 = vld [vmem:[#allocation9 + $0x3c] sm:$0xf]
        %v1710 = vld [vmem:[#allocation9 + $0x40] sm:$0xf]
        %v1711 = vld [vmem:[#allocation9 + $0x44] sm:$0xf]
        %v1712 = vld [vmem:[#allocation9 + $0x48] sm:$0xf]
        %v1713 = vld [vmem:[#allocation9 + $0x4c] sm:$0xf]
        %v1714 = vld [vmem:[#allocation9 + $0x50] sm:$0xf]
        %v1715 = vld [vmem:[#allocation9 + $0x54] sm:$0xf]
        %v1716 = vld [vmem:[#allocation9 + $0x58] sm:$0xf]
        %v1717 = vld [vmem:[#allocation9 + $0x5c] sm:$0xf]
        %v1718 = vld [vmem:[#allocation9 + $0x60] sm:$0xf]
        %v1719 = vld [vmem:[#allocation9 + $0x64] sm:$0xf]
        %v1720 = vld [vmem:[#allocation9 + $0x68] sm:$0xf]
        %v1721 = vld [vmem:[#allocation9 + $0x6c] sm:$0xf]
        %v1722 = vld [vmem:[#allocation9 + $0x70] sm:$0xf]
        %v1723 = vld [vmem:[#allocation9 + $0x74] sm:$0xf]
        %v1724 = vld [vmem:[#allocation9 + $0x78] sm:$0xf]
        %v1725 = vld [vmem:[#allocation9 + $0x7c] sm:$0xf]
        %v1726 = vld [vmem:[#allocation9 + $0x80] sm:$0xf]
        %v1727 = vld [vmem:[#allocation9 + $0x84] sm:$0xf]
        %v1728 = vld [vmem:[#allocation9 + $0x88] sm:$0xf]
        %v1729 = vld [vmem:[#allocation9 + $0x8c] sm:$0xf]
        %v1730 = vld [vmem:[#allocation9 + $0x90] sm:$0xf]
        %v1731 = vld [vmem:[#allocation9 + $0x94] sm:$0xf]
        %v1732 = vld [vmem:[#allocation9 + $0x98] sm:$0xf]
        %v1733 = vld [vmem:[#allocation9 + $0x9c] sm:$0xf]
        %v1734 = vld [vmem:[#allocation9 + $0xa0] sm:$0xf]
        %v1735 = vld [vmem:[#allocation9 + $0xa4] sm:$0xf]
        %v1736 = vld [vmem:[#allocation9 + $0xa8] sm:$0xf]
        %v1737 = vld [vmem:[#allocation9 + $0xac] sm:$0xf]
        %v1738 = vld [vmem:[#allocation9 + $0xb0] sm:$0xf]
        %v1739 = vld [vmem:[#allocation9 + $0xb4] sm:$0xf]
        %v1740 = vld [vmem:[#allocation9 + $0xb8] sm:$0xf]
        %v1741 = vld [vmem:[#allocation9 + $0xbc] sm:$0xf]
        %v1742 = vld [vmem:[#allocation9 + $0xc0] sm:$0xf]
        %v1743 = vld [vmem:[#allocation9 + $0xc4] sm:$0xf]
        %v1744 = vld [vmem:[#allocation9 + $0xc8] sm:$0xf]
        %v1745 = vld [vmem:[#allocation9 + $0xcc] sm:$0xf]
        %v1746 = vld [vmem:[#allocation9 + $0xd0] sm:$0xf]
        %v1747 = vld [vmem:[#allocation9 + $0xd4] sm:$0xf]
        %v1748 = vld [vmem:[#allocation9 + $0xd8] sm:$0xf]
        %v1749 = vld [vmem:[#allocation9 + $0xdc] sm:$0xf]
        %v1750 = vld [vmem:[#allocation9 + $0xe0] sm:$0xf]
        %v1751 = vld [vmem:[#allocation9 + $0xe4] sm:$0xf]
        %v1752 = vld [vmem:[#allocation9 + $0xe8] sm:$0xf]
        %v1753 = vld [vmem:[#allocation9 + $0xec] sm:$0xf]
        %v1754 = vld [vmem:[#allocation9 + $0xf0] sm:$0xf]
        %v1755 = vld [vmem:[#allocation9 + $0xf4] sm:$0xf]
        %v1756 = vld [vmem:[#allocation9 + $0xf8] sm:$0xf]
        %v1757 = vld [vmem:[#allocation9 + $0xfc] sm:$0xf]
        %v1758 = vld [vmem:[#allocation9 + $0x100] sm:$0xf]
        %v1759 = vld [vmem:[#allocation9 + $0x104] sm:$0xf]
        %v1760 = vld [vmem:[#allocation9 + $0x108] sm:$0xf]
        %v1761 = vld [vmem:[#allocation9 + $0x10c] sm:$0xf]
        %v1762 = vld [vmem:[#allocation9 + $0x110] sm:$0xf]
        %v1763 = vld [vmem:[#allocation9 + $0x114] sm:$0xf]
        %v1764 = vld [vmem:[#allocation9 + $0x118] sm:$0xf]
        %v1765 = vld [vmem:[#allocation9 + $0x11c] sm:$0xf]
        %v1766 = vld [vmem:[#allocation9 + $0x120] sm:$0xf]
        %v1767 = vld [vmem:[#allocation9 + $0x124] sm:$0xf]
        %v1768 = vld [vmem:[#allocation9 + $0x128] sm:$0xf]
        %v1769 = vld [vmem:[#allocation9 + $0x12c] sm:$0xf]
        %v1770 = vld [vmem:[#allocation9 + $0x130] sm:$0xf]
        %v1771 = vld [vmem:[#allocation9 + $0x134] sm:$0xf]
        %v1772 = vld [vmem:[#allocation9 + $0x138] sm:$0xf]
        %v1773 = vld [vmem:[#allocation9 + $0x13c] sm:$0xf]
        %v1774 = vld [vmem:[#allocation9 + $0x140] sm:$0xf]
        %v1775 = vld [vmem:[#allocation9 + $0x144] sm:$0xf]
        %v1776 = vld [vmem:[#allocation9 + $0x148] sm:$0xf]
        %v1777 = vld [vmem:[#allocation9 + $0x14c] sm:$0xf]
        %v1778 = vld [vmem:[#allocation9 + $0x150] sm:$0xf]
        %v1779 = vld [vmem:[#allocation9 + $0x154] sm:$0xf]
        %v1780 = vld [vmem:[#allocation9 + $0x158] sm:$0xf]
        %v1781 = vld [vmem:[#allocation9 + $0x15c] sm:$0xf]
        %v1782 = vld [vmem:[#allocation9 + $0x160] sm:$0xf]
        %v1783 = vld [vmem:[#allocation9 + $0x164] sm:$0xf]
        %v1784 = vld [vmem:[#allocation9 + $0x168] sm:$0xf]
        %v1785 = vld [vmem:[#allocation9 + $0x16c] sm:$0xf]
        %v1786 = vld [vmem:[#allocation9 + $0x170] sm:$0xf]
        %v1787 = vld [vmem:[#allocation9 + $0x174] sm:$0xf]
        %v1788 = vld [vmem:[#allocation9 + $0x178] sm:$0xf]
        %v1789 = vld [vmem:[#allocation9 + $0x17c] sm:$0xf]
        %v1790 = vld [vmem:[#allocation9 + $0x180] sm:$0xf]
        %v1791 = vld [vmem:[#allocation9 + $0x184] sm:$0xf]
        %v1792 = vld [vmem:[#allocation9 + $0x188] sm:$0xf]
        %v1793 = vld [vmem:[#allocation9 + $0x18c] sm:$0xf]
        %v1794 = vld [vmem:[#allocation9 + $0x190] sm:$0xf]
        %v1795 = vld [vmem:[#allocation9 + $0x194] sm:$0xf]
        %v1796 = vld [vmem:[#allocation9 + $0x198] sm:$0xf]
        %v1797 = vld [vmem:[#allocation9 + $0x19c] sm:$0xf]
        %v1798 = vld [vmem:[#allocation9 + $0x1a0] sm:$0xf]
        %v1799 = vld [vmem:[#allocation9 + $0x1a4] sm:$0xf]
        %v1800 = vld [vmem:[#allocation9 + $0x1a8] sm:$0xf]
        %v1801 = vld [vmem:[#allocation9 + $0x1ac] sm:$0xf]
        %v1802 = vld [vmem:[#allocation9 + $0x1b0] sm:$0xf]
        %v1803 = vld [vmem:[#allocation9 + $0x1b4] sm:$0xf]
        %v1804 = vld [vmem:[#allocation9 + $0x1b8] sm:$0xf]
        %v1805 = vld [vmem:[#allocation9 + $0x1bc] sm:$0xf]
        %v1806 = vld [vmem:[#allocation9 + $0x1c0] sm:$0xf]
        %v1807 = vld [vmem:[#allocation9 + $0x1c4] sm:$0xf]
        %v1808 = vld [vmem:[#allocation9 + $0x1c8] sm:$0xf]
        %v1809 = vld [vmem:[#allocation9 + $0x1cc] sm:$0xf]
        %v1810 = vld [vmem:[#allocation9 + $0x1d0] sm:$0xf]
        %v1811 = vld [vmem:[#allocation9 + $0x1d4] sm:$0xf]
        %v1812 = vld [vmem:[#allocation9 + $0x1d8] sm:$0xf]
        %v1813 = vld [vmem:[#allocation9 + $0x1dc] sm:$0xf]
        %v1814 = vld [vmem:[#allocation9 + $0x1e0] sm:$0xf]
        %v1815 = vld [vmem:[#allocation9 + $0x1e4] sm:$0xf]
        %v1816 = vld [vmem:[#allocation9 + $0x1e8] sm:$0xf]
        %v1817 = vld [vmem:[#allocation9 + $0x1ec] sm:$0xf]
        %v1818 = vld [vmem:[#allocation9 + $0x1f0] sm:$0xf]
        %v1819 = vld [vmem:[#allocation9 + $0x1f4] sm:$0xf]
        %v1820 = vld [vmem:[#allocation9 + $0x1f8] sm:$0xf]
        %v1821 = vld [vmem:[#allocation9 + $0x1fc] sm:$0xf]
        %v1822 = vld [vmem:[#allocation9 + $0x200] sm:$0xf]
        %v1823 = vld [vmem:[#allocation9 + $0x204] sm:$0xf]
        %v1824 = vld [vmem:[#allocation9 + $0x208] sm:$0xf]
        %v1825 = vld [vmem:[#allocation9 + $0x20c] sm:$0xf]
        %v1826 = vld [vmem:[#allocation9 + $0x210] sm:$0xf]
        %v1827 = vld [vmem:[#allocation9 + $0x214] sm:$0xf]
        %v1828 = vld [vmem:[#allocation9 + $0x218] sm:$0xf]
        %v1829 = vld [vmem:[#allocation9 + $0x21c] sm:$0xf]
        %v1830 = vld [vmem:[#allocation9 + $0x220] sm:$0xf]
        %v1831 = vld [vmem:[#allocation9 + $0x224] sm:$0xf]
        %v1832 = vld [vmem:[#allocation9 + $0x228] sm:$0xf]
        %v1833 = vld [vmem:[#allocation9 + $0x22c] sm:$0xf]
        %v1834 = vld [vmem:[#allocation9 + $0x230] sm:$0xf]
        %v1835 = vld [vmem:[#allocation9 + $0x234] sm:$0xf]
        %v1836 = vld [vmem:[#allocation9 + $0x238] sm:$0xf]
        %v1837 = vld [vmem:[#allocation9 + $0x23c] sm:$0xf]
        %v1982 = vunpack.c.l.b16 %v1694
        %v1983 = vunpack.c.l.b16 %v1695
        %v1984 = vunpack.c.l.b16 %v1696
        %v1985 = vunpack.c.l.b16 %v1697
        %v1986 = vunpack.c.l.b16 %v1698
        %v1987 = vunpack.c.l.b16 %v1699
        %v1988 = vunpack.c.l.b16 %v1700
        %v1989 = vunpack.c.l.b16 %v1701
        %v1990 = vunpack.c.l.b16 %v1702
        %v1991 = vunpack.c.l.b16 %v1703
        %v1992 = vunpack.c.l.b16 %v1704
        %v1993 = vunpack.c.l.b16 %v1705
        %v1994 = vunpack.c.l.b16 %v1706
        %v1995 = vunpack.c.l.b16 %v1707
        %v1996 = vunpack.c.l.b16 %v1708
        %v1997 = vunpack.c.l.b16 %v1709
        %v1998 = vunpack.c.l.b16 %v1710
        %v1999 = vunpack.c.l.b16 %v1711
        %v2000 = vunpack.c.l.b16 %v1712
        %v2001 = vunpack.c.l.b16 %v1713
        %v2002 = vunpack.c.l.b16 %v1714
        %v2003 = vunpack.c.l.b16 %v1715
        %v2004 = vunpack.c.l.b16 %v1716
        %v2005 = vunpack.c.l.b16 %v1717
        %v2006 = vunpack.c.l.b16 %v1718
        %v2007 = vunpack.c.l.b16 %v1719
        %v2008 = vunpack.c.l.b16 %v1720
        %v2009 = vunpack.c.l.b16 %v1721
        %v2010 = vunpack.c.l.b16 %v1722
        %v2011 = vunpack.c.l.b16 %v1723
        %v2012 = vunpack.c.l.b16 %v1724
        %v2013 = vunpack.c.l.b16 %v1725
        %v2014 = vunpack.c.l.b16 %v1726
        %v2015 = vunpack.c.l.b16 %v1727
        %v2016 = vunpack.c.l.b16 %v1728
        %v2017 = vunpack.c.l.b16 %v1729
        %v2018 = vunpack.c.l.b16 %v1730
        %v2019 = vunpack.c.l.b16 %v1731
        %v2020 = vunpack.c.l.b16 %v1732
        %v2021 = vunpack.c.l.b16 %v1733
        %v2022 = vunpack.c.l.b16 %v1734
        %v2023 = vunpack.c.l.b16 %v1735
        %v2024 = vunpack.c.l.b16 %v1736
        %v2025 = vunpack.c.l.b16 %v1737
        %v2026 = vunpack.c.l.b16 %v1738
        %v2027 = vunpack.c.l.b16 %v1739
        %v2028 = vunpack.c.l.b16 %v1740
        %v2029 = vunpack.c.l.b16 %v1741
        %v2030 = vunpack.c.l.b16 %v1742
        %v2031 = vunpack.c.l.b16 %v1743
        %v2032 = vunpack.c.l.b16 %v1744
        %v2033 = vunpack.c.l.b16 %v1745
        %v2034 = vunpack.c.l.b16 %v1746
        %v2035 = vunpack.c.l.b16 %v1747
        %v2036 = vunpack.c.l.b16 %v1748
        %v2037 = vunpack.c.l.b16 %v1749
        %v2038 = vunpack.c.l.b16 %v1750
        %v2039 = vunpack.c.l.b16 %v1751
        %v2040 = vunpack.c.l.b16 %v1752
        %v2041 = vunpack.c.l.b16 %v1753
        %v2042 = vunpack.c.l.b16 %v1754
        %v2043 = vunpack.c.l.b16 %v1755
        %v2044 = vunpack.c.l.b16 %v1756
        %v2045 = vunpack.c.l.b16 %v1757
        %v2046 = vunpack.c.l.b16 %v1758
        %v2047 = vunpack.c.l.b16 %v1759
        %v2048 = vunpack.c.l.b16 %v1760
        %v2049 = vunpack.c.l.b16 %v1761
        %v2050 = vunpack.c.l.b16 %v1762
        %v2051 = vunpack.c.l.b16 %v1763
        %v2052 = vunpack.c.l.b16 %v1764
        %v2053 = vunpack.c.l.b16 %v1765
        %v2054 = vunpack.c.l.b16 %v1766
        %v2055 = vunpack.c.l.b16 %v1767
        %v2056 = vunpack.c.l.b16 %v1768
        %v2057 = vunpack.c.l.b16 %v1769
        %v2058 = vunpack.c.l.b16 %v1770
        %v2059 = vunpack.c.l.b16 %v1771
        %v2060 = vunpack.c.l.b16 %v1772
        %v2061 = vunpack.c.l.b16 %v1773
        %v2062 = vunpack.c.l.b16 %v1774
        %v2063 = vunpack.c.l.b16 %v1775
        %v2064 = vunpack.c.l.b16 %v1776
        %v2065 = vunpack.c.l.b16 %v1777
        %v2066 = vunpack.c.l.b16 %v1778
        %v2067 = vunpack.c.l.b16 %v1779
        %v2068 = vunpack.c.l.b16 %v1780
        %v2069 = vunpack.c.l.b16 %v1781
        %v2070 = vunpack.c.l.b16 %v1782
        %v2071 = vunpack.c.l.b16 %v1783
        %v2072 = vunpack.c.l.b16 %v1784
        %v2073 = vunpack.c.l.b16 %v1785
        %v2074 = vunpack.c.l.b16 %v1786
        %v2075 = vunpack.c.l.b16 %v1787
        %v2076 = vunpack.c.l.b16 %v1788
        %v2077 = vunpack.c.l.b16 %v1789
        %v2078 = vunpack.c.l.b16 %v1790
        %v2079 = vunpack.c.l.b16 %v1791
        %v2080 = vunpack.c.l.b16 %v1792
        %v2081 = vunpack.c.l.b16 %v1793
        %v2082 = vunpack.c.l.b16 %v1794
        %v2083 = vunpack.c.l.b16 %v1795
        %v2084 = vunpack.c.l.b16 %v1796
        %v2085 = vunpack.c.l.b16 %v1797
        %v2086 = vunpack.c.l.b16 %v1798
        %v2087 = vunpack.c.l.b16 %v1799
        %v2088 = vunpack.c.l.b16 %v1800
        %v2089 = vunpack.c.l.b16 %v1801
        %v2090 = vunpack.c.l.b16 %v1802
        %v2091 = vunpack.c.l.b16 %v1803
        %v2092 = vunpack.c.l.b16 %v1804
        %v2093 = vunpack.c.l.b16 %v1805
        %v2094 = vunpack.c.l.b16 %v1806
        %v2095 = vunpack.c.l.b16 %v1807
        %v2096 = vunpack.c.l.b16 %v1808
        %v2097 = vunpack.c.l.b16 %v1809
        %v2098 = vunpack.c.l.b16 %v1810
        %v2099 = vunpack.c.l.b16 %v1811
        %v2100 = vunpack.c.l.b16 %v1812
        %v2101 = vunpack.c.l.b16 %v1813
        %v2102 = vunpack.c.l.b16 %v1814
        %v2103 = vunpack.c.l.b16 %v1815
        %v2104 = vunpack.c.l.b16 %v1816
        %v2105 = vunpack.c.l.b16 %v1817
        %v2106 = vunpack.c.l.b16 %v1818
        %v2107 = vunpack.c.l.b16 %v1819
        %v2108 = vunpack.c.l.b16 %v1820
        %v2109 = vunpack.c.l.b16 %v1821
        %v2110 = vunpack.c.l.b16 %v1822
        %v2111 = vunpack.c.l.b16 %v1823
        %v2112 = vunpack.c.l.b16 %v1824
        %v2113 = vunpack.c.l.b16 %v1825
        %v2114 = vunpack.c.l.b16 %v1826
        %v2115 = vunpack.c.l.b16 %v1827
        %v2116 = vunpack.c.l.b16 %v1828
        %v2117 = vunpack.c.l.b16 %v1829
        %v2118 = vunpack.c.l.b16 %v1830
        %v2119 = vunpack.c.l.b16 %v1831
        %v2120 = vunpack.c.l.b16 %v1832
        %v2121 = vunpack.c.l.b16 %v1833
        %v2122 = vunpack.c.l.b16 %v1834
        %v2123 = vunpack.c.l.b16 %v1835
        %v2124 = vunpack.c.l.b16 %v1836
        %v2125 = vunpack.c.l.b16 %v1837
        %v2126 = vpack.c.b16 %v1983, %v1982
        %v2127 = vpack.c.b16 %v1985, %v1984
        %v2128 = vpack.c.b16 %v1987, %v1986
        %v2129 = vpack.c.b16 %v1989, %v1988
        %v2130 = vpack.c.b16 %v1991, %v1990
        %v2131 = vpack.c.b16 %v1993, %v1992
        %v2132 = vpack.c.b16 %v1995, %v1994
        %v2133 = vpack.c.b16 %v1997, %v1996
        %v2134 = vpack.c.b16 %v1999, %v1998
        %v2135 = vpack.c.b16 %v2001, %v2000
        %v2136 = vpack.c.b16 %v2003, %v2002
        %v2137 = vpack.c.b16 %v2005, %v2004
        %v2138 = vpack.c.b16 %v2007, %v2006
        %v2139 = vpack.c.b16 %v2009, %v2008
        %v2140 = vpack.c.b16 %v2011, %v2010
        %v2141 = vpack.c.b16 %v2013, %v2012
        %v2142 = vpack.c.b16 %v2015, %v2014
        %v2143 = vpack.c.b16 %v2017, %v2016
        %v2144 = vpack.c.b16 %v2019, %v2018
        %v2145 = vpack.c.b16 %v2021, %v2020
        %v2146 = vpack.c.b16 %v2023, %v2022
        %v2147 = vpack.c.b16 %v2025, %v2024
        %v2148 = vpack.c.b16 %v2027, %v2026
        %v2149 = vpack.c.b16 %v2029, %v2028
        %v2150 = vpack.c.b16 %v2031, %v2030
        %v2151 = vpack.c.b16 %v2033, %v2032
        %v2152 = vpack.c.b16 %v2035, %v2034
        %v2153 = vpack.c.b16 %v2037, %v2036
        %v2154 = vpack.c.b16 %v2039, %v2038
        %v2155 = vpack.c.b16 %v2041, %v2040
        %v2156 = vpack.c.b16 %v2043, %v2042
        %v2157 = vpack.c.b16 %v2045, %v2044
        %v2158 = vpack.c.b16 %v2047, %v2046
        %v2159 = vpack.c.b16 %v2049, %v2048
        %v2160 = vpack.c.b16 %v2051, %v2050
        %v2161 = vpack.c.b16 %v2053, %v2052
        %v2162 = vpack.c.b16 %v2055, %v2054
        %v2163 = vpack.c.b16 %v2057, %v2056
        %v2164 = vpack.c.b16 %v2059, %v2058
        %v2165 = vpack.c.b16 %v2061, %v2060
        %v2166 = vpack.c.b16 %v2063, %v2062
        %v2167 = vpack.c.b16 %v2065, %v2064
        %v2168 = vpack.c.b16 %v2067, %v2066
        %v2169 = vpack.c.b16 %v2069, %v2068
        %v2170 = vpack.c.b16 %v2071, %v2070
        %v2171 = vpack.c.b16 %v2073, %v2072
        %v2172 = vpack.c.b16 %v2075, %v2074
        %v2173 = vpack.c.b16 %v2077, %v2076
        %v2174 = vpack.c.b16 %v2079, %v2078
        %v2175 = vpack.c.b16 %v2081, %v2080
        %v2176 = vpack.c.b16 %v2083, %v2082
        %v2177 = vpack.c.b16 %v2085, %v2084
        %v2178 = vpack.c.b16 %v2087, %v2086
        %v2179 = vpack.c.b16 %v2089, %v2088
        %v2180 = vpack.c.b16 %v2091, %v2090
        %v2181 = vpack.c.b16 %v2093, %v2092
        %v2182 = vpack.c.b16 %v2095, %v2094
        %v2183 = vpack.c.b16 %v2097, %v2096
        %v2184 = vpack.c.b16 %v2099, %v2098
        %v2185 = vpack.c.b16 %v2101, %v2100
        %v2186 = vpack.c.b16 %v2103, %v2102
        %v2187 = vpack.c.b16 %v2105, %v2104
        %v2188 = vpack.c.b16 %v2107, %v2106
        %v2189 = vpack.c.b16 %v2109, %v2108
        %v2190 = vpack.c.b16 %v2111, %v2110
        %v2191 = vpack.c.b16 %v2113, %v2112
        %v2192 = vpack.c.b16 %v2115, %v2114
        %v2193 = vpack.c.b16 %v2117, %v2116
        %v2194 = vpack.c.b16 %v2119, %v2118
        %v2195 = vpack.c.b16 %v2121, %v2120
        %v2196 = vpack.c.b16 %v2123, %v2122
        %v2197 = vpack.c.b16 %v2125, %v2124
        %2270 = vmatprep.subr.bf16.mxu0 0
        %2271 = vmatpush1.bf16.msra.mxu0 %v2126
        %2272 = vmatprep.subr.bf16.mxu0 0
        %2273 = vmatpush1.bf16.msra.mxu0 %v2127
        %2274 = vmatprep.subr.bf16.mxu0 0
        %2275 = vmatpush1.bf16.msra.mxu0 %v2128
        %2276 = vmatprep.subr.bf16.mxu0 0
        %2277 = vmatpush1.bf16.msra.mxu0 %v2129
        %2278 = vmatprep.subr.bf16.mxu0 0
        %2279 = vmatpush1.bf16.msra.mxu0 %v2130
        %2280 = vmatprep.subr.bf16.mxu0 0
        %2281 = vmatpush1.bf16.msra.mxu0 %v2131
        %2282 = vmatprep.subr.bf16.mxu0 0
        %2283 = vmatpush1.bf16.msra.mxu0 %v2132
        %2284 = vmatprep.subr.bf16.mxu0 0
        %2285 = vmatpush1.bf16.msra.mxu0 %v2133
        %2286 = vmatprep.subr.bf16.mxu0 0
        %2287 = vmatpush1.bf16.msra.mxu0 %v2134
        %2288 = vmatprep.subr.bf16.mxu0 0
        %2289 = vmatpush1.bf16.msra.mxu0 %v2135
        %2290 = vmatprep.subr.bf16.mxu0 0
        %2291 = vmatpush1.bf16.msra.mxu0 %v2136
        %2292 = vmatprep.subr.bf16.mxu0 0
        %2293 = vmatpush1.bf16.msra.mxu0 %v2137
        %2294 = vmatprep.subr.bf16.mxu0 0
        %2295 = vmatpush1.bf16.msra.mxu0 %v2138
        %2296 = vmatprep.subr.bf16.mxu0 0
        %2297 = vmatpush1.bf16.msra.mxu0 %v2139
        %2298 = vmatprep.subr.bf16.mxu0 0
        %2299 = vmatpush1.bf16.msra.mxu0 %v2140
        %2300 = vmatprep.subr.bf16.mxu0 0
        %2301 = vmatpush1.bf16.msra.mxu0 %v2141
        %2302 = vmatprep.mubr.bf16.mxu0 %v1686
        %2303 = vmatmul.mubr.bf16.gmra.mrb[0].mxu0 %v1685
        %v2304 = vpop.f32.mrb[0].mxu0
        %v2305 = vadd.f32 0.0, %v2304
        %v2306 = vpop.f32.mrb[0].mxu0
        %v2307 = vpop.f32.mrb[0].mxu0
        %v2308 = vadd.f32 0.0, %v2307
        %v2309 = vpop.f32.mrb[0].mxu0
        %2310 = vdwg.mxu0
        %2311 = vmatprep.subr.bf16.mxu0 0
        %2312 = vmatpush1.bf16.msra.mxu0 %v2142
        %2313 = vmatprep.subr.bf16.mxu0 0
        %2314 = vmatpush1.bf16.msra.mxu0 %v2143
        %2315 = vmatprep.subr.bf16.mxu0 0
        %2316 = vmatpush1.bf16.msra.mxu0 %v2144
        %2317 = vmatprep.subr.bf16.mxu0 0
        %2318 = vmatpush1.bf16.msra.mxu0 %v2145
        %2319 = vmatprep.subr.bf16.mxu0 0
        %2320 = vmatpush1.bf16.msra.mxu0 %v2146
        %2321 = vmatprep.subr.bf16.mxu0 0
        %2322 = vmatpush1.bf16.msra.mxu0 %v2147
        %2323 = vmatprep.subr.bf16.mxu0 0
        %2324 = vmatpush1.bf16.msra.mxu0 %v2148
        %2325 = vmatprep.subr.bf16.mxu0 0
        %2326 = vmatpush1.bf16.msra.mxu0 %v2149
        %2327 = vmatprep.subr.bf16.mxu0 0
        %2328 = vmatpush1.bf16.msra.mxu0 %v2150
        %2329 = vmatprep.subr.bf16.mxu0 0
        %2330 = vmatpush1.bf16.msra.mxu0 %v2151
        %2331 = vmatprep.subr.bf16.mxu0 0
        %2332 = vmatpush1.bf16.msra.mxu0 %v2152
        %2333 = vmatprep.subr.bf16.mxu0 0
        %2334 = vmatpush1.bf16.msra.mxu0 %v2153
        %2335 = vmatprep.subr.bf16.mxu0 0
        %2336 = vmatpush1.bf16.msra.mxu0 %v2154
        %2337 = vmatprep.subr.bf16.mxu0 0
        %2338 = vmatpush1.bf16.msra.mxu0 %v2155
        %2339 = vmatprep.subr.bf16.mxu0 0
        %2340 = vmatpush1.bf16.msra.mxu0 %v2156
        %2341 = vmatprep.subr.bf16.mxu0 0
        %2342 = vmatpush1.bf16.msra.mxu0 %v2157
        %2343 = vmatprep.mubr.bf16.mxu0 %v1688
        %2344 = vmatmul.mubr.bf16.gmra.mrb[0].mxu0 %v1687
        %v2345 = vpop.f32.mrb[0].mxu0
        %v2346 = vadd.f32 %v2305, %v2345
        %v2347 = vpop.f32.mrb[0].mxu0
        %v2348 = vpop.f32.mrb[0].mxu0
        %v2349 = vadd.f32 %v2308, %v2348
        %v2350 = vpop.f32.mrb[0].mxu0
        %2351 = vdwg.mxu0
        %2352 = vmatprep.subr.bf16.mxu0 0
        %2353 = vmatpush1.bf16.msra.mxu0 %v2158
        %2354 = vmatprep.subr.bf16.mxu0 0
        %2355 = vmatpush1.bf16.msra.mxu0 %v2159
        %2356 = vmatprep.subr.bf16.mxu0 0
        %2357 = vmatpush1.bf16.msra.mxu0 %v2160
        %2358 = vmatprep.subr.bf16.mxu0 0
        %2359 = vmatpush1.bf16.msra.mxu0 %v2161
        %2360 = vmatprep.subr.bf16.mxu0 0
        %2361 = vmatpush1.bf16.msra.mxu0 %v2162
        %2362 = vmatprep.subr.bf16.mxu0 0
        %2363 = vmatpush1.bf16.msra.mxu0 %v2163
        %2364 = vmatprep.subr.bf16.mxu0 0
        %2365 = vmatpush1.bf16.msra.mxu0 %v2164
        %2366 = vmatprep.subr.bf16.mxu0 0
        %2367 = vmatpush1.bf16.msra.mxu0 %v2165
        %2368 = vmatprep.subr.bf16.mxu0 0
        %2369 = vmatpush1.bf16.msra.mxu0 %v2166
        %2370 = vmatprep.subr.bf16.mxu0 0
        %2371 = vmatpush1.bf16.msra.mxu0 %v2167
        %2372 = vmatprep.subr.bf16.mxu0 0
        %2373 = vmatpush1.bf16.msra.mxu0 %v2168
        %2374 = vmatprep.subr.bf16.mxu0 0
        %2375 = vmatpush1.bf16.msra.mxu0 %v2169
        %2376 = vmatprep.subr.bf16.mxu0 0
        %2377 = vmatpush1.bf16.msra.mxu0 %v2170
        %2378 = vmatprep.subr.bf16.mxu0 0
        %2379 = vmatpush1.bf16.msra.mxu0 %v2171
        %2380 = vmatprep.subr.bf16.mxu0 0
        %2381 = vmatpush1.bf16.msra.mxu0 %v2172
        %2382 = vmatprep.subr.bf16.mxu0 0
        %2383 = vmatpush1.bf16.msra.mxu0 %v2173
        %2384 = vmatprep.mubr.bf16.mxu0 %v1690
        %2385 = vmatmul.mubr.bf16.gmra.mrb[0].mxu0 %v1689
        %v2386 = vpop.f32.mrb[0].mxu0
        %v2387 = vadd.f32 %v2346, %v2386
        %v2388 = vpop.f32.mrb[0].mxu0
        %v2389 = vpop.f32.mrb[0].mxu0
        %v2390 = vadd.f32 %v2349, %v2389
        %v2391 = vpop.f32.mrb[0].mxu0
        %2392 = vdwg.mxu0
        %2393 = vmatprep.subr.bf16.mxu0 0
        %2394 = vmatpush1.bf16.msra.mxu0 %v2174
        %2395 = vmatprep.subr.bf16.mxu0 0
        %2396 = vmatpush1.bf16.msra.mxu0 %v2175
        %2397 = vmatprep.subr.bf16.mxu0 0
        %2398 = vmatpush1.bf16.msra.mxu0 %v2176
        %2399 = vmatprep.subr.bf16.mxu0 0
        %2400 = vmatpush1.bf16.msra.mxu0 %v2177
        %2401 = vmatprep.subr.bf16.mxu0 0
        %2402 = vmatpush1.bf16.msra.mxu0 %v2178
        %2403 = vmatprep.subr.bf16.mxu0 0
        %2404 = vmatpush1.bf16.msra.mxu0 %v2179
        %2405 = vmatprep.subr.bf16.mxu0 0
        %2406 = vmatpush1.bf16.msra.mxu0 %v2180
        %2407 = vmatprep.subr.bf16.mxu0 0
        %2408 = vmatpush1.bf16.msra.mxu0 %v2181
        %2409 = vmatprep.subr.bf16.mxu0 0
        %2410 = vmatpush1.bf16.msra.mxu0 %v2182
        %2411 = vmatprep.subr.bf16.mxu0 0
        %2412 = vmatpush1.bf16.msra.mxu0 %v2183
        %2413 = vmatprep.subr.bf16.mxu0 0
        %2414 = vmatpush1.bf16.msra.mxu0 %v2184
        %2415 = vmatprep.subr.bf16.mxu0 0
        %2416 = vmatpush1.bf16.msra.mxu0 %v2185
        %2417 = vmatprep.subr.bf16.mxu0 0
        %2418 = vmatpush1.bf16.msra.mxu0 %v2186
        %2419 = vmatprep.subr.bf16.mxu0 0
        %2420 = vmatpush1.bf16.msra.mxu0 %v2187
        %2421 = vmatprep.subr.bf16.mxu0 0
        %2422 = vmatpush1.bf16.msra.mxu0 %v2188
        %2423 = vmatprep.subr.bf16.mxu0 0
        %2424 = vmatpush1.bf16.msra.mxu0 %v2189
        %2425 = vmatprep.mubr.bf16.mxu0 %v1692
        %2426 = vmatmul.mubr.bf16.gmra.mrb[0].mxu0 %v1691
        %v2427 = vpop.f32.mrb[0].mxu0
        %v2428 = vadd.f32 %v2387, %v2427
        %v2429 = vpop.f32.mrb[0].mxu0
        %v2430 = vpop.f32.mrb[0].mxu0
        %v2431 = vadd.f32 %v2390, %v2430
        %v2432 = vpop.f32.mrb[0].mxu0
        %2433 = vdwg.mxu0
        %2434 = vmatprep.subr.bf16.mxu0 0
        %2435 = vmatpush1.bf16.msra.mxu0 %v2190
        %2436 = vmatprep.subr.bf16.mxu0 0
        %2437 = vmatpush1.bf16.msra.mxu0 %v2191
        %2438 = vmatprep.subr.bf16.mxu0 0
        %2439 = vmatpush1.bf16.msra.mxu0 %v2192
        %2440 = vmatprep.subr.bf16.mxu0 0
        %2441 = vmatpush1.bf16.msra.mxu0 %v2193
        %2442 = vmatprep.subr.bf16.mxu0 0
        %2443 = vmatpush1.bf16.msra.mxu0 %v2194
        %2444 = vmatprep.subr.bf16.mxu0 0
        %2445 = vmatpush1.bf16.msra.mxu0 %v2195
        %2446 = vmatprep.subr.bf16.mxu0 0
        %2447 = vmatpush1.bf16.msra.mxu0 %v2196
        %2448 = vmatprep.subr.bf16.mxu0 0
        %2449 = vmatpush1.bf16.msra.mxu0 %v2197
        %2450 = vmatprep.subr.bf16.mxu0 0
        %2451 = vmatpush1.bf16.msra.mxu0 0
        %2452 = vmatprep.subr.bf16.mxu0 0
        %2453 = vmatpush1.bf16.msra.mxu0 0
        %2454 = vmatprep.subr.bf16.mxu0 0
        %2455 = vmatpush1.bf16.msra.mxu0 0
        %2456 = vmatprep.subr.bf16.mxu0 0
        %2457 = vmatpush1.bf16.msra.mxu0 0
        %2458 = vmatprep.subr.bf16.mxu0 0
        %2459 = vmatpush1.bf16.msra.mxu0 0
        %2460 = vmatprep.subr.bf16.mxu0 0
        %2461 = vmatpush1.bf16.msra.mxu0 0
        %2462 = vmatprep.subr.bf16.mxu0 0
        %2463 = vmatpush1.bf16.msra.mxu0 0
        %2464 = vmatprep.subr.bf16.mxu0 0
        %2465 = vmatpush1.bf16.msra.mxu0 0
        %2466 = vmatprep.mubr.bf16.mxu0 0
        %2467 = vmatmul.mubr.bf16.gmra.mrb[0].mxu0 %v1693
        %v2468 = vpop.f32.mrb[0].mxu0
        %v2469 = vadd.f32 %v2428, %v2468
        %v2470 = vpop.f32.mrb[0].mxu0
        %v2471 = vpop.f32.mrb[0].mxu0
        %v2472 = vadd.f32 %v2431, %v2471
        %v2473 = vpop.f32.mrb[0].mxu0
        %2474 = vdwg.mxu0
        %v2475 = vld [vmem:[#allocation10] sm:$0xf]
        %v2476 = vld [vmem:[#allocation10 + $0x4] sm:$0xf]
        %v2477 = vld [vmem:[#allocation10 + $0x8] sm:$0xf]
        %v2478 = vld [vmem:[#allocation10 + $0xc] sm:$0xf]
        %v2479 = vld [vmem:[#allocation10 + $0x10] sm:$0xf]
        %v2480 = vld [vmem:[#allocation10 + $0x14] sm:$0xf]
        %v2481 = vld [vmem:[#allocation10 + $0x18] sm:$0xf]
        %v2482 = vld [vmem:[#allocation10 + $0x1c] sm:$0xf]
        %v2483 = vld [vmem:[#allocation10 + $0x20] sm:$0xf]
        %v2484 = vld [vmem:[#allocation10 + $0x24] sm:$0xf]
        %v2485 = vld [vmem:[#allocation10 + $0x28] sm:$0xf]
        %v2486 = vld [vmem:[#allocation10 + $0x2c] sm:$0xf]
        %v2487 = vld [vmem:[#allocation10 + $0x30] sm:$0xf]
        %v2488 = vld [vmem:[#allocation10 + $0x34] sm:$0xf]
        %v2489 = vld [vmem:[#allocation10 + $0x38] sm:$0xf]
        %v2490 = vld [vmem:[#allocation10 + $0x3c] sm:$0xf]
        %v2491 = vrot.slane %v454, 4
        %v2492 = vrot.slane %v455, 4
        %v2493 = vsel %vm1679, %v2491, %v2492
        %v2511 = vunpack.c.l.b16 %v2475
        %v2512 = vunpack.c.l.b16 %v2476
        %v2513 = vunpack.c.l.b16 %v2477
        %v2514 = vunpack.c.l.b16 %v2478
        %v2515 = vunpack.c.l.b16 %v2479
        %v2516 = vunpack.c.l.b16 %v2480
        %v2517 = vunpack.c.l.b16 %v2481
        %v2518 = vunpack.c.l.b16 %v2482
        %v2519 = vunpack.c.l.b16 %v2483
        %v2520 = vunpack.c.l.b16 %v2484
        %v2521 = vunpack.c.l.b16 %v2485
        %v2522 = vunpack.c.l.b16 %v2486
        %v2523 = vunpack.c.l.b16 %v2487
        %v2524 = vunpack.c.l.b16 %v2488
        %v2525 = vunpack.c.l.b16 %v2489
        %v2526 = vunpack.c.l.b16 %v2490
        %v2527 = vpack.c.b16 %v2512, %v2511
        %v2528 = vpack.c.b16 %v2514, %v2513
        %v2529 = vpack.c.b16 %v2516, %v2515
        %v2530 = vpack.c.b16 %v2518, %v2517
        %v2531 = vpack.c.b16 %v2520, %v2519
        %v2532 = vpack.c.b16 %v2522, %v2521
        %v2533 = vpack.c.b16 %v2524, %v2523
        %v2534 = vpack.c.b16 %v2526, %v2525
        %2543 = vmatprep.subr.bf16.mxu0 0
        %2544 = vmatpush1.bf16.msra.mxu0 %v2527
        %2545 = vmatprep.subr.bf16.mxu0 0
        %2546 = vmatpush1.bf16.msra.mxu0 %v2528
        %2547 = vmatprep.subr.bf16.mxu0 0
        %2548 = vmatpush1.bf16.msra.mxu0 %v2529
        %2549 = vmatprep.subr.bf16.mxu0 0
        %2550 = vmatpush1.bf16.msra.mxu0 %v2530
        %2551 = vmatprep.subr.bf16.mxu0 0
        %2552 = vmatpush1.bf16.msra.mxu0 %v2531
        %2553 = vmatprep.subr.bf16.mxu0 0
        %2554 = vmatpush1.bf16.msra.mxu0 %v2532
        %2555 = vmatprep.subr.bf16.mxu0 0
        %2556 = vmatpush1.bf16.msra.mxu0 %v2533
        %2557 = vmatprep.subr.bf16.mxu0 0
        %2558 = vmatpush1.bf16.msra.mxu0 %v2534
        %2559 = vmatprep.subr.bf16.mxu0 0
        %2560 = vmatpush1.bf16.msra.mxu0 0
        %2561 = vmatprep.subr.bf16.mxu0 0
        %2562 = vmatpush1.bf16.msra.mxu0 0
        %2563 = vmatprep.subr.bf16.mxu0 0
        %2564 = vmatpush1.bf16.msra.mxu0 0
        %2565 = vmatprep.subr.bf16.mxu0 0
        %2566 = vmatpush1.bf16.msra.mxu0 0
        %2567 = vmatprep.subr.bf16.mxu0 0
        %2568 = vmatpush1.bf16.msra.mxu0 0
        %2569 = vmatprep.subr.bf16.mxu0 0
        %2570 = vmatpush1.bf16.msra.mxu0 0
        %2571 = vmatprep.subr.bf16.mxu0 0
        %2572 = vmatpush1.bf16.msra.mxu0 0
        %2573 = vmatprep.subr.bf16.mxu0 0
        %2574 = vmatpush1.bf16.msra.mxu0 0
        %2575 = vmatprep.mubr.bf16.mxu0 0
        %2576 = vmatmul.mubr.bf16.gmra.mrb[0].mxu0 %v2493
        %v2577 = vpop.f32.mrb[0].mxu0
        %v2578 = vadd.f32 %v2469, %v2577
        %v2579 = vpop.f32.mrb[0].mxu0
        %v2580 = vpop.f32.mrb[0].mxu0
        %v2581 = vadd.f32 %v2472, %v2580
        %v2582 = vpop.f32.mrb[0].mxu0
        %2583 = vdwg.mxu0
        %2584 = vst [vmem:[%s385] sm:$0xff] %v2578
        %2585 = vst [vmem:[%s385 + $0x8] sm:$0xff] %v2581
        %s2586 = sand.u32 %s224, 1
        %s2587 = scalar_lea.sflag [#allocation6], %s2586
        %s2588 = sand.u32 %s224, 1
        %s2589 = smul.addr %s2588, 16
        %s2590 = scalar_lea.vmem [#allocation12], %s2589
        // Predicated region
        $region69: #{tpu_custom_call.1} parent=51 // pred_check
          %p2591 = pneg %p234
        $region70: #{tpu_custom_call.1} parent=51 // pred_check_branch
          %2593 = sbr.rel (%p2591) target = $region72
        $region71: #{tpu_custom_call.1} parent=51 // pred_region
          %s2594 = smul.u32 2, %s32
          %s2596 = ssub.s32 256, 256
          %2597 = vsyncadd %s2587, %s2596
          %s2598 = smul.addr %s31, 2
          %s2599 = sadd.s32 %s2594, %s2598
          %s2600 = smul.addr %s2599, 128
          %s2601 = scalar_lea.hbm %s8, %s2600
          %s2602 = sshll.u32 %s2590, 4
          %s2603 = int_to_ptr.vmem [resolvable:$true] %s2602
          %2608 = dma.vmem_to_hbm [thread:$0]  %s2603, 256, %s2601, %s2587, 128, 128, 8
        $region72: #{tpu_custom_call.1} parent=51 // pred_fallthru
          _
      $region52: #{tpu_custom_call.1} parent=5 // pred_fallthru
        _
      %p2609 = scmp.le.s32.totalorder 2, %s22
      // Predicated region
      $region73: #{tpu_custom_call.1} parent=5 // pred_check
        %p2610 = pneg %p2609
      $region74: #{tpu_custom_call.1} parent=5 // pred_check_branch
        %2612 = sbr.rel (%p2610) target = $region76
      $region75: #{tpu_custom_call.1} parent=5 // pred_region
        %s2613 = ssub.s32 %s22, 2
        // Predicated region
        $region77: #{tpu_custom_call.1} parent=75 // pred_check
          %p2614 = pneg %p240
        $region78: #{tpu_custom_call.1} parent=75 // pred_check_branch
          %2616 = sbr.rel (%p2614) target = $region80
        $region79: #{tpu_custom_call.1} parent=75 // pred_region
          %s2617 = sand.u32 %s225, 1
          %s2618 = scalar_lea.sflag [#allocation6], %s2617
          %s2619 = sand.u32 %s225, 1
          %s2620 = smul.addr %s2619, 16
          %s2621 = scalar_lea.vmem [#allocation12], %s2620
          %2622 = dma.done %s2618, 256
        $region80: #{tpu_custom_call.1} parent=75 // pred_fallthru
          _
      $region76: #{tpu_custom_call.1} parent=5 // pred_fallthru
        _
    $region6: #{tpu_custom_call.1} parent=1 // loop_footer
      %s26 = sadd.s32 1, %s22
    $region7: #{tpu_custom_call.1} parent=1 // loop_footer_branch
      %21 = sbr.rel target = $region3
    $region8: #{tpu_custom_call.1} parent=1 // loop_exit
      _
    %2623 = vsyncpa [#allocation5], 1
    %s2624 = scalar_lea.sflag [#allocation5], 1
    %2625 = vsyncpa %s2624, 1
    %2626 = vsyncpa [#allocation8], 1
    %2627 = vsyncpa [#allocation11], 1
    %2628 = vsyncpa [#allocation6], 1
    %s2629 = scalar_lea.sflag [#allocation6], 1
    %2630 = vsyncpa %s2629, 1

</llo_original>
